<compile_context>
chip_gen: v5e
topology: v5e:2x2
jax: 0.10.0
libtpu: 0.0.40
codegen_flags: <defaults>
</compile_context>

<pallas_src>
import functools

import jax
import jax.numpy as jnp
from jax import lax
from jax.experimental import pallas as pl
from jax.experimental.pallas import tpu as pltpu


def _round_up(x, m):
    return (x + m - 1) // m * m


def _vmem_limit_bytes(cpi, cpo, lpi, m):
    """Rough per-grid-step VMEM need for pass 2 (the larger pass), 2x headroom."""
    est = (2 * cpi * lpi * 2            # input block, double-buffered, bf16
           + cpo * 9 * cpi * 2          # packed conv1 weights (resident)
           + cpo * 9 * cpo * 2          # packed conv2 weights (resident)
           + lpi * 4                    # valid-centre mask
           + cpi * (lpi + 2 * m) * 2    # margin-padded input scratch
           + 9 * cpi * lpi * 2          # conv1 im2col scratch
           + cpo * (lpi + 2 * m) * 2    # margin-padded activation scratch
           + 9 * cpo * lpi * 2          # conv2 im2col scratch
           + 2 * cpo * lpi * 4)         # f32 output block, double-buffered
    return int(min(64 * 1024 * 1024, max(8 * 1024 * 1024, 2 * est)))


def _conv1_stats_kernel(x_ref, w1_ref, mask_ref, s1_ref, s2_ref, xs_ref, im_ref,
                        *, wpq, lpi, m, cpi):
    """Pass 1: conv1 (single K=9*Cin MXU matmul) + masked partial BN sums."""
    # Stage the per-image padded input into a margin-padded VMEM scratch so
    # that every 3x3 tap becomes an in-bounds *static* lane slice.
    xs_ref[:, :m] = jnp.zeros((cpi, m), jnp.bfloat16)
    xs_ref[:, m + lpi:] = jnp.zeros((cpi, m), jnp.bfloat16)
    xs_ref[:, m:m + lpi] = x_ref[0]

    # In-kernel im2col: one VMEM-local shifted copy per tap (overlaps the MXU).
    for t in range(9):
        dy, dx = t // 3, t % 3
        off = (dy - 1) * wpq + (dx - 1)
        im_ref[t * cpi:(t + 1) * cpi, :] = xs_ref[:, m + off:m + off + lpi]

    # conv1: ONE bf16 MXU matmul with f32 accumulation.
    mid = jnp.dot(w1_ref[...], im_ref[...],
                  preferred_element_type=jnp.float32)        # (Cout_p, Lpi)

    # Pad-centred / lane-pad columns hold (finite) garbage; mask them out of
    # the batch statistics.  Sums are reduced over N in the wrapper.
    mm = mid * mask_ref[...]
    s1_ref[0] = jnp.sum(mm, axis=1, keepdims=True)           # (Cout_p, 1)
    s2_ref[0] = jnp.sum(mm * mid, axis=1, keepdims=True)


def _fused_block_kernel(x_ref, w1_ref, w2_ref, mask_ref, a_ref, b_ref, out_ref,
                        xs_ref, im1_ref, ym_ref, im2_ref,
                        *, wpq, lpi, m, cpi, cpo):
    """Pass 2: conv1 (recomputed) -> BN affine -> LeakyReLU(0.2) -> conv2."""
    # ---- conv1 (same code path as pass 1 -> bit-identical intermediate) ----
    xs_ref[:, :m] = jnp.zeros((cpi, m), jnp.bfloat16)
    xs_ref[:, m + lpi:] = jnp.zeros((cpi, m), jnp.bfloat16)
    xs_ref[:, m:m + lpi] = x_ref[0]
    for t in range(9):
        dy, dx = t // 3, t % 3
        off = (dy - 1) * wpq + (dx - 1)
        im1_ref[t * cpi:(t + 1) * cpi, :] = xs_ref[:, m + off:m + off + lpi]
    mid = jnp.dot(w1_ref[...], im1_ref[...],
                  preferred_element_type=jnp.float32)        # (Cout_p, Lpi) f32

    # ---- BN affine (precomputed per-channel scale/offset) + LeakyReLU, f32 --
    y = a_ref[...] * mid + b_ref[...]
    y = jnp.where(y > 0, y, 0.2 * y)

    # Re-zero the pad ring (mask) so conv2 sees proper zero padding; stage the
    # bf16 activation with margins for conv2's tap slices.
    ym_ref[:, :m] = jnp.zeros((cpo, m), jnp.bfloat16)
    ym_ref[:, m + lpi:] = jnp.zeros((cpo, m), jnp.bfloat16)
    ym_ref[:, m:m + lpi] = (y * mask_ref[...]).astype(jnp.bfloat16)

    # ---- conv2: in-kernel im2col + ONE K=9*Cout MXU matmul -------------------
    for t in range(9):
        dy, dx = t // 3, t % 3
        off = (dy - 1) * wpq + (dx - 1)
        im2_ref[t * cpo:(t + 1) * cpo, :] = ym_ref[:, m + off:m + off + lpi]
    # Accumulation stays inside the MXU; lane-dense f32 output stores.
    out_ref[0] = jnp.dot(w2_ref[...], im2_ref[...],
                         preferred_element_type=jnp.float32)


@jax.jit
def res_block_forward(x_nchw, w1_oihw, w2_oihw, gamma, beta):
    """Res_Block.forward for the default config (sample==0, ngpu=1, no upsample/avg)."""
    x_nchw = x_nchw.astype(jnp.float32)
    N, Cin, H, W = x_nchw.shape
    Cout = w1_oihw.shape[0]
    Hp, Wpq = H + 2, W + 2                  # per-image zero-padded spatial dims
    Lval = Hp * Wpq                         # real padded pixels per image
    Lpi = _round_up(Lval, 128)              # per-image lane extent
    M = _round_up(Wpq + 1, 128)             # conv tap-slice margin (lane aligned)
    CPi = _round_up(Cin, 16)                # channel padding keeps bf16 sublane
    CPo = _round_up(Cout, 16)               #   slices of the im2col tile-aligned

    # ---- pack input once: NCHW -> per-image padded, channel/lane padded bf16
    xp = jnp.pad(x_nchw, ((0, 0), (0, 0), (1, 1), (1, 1))).reshape(N, Cin, Lval)
    xp = jnp.pad(xp, ((0, 0), (0, CPi - Cin), (0, Lpi - Lval))).astype(jnp.bfloat16)

    # ---- pack weights: OIHW -> (Cout_p, 9*Cin_p), tap-major / cin-minor, bf16
    w1p = jnp.pad(w1_oihw.astype(jnp.float32),
                  ((0, CPo - Cout), (0, CPi - Cin), (0, 0), (0, 0)))
    w1p = jnp.transpose(w1p, (0, 2, 3, 1)).reshape(CPo, 9 * CPi).astype(jnp.bfloat16)
    w2p = jnp.pad(w2_oihw.astype(jnp.float32),
                  ((0, CPo - Cout), (0, CPo - Cout), (0, 0), (0, 0)))
    w2p = jnp.transpose(w2p, (0, 2, 3, 1)).reshape(CPo, 9 * CPo).astype(jnp.bfloat16)

    # ---- valid-centre column mask (identical for every image) ---------------
    hp = jnp.arange(Hp)
    wp = jnp.arange(Wpq)
    cv = (((hp >= 1) & (hp <= H))[:, None] & ((wp >= 1) & (wp <= W))[None, :])
    mask = jnp.pad(cv.reshape(1, Lval).astype(jnp.float32),
                   ((0, 0), (0, Lpi - Lval)))

    gamma_p = jnp.pad(gamma.astype(jnp.float32), (0, CPo - Cout))  # 0 for padded
    beta_p = jnp.pad(beta.astype(jnp.float32), (0, CPo - Cout))    # channels

    cparams = pltpu.CompilerParams(
        dimension_semantics=("parallel",),
        vmem_limit_bytes=_vmem_limit_bytes(CPi, CPo, Lpi, M))

    # ---------------- pass 1: conv1 + per-image partial BN statistics --------
    kernel_a = functools.partial(_conv1_stats_kernel,
                                 wpq=Wpq, lpi=Lpi, m=M, cpi=CPi)
    s1p, s2p = pl.pallas_call(
        kernel_a,
        out_shape=(jax.ShapeDtypeStruct((N, CPo, 1), jnp.float32),
                   jax.ShapeDtypeStruct((N, CPo, 1), jnp.float32)),
        grid=(N,),
        in_specs=[pl.BlockSpec((1, CPi, Lpi), lambda n: (n, 0, 0)),
                  pl.BlockSpec((CPo, 9 * CPi), lambda n: (0, 0)),
                  pl.BlockSpec((1, Lpi), lambda n: (0, 0))],
        out_specs=[pl.BlockSpec((1, CPo, 1), lambda n: (n, 0, 0)),
                   pl.BlockSpec((1, CPo, 1), lambda n: (n, 0, 0))],
        scratch_shapes=[pltpu.VMEM((CPi, Lpi + 2 * M), jnp.bfloat16),
                        pltpu.VMEM((9 * CPi, Lpi), jnp.bfloat16)],
        compiler_params=cparams,
    )(xp, w1p, mask)

    # ---- fold batch stats into per-channel scale/offset (Cout-sized, tiny) --
    n_valid = float(N * H * W)
    s1 = jnp.sum(s1p[:, :, 0], axis=0)
    s2 = jnp.sum(s2p[:, :, 0], axis=0)
    mean = s1 / n_valid
    var = jnp.maximum(s2 / n_valid - mean * mean, 0.0)   # biased batch variance
    a = gamma_p * lax.rsqrt(var + 1e-5)
    b = beta_p - mean * a
    a2 = a.reshape(CPo, 1)
    b2 = b.reshape(CPo, 1)

    # ---------------- pass 2: conv1 (recomputed) + BN + LReLU + conv2 --------
    kernel_b = functools.partial(_fused_block_kernel,
                                 wpq=Wpq, lpi=Lpi, m=M, cpi=CPi, cpo=CPo)
    outp = pl.pallas_call(
        kernel_b,
        out_shape=jax.ShapeDtypeStruct((N, CPo, Lpi), jnp.float32),
        grid=(N,),
        in_specs=[pl.BlockSpec((1, CPi, Lpi), lambda n: (n, 0, 0)),
                  pl.BlockSpec((CPo, 9 * CPi), lambda n: (0, 0)),
                  pl.BlockSpec((CPo, 9 * CPo), lambda n: (0, 0)),
                  pl.BlockSpec((1, Lpi), lambda n: (0, 0)),
                  pl.BlockSpec((CPo, 1), lambda n: (0, 0)),
                  pl.BlockSpec((CPo, 1), lambda n: (0, 0))],
        out_specs=pl.BlockSpec((1, CPo, Lpi), lambda n: (n, 0, 0)),
        scratch_shapes=[pltpu.VMEM((CPi, Lpi + 2 * M), jnp.bfloat16),
                        pltpu.VMEM((9 * CPi, Lpi), jnp.bfloat16),
                        pltpu.VMEM((CPo, Lpi + 2 * M), jnp.bfloat16),
                        pltpu.VMEM((9 * CPo, Lpi), jnp.bfloat16)],
        compiler_params=cparams,
    )(xp, w1p, w2p, mask, a2, b2)

    # The packed (channels, flattened padded pixels) layout is chain-friendly
    # for the next equal-channel Res_Block; convert to NCHW once here to match
    # the PyTorch module's output contract (pad-ring columns are garbage and
    # are discarded by this slice).
    out = outp[:, :Cout, :Lval].reshape(N, Cout, Hp, Wpq)[:, :, 1:H + 1, 1:W + 1]
    return out


def res_block_reference(x, w1, w2, gamma, beta):
    """Pure-JAX reference with the same bf16-operand / f32-accumulate precision."""
    dn = ("NCHW", "OIHW", "NCHW")
    y = lax.conv_general_dilated(x.astype(jnp.bfloat16), w1.astype(jnp.bfloat16),
                                 (1, 1), "SAME", dimension_numbers=dn,
                                 preferred_element_type=jnp.float32)
    mean = jnp.mean(y, axis=(0, 2, 3), keepdims=True)
    var = jnp.var(y, axis=(0, 2, 3), keepdims=True)              # biased, as in BN
    y = (y - mean) * lax.rsqrt(var + 1e-5)
    y = y * gamma.reshape(1, -1, 1, 1) + beta.reshape(1, -1, 1, 1)
    y = jnp.where(y > 0, y, 0.2 * y)
    return lax.conv_general_dilated(y.astype(jnp.bfloat16), w2.astype(jnp.bfloat16),
                                    (1, 1), "SAME", dimension_numbers=dn,
                                    preferred_element_type=jnp.float32)


def _run_case(key, N, C, H, W):
    kx, k1, k2, kg, kb = jax.random.split(key, 5)
    x = jax.random.normal(kx, (N, C, H, W), jnp.float32)
    w1 = 0.1 * jax.random.normal(k1, (C, C, 3, 3), jnp.float32)
    w2 = 0.1 * jax.random.normal(k2, (C, C, 3, 3), jnp.float32)
    gamma = 1.0 + 0.1 * jax.random.normal(kg, (C,), jnp.float32)
    beta = 0.1 * jax.random.normal(kb, (C,), jnp.float32)

    out = jax.block_until_ready(res_block_forward(x, w1, w2, gamma, beta))
    ref = jax.block_until_ready(res_block_reference(x, w1, w2, gamma, beta))

    assert out.shape == (N, C, H, W), out.shape
    max_err = float(jnp.max(jnp.abs(out - ref)))
    assert jnp.allclose(out, ref, rtol=1e-2, atol=1e-2), max_err
    return max_err


if __name__ == "__main__":
    keys = jax.random.split(jax.random.PRNGKey(0), 3)
    _run_case(keys[0], 2, 32, 16, 16)    # Intro_gen-style Res_Block(32, 32)
    _run_case(keys[1], 2, 4, 16, 16)     # tiny-channel sanity case (channel pad)
    _run_case(keys[2], 2, 16, 12, 12)    # pixel count not a multiple of 128
    print("KERNEL_OK")
</pallas_src>

<mosaic_0001>
module attributes {stable_mosaic.version = 11 : i64} {
  func.func @_conv1_stats_kernel(%arg0: i32, %arg1: memref<1x32x384xbf16, #tpu.memory_space<vmem>>, %arg2: memref<32x288xbf16, #tpu.memory_space<vmem>>, %arg3: memref<1x384xf32, #tpu.memory_space<vmem>>, %arg4: memref<1x32x1xf32, #tpu.memory_space<vmem>>, %arg5: memref<1x32x1xf32, #tpu.memory_space<vmem>>, %arg6: memref<32x640xbf16, #tpu.memory_space<vmem>>, %arg7: memref<288x384xbf16, #tpu.memory_space<vmem>>) attributes {dimension_semantics = [#tpu.dimension_semantics<parallel>], iteration_bounds = array<i64: 2>, scalar_prefetch = 0 : i64, scratch_operands = 2 : i64, tpu.core_type = #tpu.core_type<tc>, window_params = [{transform_indices = @transform_0, window_bounds = array<i64: 1, 32, 384>}, {pipeline_mode = #tpu.pipeline_mode<synchronous>, transform_indices = @transform_1, window_bounds = array<i64: 32, 288>}, {pipeline_mode = #tpu.pipeline_mode<synchronous>, transform_indices = @transform_2, window_bounds = array<i64: 1, 384>}, {transform_indices = @transform_3, window_bounds = array<i64: 1, 32, 1>}, {transform_indices = @transform_4, window_bounds = array<i64: 1, 32, 1>}]} {
    %cst = arith.constant 0.000000e+00 : bf16
    %0 = vector.broadcast %cst : bf16 to vector<32x128xbf16>
    %c0 = arith.constant 0 : index
    %c0_0 = arith.constant 0 : index
    %1 = vector.load %arg6[%c0, %c0_0] : memref<32x640xbf16, #tpu.memory_space<vmem>>, vector<32x128xbf16>
    tpu.vector_store %arg6[%c0, %c0_0], %0 {strides = array<i32>} : memref<32x640xbf16, #tpu.memory_space<vmem>>, vector<32x128xbf16>,
    %cst_1 = arith.constant 0.000000e+00 : bf16
    %2 = vector.broadcast %cst_1 : bf16 to vector<32x128xbf16>
    %c0_2 = arith.constant 0 : index
    %c512 = arith.constant 512 : index
    %3 = vector.load %arg6[%c0_2, %c512] : memref<32x640xbf16, #tpu.memory_space<vmem>>, vector<32x128xbf16>
    tpu.vector_store %arg6[%c0_2, %c512], %2 {strides = array<i32>} : memref<32x640xbf16, #tpu.memory_space<vmem>>, vector<32x128xbf16>,
    %c0_3 = arith.constant 0 : index
    %c0_4 = arith.constant 0 : index
    %c0_5 = arith.constant 0 : index
    %4 = vector.load %arg1[%c0_3, %c0_4, %c0_5] : memref<1x32x384xbf16, #tpu.memory_space<vmem>>, vector<1x32x384xbf16>
    %5 = vector.shape_cast %4 : vector<1x32x384xbf16> to vector<32x384xbf16>
    %c0_6 = arith.constant 0 : index
    %c128 = arith.constant 128 : index
    %6 = vector.load %arg6[%c0_6, %c128] : memref<32x640xbf16, #tpu.memory_space<vmem>>, vector<32x384xbf16>
    tpu.vector_store %arg6[%c0_6, %c128], %5 {strides = array<i32>} : memref<32x640xbf16, #tpu.memory_space<vmem>>, vector<32x384xbf16>,
    %c0_7 = arith.constant 0 : index
    %c109 = arith.constant 109 : index
    %7 = vector.load %arg6[%c0_7, %c109] : memref<32x640xbf16, #tpu.memory_space<vmem>>, vector<32x384xbf16>
    %c0_8 = arith.constant 0 : index
    %c0_9 = arith.constant 0 : index
    %8 = vector.load %arg7[%c0_8, %c0_9] : memref<288x384xbf16, #tpu.memory_space<vmem>>, vector<32x384xbf16>
    tpu.vector_store %arg7[%c0_8, %c0_9], %7 {strides = array<i32>} : memref<288x384xbf16, #tpu.memory_space<vmem>>, vector<32x384xbf16>,
    %c0_10 = arith.constant 0 : index
    %c110 = arith.constant 110 : index
    %9 = vector.load %arg6[%c0_10, %c110] : memref<32x640xbf16, #tpu.memory_space<vmem>>, vector<32x384xbf16>
    %c32 = arith.constant 32 : index
    %c0_11 = arith.constant 0 : index
    %10 = vector.load %arg7[%c32, %c0_11] : memref<288x384xbf16, #tpu.memory_space<vmem>>, vector<32x384xbf16>
    tpu.vector_store %arg7[%c32, %c0_11], %9 {strides = array<i32>} : memref<288x384xbf16, #tpu.memory_space<vmem>>, vector<32x384xbf16>,
    %c0_12 = arith.constant 0 : index
    %c111 = arith.constant 111 : index
    %11 = vector.load %arg6[%c0_12, %c111] : memref<32x640xbf16, #tpu.memory_space<vmem>>, vector<32x384xbf16>
    %c64 = arith.constant 64 : index
    %c0_13 = arith.constant 0 : index
    %12 = vector.load %arg7[%c64, %c0_13] : memref<288x384xbf16, #tpu.memory_space<vmem>>, vector<32x384xbf16>
    tpu.vector_store %arg7[%c64, %c0_13], %11 {strides = array<i32>} : memref<288x384xbf16, #tpu.memory_space<vmem>>, vector<32x384xbf16>,
    %c0_14 = arith.constant 0 : index
    %c127 = arith.constant 127 : index
    %13 = vector.load %arg6[%c0_14, %c127] : memref<32x640xbf16, #tpu.memory_space<vmem>>, vector<32x384xbf16>
    %c96 = arith.constant 96 : index
    %c0_15 = arith.constant 0 : index
    %14 = vector.load %arg7[%c96, %c0_15] : memref<288x384xbf16, #tpu.memory_space<vmem>>, vector<32x384xbf16>
    tpu.vector_store %arg7[%c96, %c0_15], %13 {strides = array<i32>} : memref<288x384xbf16, #tpu.memory_space<vmem>>, vector<32x384xbf16>,
    %c0_16 = arith.constant 0 : index
    %c128_17 = arith.constant 128 : index
    %15 = vector.load %arg6[%c0_16, %c128_17] : memref<32x640xbf16, #tpu.memory_space<vmem>>, vector<32x384xbf16>
    %c128_18 = arith.constant 128 : index
    %c0_19 = arith.constant 0 : index
    %16 = vector.load %arg7[%c128_18, %c0_19] : memref<288x384xbf16, #tpu.memory_space<vmem>>, vector<32x384xbf16>
    tpu.vector_store %arg7[%c128_18, %c0_19], %15 {strides = array<i32>} : memref<288x384xbf16, #tpu.memory_space<vmem>>, vector<32x384xbf16>,
    %c0_20 = arith.constant 0 : index
    %c129 = arith.constant 129 : index
    %17 = vector.load %arg6[%c0_20, %c129] : memref<32x640xbf16, #tpu.memory_space<vmem>>, vector<32x384xbf16>
    %c160 = arith.constant 160 : index
    %c0_21 = arith.constant 0 : index
    %18 = vector.load %arg7[%c160, %c0_21] : memref<288x384xbf16, #tpu.memory_space<vmem>>, vector<32x384xbf16>
    tpu.vector_store %arg7[%c160, %c0_21], %17 {strides = array<i32>} : memref<288x384xbf16, #tpu.memory_space<vmem>>, vector<32x384xbf16>,
    %c0_22 = arith.constant 0 : index
    %c145 = arith.constant 145 : index
    %19 = vector.load %arg6[%c0_22, %c145] : memref<32x640xbf16, #tpu.memory_space<vmem>>, vector<32x384xbf16>
    %c192 = arith.constant 192 : index
    %c0_23 = arith.constant 0 : index
    %20 = vector.load %arg7[%c192, %c0_23] : memref<288x384xbf16, #tpu.memory_space<vmem>>, vector<32x384xbf16>
    tpu.vector_store %arg7[%c192, %c0_23], %19 {strides = array<i32>} : memref<288x384xbf16, #tpu.memory_space<vmem>>, vector<32x384xbf16>,
    %c0_24 = arith.constant 0 : index
    %c146 = arith.constant 146 : index
    %21 = vector.load %arg6[%c0_24, %c146] : memref<32x640xbf16, #tpu.memory_space<vmem>>, vector<32x384xbf16>
    %c224 = arith.constant 224 : index
    %c0_25 = arith.constant 0 : index
    %22 = vector.load %arg7[%c224, %c0_25] : memref<288x384xbf16, #tpu.memory_space<vmem>>, vector<32x384xbf16>
    tpu.vector_store %arg7[%c224, %c0_25], %21 {strides = array<i32>} : memref<288x384xbf16, #tpu.memory_space<vmem>>, vector<32x384xbf16>,
    %c0_26 = arith.constant 0 : index
    %c147 = arith.constant 147 : index
    %23 = vector.load %arg6[%c0_26, %c147] : memref<32x640xbf16, #tpu.memory_space<vmem>>, vector<32x384xbf16>
    %c256 = arith.constant 256 : index
    %c0_27 = arith.constant 0 : index
    %24 = vector.load %arg7[%c256, %c0_27] : memref<288x384xbf16, #tpu.memory_space<vmem>>, vector<32x384xbf16>
    tpu.vector_store %arg7[%c256, %c0_27], %23 {strides = array<i32>} : memref<288x384xbf16, #tpu.memory_space<vmem>>, vector<32x384xbf16>,
    %c0_28 = arith.constant 0 : index
    %c0_29 = arith.constant 0 : index
    %25 = vector.load %arg2[%c0_28, %c0_29] : memref<32x288xbf16, #tpu.memory_space<vmem>>, vector<32x288xbf16>
    %c0_30 = arith.constant 0 : index
    %c0_31 = arith.constant 0 : index
    %26 = vector.load %arg7[%c0_30, %c0_31] : memref<288x384xbf16, #tpu.memory_space<vmem>>, vector<288x384xbf16>
    %cst_32 = arith.constant dense<0.000000e+00> : vector<32x384xf32>
    %27 = tpu.matmul %25, %26, %cst_32 {dimension_numbers = #tpu.dot_dimension_numbers<[1], [0], [0], [1], [0, 0, 1, 1], [], []>} : vector<32x288xbf16>, vector<288x384xbf16>, vector<32x384xf32> -> vector<32x384xf32>
    %c0_33 = arith.constant 0 : index
    %c0_34 = arith.constant 0 : index
    %28 = vector.load %arg3[%c0_33, %c0_34] : memref<1x384xf32, #tpu.memory_space<vmem>>, vector<1x384xf32>
    %29 = vector.broadcast %28 : vector<1x384xf32> to vector<32x384xf32>
    %30 = arith.mulf %27, %29 : vector<32x384xf32>
    %cst_35 = arith.constant dense<0.000000e+00> : vector<32xf32>
    %31 = vector.multi_reduction <add>, %30, %cst_35 [1] : vector<32x384xf32> to vector<32xf32>
    %32 = vector.shape_cast %31 : vector<32xf32> to vector<32x1xf32>
    %c0_36 = arith.constant 0 : index
    %c0_37 = arith.constant 0 : index
    %c0_38 = arith.constant 0 : index
    %33 = vector.load %arg4[%c0_36, %c0_37, %c0_38] : memref<1x32x1xf32, #tpu.memory_space<vmem>>, vector<1x32x1xf32>
    %34 = vector.shape_cast %33 : vector<1x32x1xf32> to vector<32x1xf32>
    %35 = vector.shape_cast %32 : vector<32x1xf32> to vector<1x32x1xf32>
    tpu.vector_store %arg4[%c0_36, %c0_37, %c0_38], %35 {strides = array<i32>} : memref<1x32x1xf32, #tpu.memory_space<vmem>>, vector<1x32x1xf32>,
    %36 = arith.mulf %30, %27 : vector<32x384xf32>
    %cst_39 = arith.constant dense<0.000000e+00> : vector<32xf32>
    %37 = vector.multi_reduction <add>, %36, %cst_39 [1] : vector<32x384xf32> to vector<32xf32>
    %38 = vector.shape_cast %37 : vector<32xf32> to vector<32x1xf32>
    %c0_40 = arith.constant 0 : index
    %c0_41 = arith.constant 0 : index
    %c0_42 = arith.constant 0 : index
    %39 = vector.load %arg5[%c0_40, %c0_41, %c0_42] : memref<1x32x1xf32, #tpu.memory_space<vmem>>, vector<1x32x1xf32>
    %40 = vector.shape_cast %39 : vector<1x32x1xf32> to vector<32x1xf32>
    %41 = vector.shape_cast %38 : vector<32x1xf32> to vector<1x32x1xf32>
    tpu.vector_store %arg5[%c0_40, %c0_41, %c0_42], %41 {strides = array<i32>} : memref<1x32x1xf32, #tpu.memory_space<vmem>>, vector<1x32x1xf32>,
    return
  }
  func.func @transform_0(%arg0: i32) -> (i32, i32, i32) {
    %c0_i32 = arith.constant 0 : i32
    %c0_i32_0 = arith.constant 0 : i32
    %c0_i32_1 = arith.constant 0 : i32
    return %arg0, %c0_i32, %c0_i32_0 : i32, i32, i32
  }
  func.func @transform_1(%arg0: i32) -> (i32, i32) {
    %c0_i32 = arith.constant 0 : i32
    %c0_i32_0 = arith.constant 0 : i32
    %c0_i32_1 = arith.constant 0 : i32
    return %c0_i32, %c0_i32_0 : i32, i32
  }
  func.func @transform_2(%arg0: i32) -> (i32, i32) {
    %c0_i32 = arith.constant 0 : i32
    %c0_i32_0 = arith.constant 0 : i32
    %c0_i32_1 = arith.constant 0 : i32
    return %c0_i32, %c0_i32_0 : i32, i32
  }
  func.func @transform_3(%arg0: i32) -> (i32, i32, i32) {
    %c0_i32 = arith.constant 0 : i32
    %c0_i32_0 = arith.constant 0 : i32
    %c0_i32_1 = arith.constant 0 : i32
    return %arg0, %c0_i32, %c0_i32_0 : i32, i32, i32
  }
  func.func @transform_4(%arg0: i32) -> (i32, i32, i32) {
    %c0_i32 = arith.constant 0 : i32
    %c0_i32_0 = arith.constant 0 : i32
    %c0_i32_1 = arith.constant 0 : i32
    return %arg0, %c0_i32, %c0_i32_0 : i32, i32, i32
  }
}

module attributes {stable_mosaic.version = 11 : i64} {
  func.func @_fused_block_kernel(%arg0: i32, %arg1: memref<1x32x384xbf16, #tpu.memory_space<vmem>>, %arg2: memref<32x288xbf16, #tpu.memory_space<vmem>>, %arg3: memref<32x288xbf16, #tpu.memory_space<vmem>>, %arg4: memref<1x384xf32, #tpu.memory_space<vmem>>, %arg5: memref<32x1xf32, #tpu.memory_space<vmem>>, %arg6: memref<32x1xf32, #tpu.memory_space<vmem>>, %arg7: memref<1x32x384xf32, #tpu.memory_space<vmem>>, %arg8: memref<32x640xbf16, #tpu.memory_space<vmem>>, %arg9: memref<288x384xbf16, #tpu.memory_space<vmem>>, %arg10: memref<32x640xbf16, #tpu.memory_space<vmem>>, %arg11: memref<288x384xbf16, #tpu.memory_space<vmem>>) attributes {dimension_semantics = [#tpu.dimension_semantics<parallel>], iteration_bounds = array<i64: 2>, scalar_prefetch = 0 : i64, scratch_operands = 4 : i64, tpu.core_type = #tpu.core_type<tc>, window_params = [{transform_indices = @transform_0, window_bounds = array<i64: 1, 32, 384>}, {pipeline_mode = #tpu.pipeline_mode<synchronous>, transform_indices = @transform_1, window_bounds = array<i64: 32, 288>}, {pipeline_mode = #tpu.pipeline_mode<synchronous>, transform_indices = @transform_2, window_bounds = array<i64: 32, 288>}, {pipeline_mode = #tpu.pipeline_mode<synchronous>, transform_indices = @transform_3, window_bounds = array<i64: 1, 384>}, {pipeline_mode = #tpu.pipeline_mode<synchronous>, transform_indices = @transform_4, window_bounds = array<i64: 32, 1>}, {pipeline_mode = #tpu.pipeline_mode<synchronous>, transform_indices = @transform_5, window_bounds = array<i64: 32, 1>}, {transform_indices = @transform_6, window_bounds = array<i64: 1, 32, 384>}]} {
    %cst = arith.constant 0.000000e+00 : bf16
    %0 = vector.broadcast %cst : bf16 to vector<32x128xbf16>
    %c0 = arith.constant 0 : index
    %c0_0 = arith.constant 0 : index
    %1 = vector.load %arg8[%c0, %c0_0] : memref<32x640xbf16, #tpu.memory_space<vmem>>, vector<32x128xbf16>
    tpu.vector_store %arg8[%c0, %c0_0], %0 {strides = array<i32>} : memref<32x640xbf16, #tpu.memory_space<vmem>>, vector<32x128xbf16>,
    %cst_1 = arith.constant 0.000000e+00 : bf16
    %2 = vector.broadcast %cst_1 : bf16 to vector<32x128xbf16>
    %c0_2 = arith.constant 0 : index
    %c512 = arith.constant 512 : index
    %3 = vector.load %arg8[%c0_2, %c512] : memref<32x640xbf16, #tpu.memory_space<vmem>>, vector<32x128xbf16>
    tpu.vector_store %arg8[%c0_2, %c512], %2 {strides = array<i32>} : memref<32x640xbf16, #tpu.memory_space<vmem>>, vector<32x128xbf16>,
    %c0_3 = arith.constant 0 : index
    %c0_4 = arith.constant 0 : index
    %c0_5 = arith.constant 0 : index
    %4 = vector.load %arg1[%c0_3, %c0_4, %c0_5] : memref<1x32x384xbf16, #tpu.memory_space<vmem>>, vector<1x32x384xbf16>
    %5 = vector.shape_cast %4 : vector<1x32x384xbf16> to vector<32x384xbf16>
    %c0_6 = arith.constant 0 : index
    %c128 = arith.constant 128 : index
    %6 = vector.load %arg8[%c0_6, %c128] : memref<32x640xbf16, #tpu.memory_space<vmem>>, vector<32x384xbf16>
    tpu.vector_store %arg8[%c0_6, %c128], %5 {strides = array<i32>} : memref<32x640xbf16, #tpu.memory_space<vmem>>, vector<32x384xbf16>,
    %c0_7 = arith.constant 0 : index
    %c109 = arith.constant 109 : index
    %7 = vector.load %arg8[%c0_7, %c109] : memref<32x640xbf16, #tpu.memory_space<vmem>>, vector<32x384xbf16>
    %c0_8 = arith.constant 0 : index
    %c0_9 = arith.constant 0 : index
    %8 = vector.load %arg9[%c0_8, %c0_9] : memref<288x384xbf16, #tpu.memory_space<vmem>>, vector<32x384xbf16>
    tpu.vector_store %arg9[%c0_8, %c0_9], %7 {strides = array<i32>} : memref<288x384xbf16, #tpu.memory_space<vmem>>, vector<32x384xbf16>,
    %c0_10 = arith.constant 0 : index
    %c110 = arith.constant 110 : index
    %9 = vector.load %arg8[%c0_10, %c110] : memref<32x640xbf16, #tpu.memory_space<vmem>>, vector<32x384xbf16>
    %c32 = arith.constant 32 : index
    %c0_11 = arith.constant 0 : index
    %10 = vector.load %arg9[%c32, %c0_11] : memref<288x384xbf16, #tpu.memory_space<vmem>>, vector<32x384xbf16>
    tpu.vector_store %arg9[%c32, %c0_11], %9 {strides = array<i32>} : memref<288x384xbf16, #tpu.memory_space<vmem>>, vector<32x384xbf16>,
    %c0_12 = arith.constant 0 : index
    %c111 = arith.constant 111 : index
    %11 = vector.load %arg8[%c0_12, %c111] : memref<32x640xbf16, #tpu.memory_space<vmem>>, vector<32x384xbf16>
    %c64 = arith.constant 64 : index
    %c0_13 = arith.constant 0 : index
    %12 = vector.load %arg9[%c64, %c0_13] : memref<288x384xbf16, #tpu.memory_space<vmem>>, vector<32x384xbf16>
    tpu.vector_store %arg9[%c64, %c0_13], %11 {strides = array<i32>} : memref<288x384xbf16, #tpu.memory_space<vmem>>, vector<32x384xbf16>,
    %c0_14 = arith.constant 0 : index
    %c127 = arith.constant 127 : index
    %13 = vector.load %arg8[%c0_14, %c127] : memref<32x640xbf16, #tpu.memory_space<vmem>>, vector<32x384xbf16>
    %c96 = arith.constant 96 : index
    %c0_15 = arith.constant 0 : index
    %14 = vector.load %arg9[%c96, %c0_15] : memref<288x384xbf16, #tpu.memory_space<vmem>>, vector<32x384xbf16>
    tpu.vector_store %arg9[%c96, %c0_15], %13 {strides = array<i32>} : memref<288x384xbf16, #tpu.memory_space<vmem>>, vector<32x384xbf16>,
    %c0_16 = arith.constant 0 : index
    %c128_17 = arith.constant 128 : index
    %15 = vector.load %arg8[%c0_16, %c128_17] : memref<32x640xbf16, #tpu.memory_space<vmem>>, vector<32x384xbf16>
    %c128_18 = arith.constant 128 : index
    %c0_19 = arith.constant 0 : index
    %16 = vector.load %arg9[%c128_18, %c0_19] : memref<288x384xbf16, #tpu.memory_space<vmem>>, vector<32x384xbf16>
    tpu.vector_store %arg9[%c128_18, %c0_19], %15 {strides = array<i32>} : memref<288x384xbf16, #tpu.memory_space<vmem>>, vector<32x384xbf16>,
    %c0_20 = arith.constant 0 : index
    %c129 = arith.constant 129 : index
    %17 = vector.load %arg8[%c0_20, %c129] : memref<32x640xbf16, #tpu.memory_space<vmem>>, vector<32x384xbf16>
    %c160 = arith.constant 160 : index
    %c0_21 = arith.constant 0 : index
    %18 = vector.load %arg9[%c160, %c0_21] : memref<288x384xbf16, #tpu.memory_space<vmem>>, vector<32x384xbf16>
    tpu.vector_store %arg9[%c160, %c0_21], %17 {strides = array<i32>} : memref<288x384xbf16, #tpu.memory_space<vmem>>, vector<32x384xbf16>,
    %c0_22 = arith.constant 0 : index
    %c145 = arith.constant 145 : index
    %19 = vector.load %arg8[%c0_22, %c145] : memref<32x640xbf16, #tpu.memory_space<vmem>>, vector<32x384xbf16>
    %c192 = arith.constant 192 : index
    %c0_23 = arith.constant 0 : index
    %20 = vector.load %arg9[%c192, %c0_23] : memref<288x384xbf16, #tpu.memory_space<vmem>>, vector<32x384xbf16>
    tpu.vector_store %arg9[%c192, %c0_23], %19 {strides = array<i32>} : memref<288x384xbf16, #tpu.memory_space<vmem>>, vector<32x384xbf16>,
    %c0_24 = arith.constant 0 : index
    %c146 = arith.constant 146 : index
    %21 = vector.load %arg8[%c0_24, %c146] : memref<32x640xbf16, #tpu.memory_space<vmem>>, vector<32x384xbf16>
    %c224 = arith.constant 224 : index
    %c0_25 = arith.constant 0 : index
    %22 = vector.load %arg9[%c224, %c0_25] : memref<288x384xbf16, #tpu.memory_space<vmem>>, vector<32x384xbf16>
    tpu.vector_store %arg9[%c224, %c0_25], %21 {strides = array<i32>} : memref<288x384xbf16, #tpu.memory_space<vmem>>, vector<32x384xbf16>,
    %c0_26 = arith.constant 0 : index
    %c147 = arith.constant 147 : index
    %23 = vector.load %arg8[%c0_26, %c147] : memref<32x640xbf16, #tpu.memory_space<vmem>>, vector<32x384xbf16>
    %c256 = arith.constant 256 : index
    %c0_27 = arith.constant 0 : index
    %24 = vector.load %arg9[%c256, %c0_27] : memref<288x384xbf16, #tpu.memory_space<vmem>>, vector<32x384xbf16>
    tpu.vector_store %arg9[%c256, %c0_27], %23 {strides = array<i32>} : memref<288x384xbf16, #tpu.memory_space<vmem>>, vector<32x384xbf16>,
    %c0_28 = arith.constant 0 : index
    %c0_29 = arith.constant 0 : index
    %25 = vector.load %arg2[%c0_28, %c0_29] : memref<32x288xbf16, #tpu.memory_space<vmem>>, vector<32x288xbf16>
    %c0_30 = arith.constant 0 : index
    %c0_31 = arith.constant 0 : index
    %26 = vector.load %arg9[%c0_30, %c0_31] : memref<288x384xbf16, #tpu.memory_space<vmem>>, vector<288x384xbf16>
    %cst_32 = arith.constant dense<0.000000e+00> : vector<32x384xf32>
    %27 = tpu.matmul %25, %26, %cst_32 {dimension_numbers = #tpu.dot_dimension_numbers<[1], [0], [0], [1], [0, 0, 1, 1], [], []>} : vector<32x288xbf16>, vector<288x384xbf16>, vector<32x384xf32> -> vector<32x384xf32>
    %c0_33 = arith.constant 0 : index
    %c0_34 = arith.constant 0 : index
    %28 = vector.load %arg5[%c0_33, %c0_34] : memref<32x1xf32, #tpu.memory_space<vmem>>, vector<32x1xf32>
    %29 = vector.broadcast %28 : vector<32x1xf32> to vector<32x384xf32>
    %30 = arith.mulf %29, %27 : vector<32x384xf32>
    %c0_35 = arith.constant 0 : index
    %c0_36 = arith.constant 0 : index
    %31 = vector.load %arg6[%c0_35, %c0_36] : memref<32x1xf32, #tpu.memory_space<vmem>>, vector<32x1xf32>
    %32 = vector.broadcast %31 : vector<32x1xf32> to vector<32x384xf32>
    %33 = arith.addf %30, %32 : vector<32x384xf32>
    %cst_37 = arith.constant 0.000000e+00 : f32
    %34 = vector.broadcast %cst_37 : f32 to vector<32x384xf32>
    %35 = arith.cmpf ogt, %33, %34 : vector<32x384xf32>
    %cst_38 = arith.constant 2.000000e-01 : f32
    %36 = vector.broadcast %cst_38 : f32 to vector<32x384xf32>
    %37 = arith.mulf %36, %33 : vector<32x384xf32>
    %38 = arith.select %35, %33, %37 : vector<32x384xi1>, vector<32x384xf32>
    %cst_39 = arith.constant 0.000000e+00 : bf16
    %39 = vector.broadcast %cst_39 : bf16 to vector<32x128xbf16>
    %c0_40 = arith.constant 0 : index
    %c0_41 = arith.constant 0 : index
    %40 = vector.load %arg10[%c0_40, %c0_41] : memref<32x640xbf16, #tpu.memory_space<vmem>>, vector<32x128xbf16>
    tpu.vector_store %arg10[%c0_40, %c0_41], %39 {strides = array<i32>} : memref<32x640xbf16, #tpu.memory_space<vmem>>, vector<32x128xbf16>,
    %cst_42 = arith.constant 0.000000e+00 : bf16
    %41 = vector.broadcast %cst_42 : bf16 to vector<32x128xbf16>
    %c0_43 = arith.constant 0 : index
    %c512_44 = arith.constant 512 : index
    %42 = vector.load %arg10[%c0_43, %c512_44] : memref<32x640xbf16, #tpu.memory_space<vmem>>, vector<32x128xbf16>
    tpu.vector_store %arg10[%c0_43, %c512_44], %41 {strides = array<i32>} : memref<32x640xbf16, #tpu.memory_space<vmem>>, vector<32x128xbf16>,
    %c0_45 = arith.constant 0 : index
    %c0_46 = arith.constant 0 : index
    %43 = vector.load %arg4[%c0_45, %c0_46] : memref<1x384xf32, #tpu.memory_space<vmem>>, vector<1x384xf32>
    %44 = vector.broadcast %43 : vector<1x384xf32> to vector<32x384xf32>
    %45 = arith.mulf %38, %44 : vector<32x384xf32>
    %46 = arith.truncf %45 : vector<32x384xf32> to vector<32x384xbf16>
    %c0_47 = arith.constant 0 : index
    %c128_48 = arith.constant 128 : index
    %47 = vector.load %arg10[%c0_47, %c128_48] : memref<32x640xbf16, #tpu.memory_space<vmem>>, vector<32x384xbf16>
    tpu.vector_store %arg10[%c0_47, %c128_48], %46 {strides = array<i32>} : memref<32x640xbf16, #tpu.memory_space<vmem>>, vector<32x384xbf16>,
    %c0_49 = arith.constant 0 : index
    %c109_50 = arith.constant 109 : index
    %48 = vector.load %arg10[%c0_49, %c109_50] : memref<32x640xbf16, #tpu.memory_space<vmem>>, vector<32x384xbf16>
    %c0_51 = arith.constant 0 : index
    %c0_52 = arith.constant 0 : index
    %49 = vector.load %arg11[%c0_51, %c0_52] : memref<288x384xbf16, #tpu.memory_space<vmem>>, vector<32x384xbf16>
    tpu.vector_store %arg11[%c0_51, %c0_52], %48 {strides = array<i32>} : memref<288x384xbf16, #tpu.memory_space<vmem>>, vector<32x384xbf16>,
    %c0_53 = arith.constant 0 : index
    %c110_54 = arith.constant 110 : index
    %50 = vector.load %arg10[%c0_53, %c110_54] : memref<32x640xbf16, #tpu.memory_space<vmem>>, vector<32x384xbf16>
    %c32_55 = arith.constant 32 : index
    %c0_56 = arith.constant 0 : index
    %51 = vector.load %arg11[%c32_55, %c0_56] : memref<288x384xbf16, #tpu.memory_space<vmem>>, vector<32x384xbf16>
    tpu.vector_store %arg11[%c32_55, %c0_56], %50 {strides = array<i32>} : memref<288x384xbf16, #tpu.memory_space<vmem>>, vector<32x384xbf16>,
    %c0_57 = arith.constant 0 : index
    %c111_58 = arith.constant 111 : index
    %52 = vector.load %arg10[%c0_57, %c111_58] : memref<32x640xbf16, #tpu.memory_space<vmem>>, vector<32x384xbf16>
    %c64_59 = arith.constant 64 : index
    %c0_60 = arith.constant 0 : index
    %53 = vector.load %arg11[%c64_59, %c0_60] : memref<288x384xbf16, #tpu.memory_space<vmem>>, vector<32x384xbf16>
    tpu.vector_store %arg11[%c64_59, %c0_60], %52 {strides = array<i32>} : memref<288x384xbf16, #tpu.memory_space<vmem>>, vector<32x384xbf16>,
    %c0_61 = arith.constant 0 : index
    %c127_62 = arith.constant 127 : index
    %54 = vector.load %arg10[%c0_61, %c127_62] : memref<32x640xbf16, #tpu.memory_space<vmem>>, vector<32x384xbf16>
    %c96_63 = arith.constant 96 : index
    %c0_64 = arith.constant 0 : index
    %55 = vector.load %arg11[%c96_63, %c0_64] : memref<288x384xbf16, #tpu.memory_space<vmem>>, vector<32x384xbf16>
    tpu.vector_store %arg11[%c96_63, %c0_64], %54 {strides = array<i32>} : memref<288x384xbf16, #tpu.memory_space<vmem>>, vector<32x384xbf16>,
    %c0_65 = arith.constant 0 : index
    %c128_66 = arith.constant 128 : index
    %56 = vector.load %arg10[%c0_65, %c128_66] : memref<32x640xbf16, #tpu.memory_space<vmem>>, vector<32x384xbf16>
    %c128_67 = arith.constant 128 : index
    %c0_68 = arith.constant 0 : index
    %57 = vector.load %arg11[%c128_67, %c0_68] : memref<288x384xbf16, #tpu.memory_space<vmem>>, vector<32x384xbf16>
    tpu.vector_store %arg11[%c128_67, %c0_68], %56 {strides = array<i32>} : memref<288x384xbf16, #tpu.memory_space<vmem>>, vector<32x384xbf16>,
    %c0_69 = arith.constant 0 : index
    %c129_70 = arith.constant 129 : index
    %58 = vector.load %arg10[%c0_69, %c129_70] : memref<32x640xbf16, #tpu.memory_space<vmem>>, vector<32x384xbf16>
    %c160_71 = arith.constant 160 : index
    %c0_72 = arith.constant 0 : index
    %59 = vector.load %arg11[%c160_71, %c0_72] : memref<288x384xbf16, #tpu.memory_space<vmem>>, vector<32x384xbf16>
    tpu.vector_store %arg11[%c160_71, %c0_72], %58 {strides = array<i32>} : memref<288x384xbf16, #tpu.memory_space<vmem>>, vector<32x384xbf16>,
    %c0_73 = arith.constant 0 : index
    %c145_74 = arith.constant 145 : index
    %60 = vector.load %arg10[%c0_73, %c145_74] : memref<32x640xbf16, #tpu.memory_space<vmem>>, vector<32x384xbf16>
    %c192_75 = arith.constant 192 : index
    %c0_76 = arith.constant 0 : index
    %61 = vector.load %arg11[%c192_75, %c0_76] : memref<288x384xbf16, #tpu.memory_space<vmem>>, vector<32x384xbf16>
    tpu.vector_store %arg11[%c192_75, %c0_76], %60 {strides = array<i32>} : memref<288x384xbf16, #tpu.memory_space<vmem>>, vector<32x384xbf16>,
    %c0_77 = arith.constant 0 : index
    %c146_78 = arith.constant 146 : index
    %62 = vector.load %arg10[%c0_77, %c146_78] : memref<32x640xbf16, #tpu.memory_space<vmem>>, vector<32x384xbf16>
    %c224_79 = arith.constant 224 : index
    %c0_80 = arith.constant 0 : index
    %63 = vector.load %arg11[%c224_79, %c0_80] : memref<288x384xbf16, #tpu.memory_space<vmem>>, vector<32x384xbf16>
    tpu.vector_store %arg11[%c224_79, %c0_80], %62 {strides = array<i32>} : memref<288x384xbf16, #tpu.memory_space<vmem>>, vector<32x384xbf16>,
    %c0_81 = arith.constant 0 : index
    %c147_82 = arith.constant 147 : index
    %64 = vector.load %arg10[%c0_81, %c147_82] : memref<32x640xbf16, #tpu.memory_space<vmem>>, vector<32x384xbf16>
    %c256_83 = arith.constant 256 : index
    %c0_84 = arith.constant 0 : index
    %65 = vector.load %arg11[%c256_83, %c0_84] : memref<288x384xbf16, #tpu.memory_space<vmem>>, vector<32x384xbf16>
    tpu.vector_store %arg11[%c256_83, %c0_84], %64 {strides = array<i32>} : memref<288x384xbf16, #tpu.memory_space<vmem>>, vector<32x384xbf16>,
    %c0_85 = arith.constant 0 : index
    %c0_86 = arith.constant 0 : index
    %66 = vector.load %arg3[%c0_85, %c0_86] : memref<32x288xbf16, #tpu.memory_space<vmem>>, vector<32x288xbf16>
    %c0_87 = arith.constant 0 : index
    %c0_88 = arith.constant 0 : index
    %67 = vector.load %arg11[%c0_87, %c0_88] : memref<288x384xbf16, #tpu.memory_space<vmem>>, vector<288x384xbf16>
    %cst_89 = arith.constant dense<0.000000e+00> : vector<32x384xf32>
    %68 = tpu.matmul %66, %67, %cst_89 {dimension_numbers = #tpu.dot_dimension_numbers<[1], [0], [0], [1], [0, 0, 1, 1], [], []>} : vector<32x288xbf16>, vector<288x384xbf16>, vector<32x384xf32> -> vector<32x384xf32>
    %c0_90 = arith.constant 0 : index
    %c0_91 = arith.constant 0 : index
    %c0_92 = arith.constant 0 : index
    %69 = vector.load %arg7[%c0_90, %c0_91, %c0_92] : memref<1x32x384xf32, #tpu.memory_space<vmem>>, vector<1x32x384xf32>
    %70 = vector.shape_cast %69 : vector<1x32x384xf32> to vector<32x384xf32>
    %71 = vector.shape_cast %68 : vector<32x384xf32> to vector<1x32x384xf32>
    tpu.vector_store %arg7[%c0_90, %c0_91, %c0_92], %71 {strides = array<i32>} : memref<1x32x384xf32, #tpu.memory_space<vmem>>, vector<1x32x384xf32>,
    return
  }
  func.func @transform_0(%arg0: i32) -> (i32, i32, i32) {
    %c0_i32 = arith.constant 0 : i32
    %c0_i32_0 = arith.constant 0 : i32
    %c0_i32_1 = arith.constant 0 : i32
    return %arg0, %c0_i32, %c0_i32_0 : i32, i32, i32
  }
  func.func @transform_1(%arg0: i32) -> (i32, i32) {
    %c0_i32 = arith.constant 0 : i32
    %c0_i32_0 = arith.constant 0 : i32
    %c0_i32_1 = arith.constant 0 : i32
    return %c0_i32, %c0_i32_0 : i32, i32
  }
  func.func @transform_2(%arg0: i32) -> (i32, i32) {
    %c0_i32 = arith.constant 0 : i32
    %c0_i32_0 = arith.constant 0 : i32
    %c0_i32_1 = arith.constant 0 : i32
    return %c0_i32, %c0_i32_0 : i32, i32
  }
  func.func @transform_3(%arg0: i32) -> (i32, i32) {
    %c0_i32 = arith.constant 0 : i32
    %c0_i32_0 = arith.constant 0 : i32
    %c0_i32_1 = arith.constant 0 : i32
    return %c0_i32, %c0_i32_0 : i32, i32
  }
  func.func @transform_4(%arg0: i32) -> (i32, i32) {
    %c0_i32 = arith.constant 0 : i32
    %c0_i32_0 = arith.constant 0 : i32
    %c0_i32_1 = arith.constant 0 : i32
    return %c0_i32, %c0_i32_0 : i32, i32
  }
  func.func @transform_5(%arg0: i32) -> (i32, i32) {
    %c0_i32 = arith.constant 0 : i32
    %c0_i32_0 = arith.constant 0 : i32
    %c0_i32_1 = arith.constant 0 : i32
    return %c0_i32, %c0_i32_0 : i32, i32
  }
  func.func @transform_6(%arg0: i32) -> (i32, i32, i32) {
    %c0_i32 = arith.constant 0 : i32
    %c0_i32_0 = arith.constant 0 : i32
    %c0_i32_1 = arith.constant 0 : i32
    return %arg0, %c0_i32, %c0_i32_0 : i32, i32, i32
  }
}

</mosaic_0001>

<llo_original>
// kernel: res_block_forward.2
$region0: #{res_block_forward.2}
  #allocation0 [shape = 'u32[]', space=smem, size = 0x4, offset = 0x4, fixed_abs, tag = 'smem constant byte address 0x4 - core index']
  #allocation1 [shape = 'u32[72,128]{1,0:T(1,128)}', space=vmem, size = 0x9000, scoped, tag = 'internal scratch']
  #allocation2 [shape = 'bf16[32,640]{1,0:T(8,128)(2,1)}', space=vmem, size = 0xa000, scoped, tag = 'scratch operand']
  #allocation3 [shape = 'bf16[288,384]{1,0:T(8,128)(2,1)}', space=vmem, size = 0x36000, scoped, tag = 'scratch operand']
  %s0 = inlined_call_operand.vmem [shape: bf16[2,32,384], index: 0, kind: input, shape index: {}]
  %s1 = inlined_call_operand.vmem [shape: bf16[32,288], index: 1, kind: input, shape index: {}]
  %s2 = inlined_call_operand.vmem [shape: f32[1,384], index: 2, kind: input, shape index: {}]
  %s3 = inlined_call_operand.vmem [shape: f32[2,32,1], index: 3, kind: output, shape index: {0}]
  %s4 = inlined_call_operand.vmem [shape: f32[2,32,1], index: 4, kind: output, shape index: {1}]
  %5 = xla_tuple %s3, %s4
  %s6 = sld [smem:[#allocation0]]
  $region53: #{res_block_forward.2} parent=0
    _
  %s8 = ssub.s32 1, %s6
  %s9 = scalar_select 0, %s8, %s6
  loop: start=0, step=1, limit=4
  $region2: #{res_block_forward.2} parent=0 // loop_pre_header
    _
  $region3: #{res_block_forward.2} parent=0 // loop_header
    %s11 = sphi 0, %s15
    %p12 = scmp.ge.s32.totalorder %s11, 4
    %s21 = sphi 0, %s23
    %s24 = sphi 0, %s21
    %s25 = sphi 0, %s24
    %s41 = sphi 0, %s25
    %s45 = sphi 0, %s45
    %s47 = sphi 0, %s45
    %s48 = sphi 0, %s47
    %s62 = sphi 0, %s48
    %s66 = sphi 0, %s66
    %s68 = sphi 0, %s66
    %s69 = sphi 0, %s68
    %s83 = sphi 0, %s69
    %s89 = sphi 0, %s91
    %s92 = sphi 0, %s89
    %s93 = sphi 0, %s92
    %s109 = sphi 0, %s93
    %s115 = sphi 0, %s117
    %s118 = sphi 0, %s115
    %s119 = sphi 0, %s118
    %s135 = sphi 0, %s119
  $region4: #{res_block_forward.2} parent=0 // loop_header_branch
    %14 = sbr.rel (%p12) target = $region8
  $region5: #{res_block_forward.2} parent=0 // loop_body
    %s16 = ssub.s32 %s11, 1
    %s17 = ssub.s32 %s11, 2
    %s18 = sadd.s32 %s11, 1
    %s19 = ssub.s32 %s11, %s18
    %p20 = scmp.eq.s32.totalorder %s19, 0
    %s22 = sadd.s32 %s21, 1
    %s23 = scalar_select %p20, %s21, %s22
    %p26 = pneg %p20
    %p27 = scmp.eq.s32.totalorder %s11, 1
    %p28 = por %p26, %p27
    %p29 = scmp.ne.s32.totalorder %s21, %s24
    %p30 = scmp.eq.s32.totalorder %s11, 0
    %p31 = por %p29, %p30
    %p32 = scmp.ne.s32.totalorder %s21, %s24
    %p33 = scmp.eq.s32.totalorder %s16, 1
    %p34 = por %p32, %p33
    %p35 = scmp.ne.s32.totalorder %s24, %s25
    %p36 = scmp.eq.s32.totalorder %s16, 0
    %p37 = por %p35, %p36
    %p38 = scmp.ne.s32.totalorder %s24, %s25
    %p39 = scmp.eq.s32.totalorder %s17, 1
    %p40 = por %p38, %p39
    %p42 = scmp.ne.s32.totalorder %s25, %s41
    %p43 = scmp.eq.s32.totalorder %s17, 0
    %p44 = por %p42, %p43
    %s46 = sadd.s32 %s45, 1
    %p49 = scmp.eq.s32.totalorder %s11, 1
    %p50 = scmp.ne.s32.totalorder %s45, %s47
    %p51 = scmp.eq.s32.totalorder %s11, 0
    %p52 = por %p50, %p51
    %p53 = scmp.ne.s32.totalorder %s45, %s47
    %p54 = scmp.eq.s32.totalorder %s16, 1
    %p55 = por %p53, %p54
    %p56 = scmp.ne.s32.totalorder %s47, %s48
    %p57 = scmp.eq.s32.totalorder %s16, 0
    %p58 = por %p56, %p57
    %p59 = scmp.ne.s32.totalorder %s47, %s48
    %p60 = scmp.eq.s32.totalorder %s17, 1
    %p61 = por %p59, %p60
    %p63 = scmp.ne.s32.totalorder %s48, %s62
    %p64 = scmp.eq.s32.totalorder %s17, 0
    %p65 = por %p63, %p64
    %s67 = sadd.s32 %s66, 1
    %p70 = scmp.eq.s32.totalorder %s11, 1
    %p71 = scmp.ne.s32.totalorder %s66, %s68
    %p72 = scmp.eq.s32.totalorder %s11, 0
    %p73 = por %p71, %p72
    %p74 = scmp.ne.s32.totalorder %s66, %s68
    %p75 = scmp.eq.s32.totalorder %s16, 1
    %p76 = por %p74, %p75
    %p77 = scmp.ne.s32.totalorder %s68, %s69
    %p78 = scmp.eq.s32.totalorder %s16, 0
    %p79 = por %p77, %p78
    %p80 = scmp.ne.s32.totalorder %s68, %s69
    %p81 = scmp.eq.s32.totalorder %s17, 1
    %p82 = por %p80, %p81
    %p84 = scmp.ne.s32.totalorder %s69, %s83
    %p85 = scmp.eq.s32.totalorder %s17, 0
    %p86 = por %p84, %p85
    %s87 = ssub.s32 %s11, %s18
    %p88 = scmp.eq.s32.totalorder %s87, 0
    %s90 = sadd.s32 %s89, 1
    %s91 = scalar_select %p88, %s89, %s90
    %p94 = pneg %p88
    %p95 = scmp.eq.s32.totalorder %s11, 1
    %p96 = por %p94, %p95
    %p97 = scmp.ne.s32.totalorder %s89, %s92
    %p98 = scmp.eq.s32.totalorder %s11, 0
    %p99 = por %p97, %p98
    %p100 = scmp.ne.s32.totalorder %s89, %s92
    %p101 = scmp.eq.s32.totalorder %s16, 1
    %p102 = por %p100, %p101
    %p103 = scmp.ne.s32.totalorder %s92, %s93
    %p104 = scmp.eq.s32.totalorder %s16, 0
    %p105 = por %p103, %p104
    %p106 = scmp.ne.s32.totalorder %s92, %s93
    %p107 = scmp.eq.s32.totalorder %s17, 1
    %p108 = por %p106, %p107
    %p110 = scmp.ne.s32.totalorder %s93, %s109
    %p111 = scmp.eq.s32.totalorder %s17, 0
    %p112 = por %p110, %p111
    %s113 = ssub.s32 %s11, %s18
    %p114 = scmp.eq.s32.totalorder %s113, 0
    %s116 = sadd.s32 %s115, 1
    %s117 = scalar_select %p114, %s115, %s116
    %p120 = pneg %p114
    %p121 = scmp.eq.s32.totalorder %s11, 1
    %p122 = por %p120, %p121
    %p123 = scmp.ne.s32.totalorder %s115, %s118
    %p124 = scmp.eq.s32.totalorder %s11, 0
    %p125 = por %p123, %p124
    %p126 = scmp.ne.s32.totalorder %s115, %s118
    %p127 = scmp.eq.s32.totalorder %s16, 1
    %p128 = por %p126, %p127
    %p129 = scmp.ne.s32.totalorder %s118, %s119
    %p130 = scmp.eq.s32.totalorder %s16, 0
    %p131 = por %p129, %p130
    %p132 = scmp.ne.s32.totalorder %s118, %s119
    %p133 = scmp.eq.s32.totalorder %s17, 1
    %p134 = por %p132, %p133
    %p136 = scmp.ne.s32.totalorder %s119, %s135
    %p137 = scmp.eq.s32.totalorder %s17, 0
    %p138 = por %p136, %p137
    %p139 = scmp.le.s32.totalorder 1, %s11
    %p140 = scmp.lt.s32.totalorder %s11, 3
    %p141 = pnand %p139, %p140
    %p142 = pneg %p141
    // Predicated region
    $region9: #{res_block_forward.2} parent=5 // pred_check
      _
    $region10: #{res_block_forward.2} parent=5 // pred_check_branch
      %144 = sbr.rel (%p141) target = $region12
    $region11: #{res_block_forward.2} parent=5 // pred_region
      %s145 = ssub.s32 %s11, 1
      // Predicated region
      $region13: #{res_block_forward.2} parent=11 // pred_check
        %p146 = pneg %p58
      $region14: #{res_block_forward.2} parent=11 // pred_check_branch
        %148 = sbr.rel (%p146) target = $region16
      $region15: #{res_block_forward.2} parent=11 // pred_region
        _
      $region16: #{res_block_forward.2} parent=11 // pred_fallthru
        _
      // Predicated region
      $region17: #{res_block_forward.2} parent=11 // pred_check
        %p149 = pneg %p79
      $region18: #{res_block_forward.2} parent=11 // pred_check_branch
        %151 = sbr.rel (%p149) target = $region20
      $region19: #{res_block_forward.2} parent=11 // pred_region
        _
      $region20: #{res_block_forward.2} parent=11 // pred_fallthru
        _
    $region12: #{res_block_forward.2} parent=5 // pred_fallthru
      _
    %p152 = scmp.lt.s32.totalorder %s11, 2
    // Predicated region
    $region21: #{res_block_forward.2} parent=5 // pred_check
      %p153 = pneg %p152
    $region22: #{res_block_forward.2} parent=5 // pred_check_branch
      %155 = sbr.rel (%p153) target = $region24
    $region23: #{res_block_forward.2} parent=5 // pred_region
      // Predicated region
      $region25: #{res_block_forward.2} parent=23 // pred_check
        %p156 = pneg %p31
      $region26: #{res_block_forward.2} parent=23 // pred_check_branch
        %158 = sbr.rel (%p156) target = $region28
      $region27: #{res_block_forward.2} parent=23 // pred_region
        %p159 = scmp.lt.s32.totalorder %s11, 1
        %s160 = scalar_select %p159, %s11, 1
        %s161 = smul.addr %s160, 12
        %s162 = smul.addr %s161, 4
        %s163 = scalar_lea.vmem %s0, %s162
      $region28: #{res_block_forward.2} parent=23 // pred_fallthru
        _
    $region24: #{res_block_forward.2} parent=5 // pred_fallthru
      _
    %p164 = scmp.le.s32.totalorder 1, %s11
    %p165 = scmp.lt.s32.totalorder %s11, 3
    %p166 = pnand %p164, %p165
    %p167 = pneg %p166
    // Predicated region
    $region29: #{res_block_forward.2} parent=5 // pred_check
      _
    $region30: #{res_block_forward.2} parent=5 // pred_check_branch
      %169 = sbr.rel (%p166) target = $region32
    $region31: #{res_block_forward.2} parent=5 // pred_region
      %s170 = ssub.s32 %s11, 1
      %p171 = scmp.lt.s32.totalorder %s16, 1
      %s172 = scalar_select %p171, %s16, 1
      %s173 = smul.addr %s172, 12
      %s174 = smul.addr %s173, 4
      %s175 = scalar_lea.vmem %s0, %s174
      %p176 = pneg %p37
      %p177 = pneg %p34
      %p178 = pneg %p58
      %p179 = pneg %p55
      %p180 = pneg %p79
      %p181 = pneg %p76
      %p182 = pneg %p105
      %p183 = pneg %p102
      %p184 = scmp.lt.s32.totalorder %s16, 1
      %s185 = scalar_select %p184, %s16, 1
      %s186 = smul.addr %s185, 4
      %s187 = smul.addr %s186, 8
      %s188 = scalar_lea.vmem %s3, %s187
      %p189 = pneg %p131
      %p190 = pneg %p128
      %p191 = scmp.lt.s32.totalorder %s16, 1
      %s192 = scalar_select %p191, %s16, 1
      %s193 = smul.addr %s192, 4
      %s194 = smul.addr %s193, 8
      %s195 = scalar_lea.vmem %s4, %s194
      %p196 = scmp.lt.s32.totalorder %s16, 1
      %s197 = scalar_select %p196, %s16, 1
      %s198 = smul.addr %s197, 12
      %s199 = smul.addr %s198, 4
      %s200 = scalar_lea.vmem %s0, %s199
      %p201 = scmp.lt.s32.totalorder %s16, 1
      %s202 = scalar_select %p201, %s16, 1
      %s203 = smul.addr %s202, 4
      %s204 = smul.addr %s203, 8
      %s205 = scalar_lea.vmem %s3, %s204
      %p206 = scmp.lt.s32.totalorder %s16, 1
      %s207 = scalar_select %p206, %s16, 1
      %s208 = smul.addr %s207, 4
      %s209 = smul.addr %s208, 8
      %s210 = scalar_lea.vmem %s4, %s209
      %212 = vst [vmem:[#allocation2] sm:$0xf] 0
      %213 = vst [vmem:[#allocation2 + $0x14] sm:$0xf] 0
      %214 = vst [vmem:[#allocation2 + $0x28] sm:$0xf] 0
      %215 = vst [vmem:[#allocation2 + $0x3c] sm:$0xf] 0
      %216 = vst [vmem:[#allocation2 + $0x10] sm:$0xf] 0
      %217 = vst [vmem:[#allocation2 + $0x24] sm:$0xf] 0
      %218 = vst [vmem:[#allocation2 + $0x38] sm:$0xf] 0
      %219 = vst [vmem:[#allocation2 + $0x4c] sm:$0xf] 0
      %v220 = vld [vmem:[%s200] sm:$0xff]
      %v221 = vld [vmem:[%s200 + $0x8] sm:$0xf]
      %v222 = vld [vmem:[%s200 + $0xc] sm:$0xff]
      %v223 = vld [vmem:[%s200 + $0x14] sm:$0xf]
      %v224 = vld [vmem:[%s200 + $0x18] sm:$0xff]
      %v225 = vld [vmem:[%s200 + $0x20] sm:$0xf]
      %v226 = vld [vmem:[%s200 + $0x24] sm:$0xff]
      %v227 = vld [vmem:[%s200 + $0x2c] sm:$0xf]
      %228 = vst [vmem:[#allocation2 + $0x4] sm:$0xff] %v220
      %229 = vst [vmem:[#allocation2 + $0xc] sm:$0xf] %v221
      %230 = vst [vmem:[#allocation2 + $0x18] sm:$0xff] %v222
      %231 = vst [vmem:[#allocation2 + $0x20] sm:$0xf] %v223
      %232 = vst [vmem:[#allocation2 + $0x2c] sm:$0xff] %v224
      %233 = vst [vmem:[#allocation2 + $0x34] sm:$0xf] %v225
      %234 = vst [vmem:[#allocation2 + $0x40] sm:$0xff] %v226
      %235 = vst [vmem:[#allocation2 + $0x48] sm:$0xf] %v227
      %v236 = vld [vmem:[#allocation2] sm:$0xff]
      %v237 = vld [vmem:[#allocation2 + $0x8] sm:$0xff]
      %v238 = vld [vmem:[#allocation2 + $0x14] sm:$0xff]
      %v239 = vld [vmem:[#allocation2 + $0x1c] sm:$0xff]
      %v240 = vld [vmem:[#allocation2 + $0x28] sm:$0xff]
      %v241 = vld [vmem:[#allocation2 + $0x30] sm:$0xff]
      %v242 = vld [vmem:[#allocation2 + $0x3c] sm:$0xff]
      %v243 = vld [vmem:[#allocation2 + $0x44] sm:$0xff]
      %252 = vrot.lane.b32.xlu0 %v236, 19
      %v253 = vpop.permute.xlu0 %252
      %254 = vrot.lane.b32.xlu0 %v237, 19
      %v255 = vpop.permute.xlu0 %254
      %256 = vrot.lane.b32.xlu0 %v238, 19
      %v257 = vpop.permute.xlu0 %256
      %258 = vrot.lane.b32.xlu0 %v239, 19
      %v259 = vpop.permute.xlu0 %258
      %260 = vrot.lane.b32.xlu0 %v240, 19
      %v261 = vpop.permute.xlu0 %260
      %262 = vrot.lane.b32.xlu0 %v241, 19
      %v263 = vpop.permute.xlu0 %262
      %264 = vrot.lane.b32.xlu0 %v242, 19
      %v265 = vpop.permute.xlu0 %264
      %266 = vrot.lane.b32.xlu0 %v243, 19
      %v267 = vpop.permute.xlu0 %266
      %v268 = vrot.slane %v253, 4
      %v269 = vrot.slane %v255, 4
      %v270 = vrot.slane %v257, 4
      %v271 = vrot.slane %v259, 4
      %v272 = vrot.slane %v261, 4
      %v273 = vrot.slane %v263, 4
      %v274 = vrot.slane %v265, 4
      %v275 = vrot.slane %v267, 4
      %vm276 = vcmask 1043456
      %v277 = vsel %vm276, %v268, %v269
      %vm278 = vcmask 154624
      %v279 = vsel %vm278, %v253, %v277
      %v280 = vsel %vm278, %v255, %v269
      %v281 = vsel %vm276, %v270, %v271
      %v282 = vsel %vm278, %v257, %v281
      %v283 = vsel %vm278, %v259, %v271
      %v284 = vsel %vm276, %v272, %v273
      %v285 = vsel %vm278, %v261, %v284
      %v286 = vsel %vm278, %v263, %v273
      %v287 = vsel %vm276, %v274, %v275
      %v288 = vsel %vm278, %v265, %v287
      %v289 = vsel %vm278, %v267, %v275
      %298 = vst [vmem:[#allocation3] sm:$0xff] %v279
      %299 = vst [vmem:[#allocation3 + $0x8] sm:$0xf] %v280
      %300 = vst [vmem:[#allocation3 + $0xc] sm:$0xff] %v282
      %301 = vst [vmem:[#allocation3 + $0x14] sm:$0xf] %v283
      %302 = vst [vmem:[#allocation3 + $0x18] sm:$0xff] %v285
      %303 = vst [vmem:[#allocation3 + $0x20] sm:$0xf] %v286
      %304 = vst [vmem:[#allocation3 + $0x24] sm:$0xff] %v288
      %305 = vst [vmem:[#allocation3 + $0x2c] sm:$0xf] %v289
      %v306 = vld [vmem:[#allocation2] sm:$0xff]
      %v307 = vld [vmem:[#allocation2 + $0x8] sm:$0xff]
      %v308 = vld [vmem:[#allocation2 + $0x14] sm:$0xff]
      %v309 = vld [vmem:[#allocation2 + $0x1c] sm:$0xff]
      %v310 = vld [vmem:[#allocation2 + $0x28] sm:$0xff]
      %v311 = vld [vmem:[#allocation2 + $0x30] sm:$0xff]
      %v312 = vld [vmem:[#allocation2 + $0x3c] sm:$0xff]
      %v313 = vld [vmem:[#allocation2 + $0x44] sm:$0xff]
      %322 = vrot.lane.b32.xlu0 %v306, 18
      %v323 = vpop.permute.xlu0 %322
      %324 = vrot.lane.b32.xlu0 %v307, 18
      %v325 = vpop.permute.xlu0 %324
      %326 = vrot.lane.b32.xlu0 %v308, 18
      %v327 = vpop.permute.xlu0 %326
      %328 = vrot.lane.b32.xlu0 %v309, 18
      %v329 = vpop.permute.xlu0 %328
      %330 = vrot.lane.b32.xlu0 %v310, 18
      %v331 = vpop.permute.xlu0 %330
      %332 = vrot.lane.b32.xlu0 %v311, 18
      %v333 = vpop.permute.xlu0 %332
      %334 = vrot.lane.b32.xlu0 %v312, 18
      %v335 = vpop.permute.xlu0 %334
      %336 = vrot.lane.b32.xlu0 %v313, 18
      %v337 = vpop.permute.xlu0 %336
      %v338 = vrot.slane %v323, 4
      %v339 = vrot.slane %v325, 4
      %v340 = vrot.slane %v327, 4
      %v341 = vrot.slane %v329, 4
      %v342 = vrot.slane %v331, 4
      %v343 = vrot.slane %v333, 4
      %v344 = vrot.slane %v335, 4
      %v345 = vrot.slane %v337, 4
      %v346 = vsel %vm276, %v338, %v339
      %vm347 = vcmask 146432
      %v348 = vsel %vm347, %v323, %v346
      %v349 = vsel %vm347, %v325, %v339
      %v350 = vsel %vm276, %v340, %v341
      %v351 = vsel %vm347, %v327, %v350
      %v352 = vsel %vm347, %v329, %v341
      %v353 = vsel %vm276, %v342, %v343
      %v354 = vsel %vm347, %v331, %v353
      %v355 = vsel %vm347, %v333, %v343
      %v356 = vsel %vm276, %v344, %v345
      %v357 = vsel %vm347, %v335, %v356
      %v358 = vsel %vm347, %v337, %v345
      %367 = vst [vmem:[#allocation3 + $0x30] sm:$0xff] %v348
      %368 = vst [vmem:[#allocation3 + $0x38] sm:$0xf] %v349
      %369 = vst [vmem:[#allocation3 + $0x3c] sm:$0xff] %v351
      %370 = vst [vmem:[#allocation3 + $0x44] sm:$0xf] %v352
      %371 = vst [vmem:[#allocation3 + $0x48] sm:$0xff] %v354
      %372 = vst [vmem:[#allocation3 + $0x50] sm:$0xf] %v355
      %373 = vst [vmem:[#allocation3 + $0x54] sm:$0xff] %v357
      %374 = vst [vmem:[#allocation3 + $0x5c] sm:$0xf] %v358
      %v375 = vld [vmem:[#allocation2] sm:$0xff]
      %v376 = vld [vmem:[#allocation2 + $0x8] sm:$0xff]
      %v377 = vld [vmem:[#allocation2 + $0x14] sm:$0xff]
      %v378 = vld [vmem:[#allocation2 + $0x1c] sm:$0xff]
      %v379 = vld [vmem:[#allocation2 + $0x28] sm:$0xff]
      %v380 = vld [vmem:[#allocation2 + $0x30] sm:$0xff]
      %v381 = vld [vmem:[#allocation2 + $0x3c] sm:$0xff]
      %v382 = vld [vmem:[#allocation2 + $0x44] sm:$0xff]
      %391 = vrot.lane.b32.xlu0 %v375, 17
      %v392 = vpop.permute.xlu0 %391
      %393 = vrot.lane.b32.xlu0 %v376, 17
      %v394 = vpop.permute.xlu0 %393
      %395 = vrot.lane.b32.xlu0 %v377, 17
      %v396 = vpop.permute.xlu0 %395
      %397 = vrot.lane.b32.xlu0 %v378, 17
      %v398 = vpop.permute.xlu0 %397
      %399 = vrot.lane.b32.xlu0 %v379, 17
      %v400 = vpop.permute.xlu0 %399
      %401 = vrot.lane.b32.xlu0 %v380, 17
      %v402 = vpop.permute.xlu0 %401
      %403 = vrot.lane.b32.xlu0 %v381, 17
      %v404 = vpop.permute.xlu0 %403
      %405 = vrot.lane.b32.xlu0 %v382, 17
      %v406 = vpop.permute.xlu0 %405
      %v407 = vrot.slane %v392, 4
      %v408 = vrot.slane %v394, 4
      %v409 = vrot.slane %v396, 4
      %v410 = vrot.slane %v398, 4
      %v411 = vrot.slane %v400, 4
      %v412 = vrot.slane %v402, 4
      %v413 = vrot.slane %v404, 4
      %v414 = vrot.slane %v406, 4
      %v415 = vsel %vm276, %v407, %v408
      %vm416 = vcmask 138240
      %v417 = vsel %vm416, %v392, %v415
      %v418 = vsel %vm416, %v394, %v408
      %v419 = vsel %vm276, %v409, %v410
      %v420 = vsel %vm416, %v396, %v419
      %v421 = vsel %vm416, %v398, %v410
      %v422 = vsel %vm276, %v411, %v412
      %v423 = vsel %vm416, %v400, %v422
      %v424 = vsel %vm416, %v402, %v412
      %v425 = vsel %vm276, %v413, %v414
      %v426 = vsel %vm416, %v404, %v425
      %v427 = vsel %vm416, %v406, %v414
      %436 = vst [vmem:[#allocation3 + $0x60] sm:$0xff] %v417
      %437 = vst [vmem:[#allocation3 + $0x68] sm:$0xf] %v418
      %438 = vst [vmem:[#allocation3 + $0x6c] sm:$0xff] %v420
      %439 = vst [vmem:[#allocation3 + $0x74] sm:$0xf] %v421
      %440 = vst [vmem:[#allocation3 + $0x78] sm:$0xff] %v423
      %441 = vst [vmem:[#allocation3 + $0x80] sm:$0xf] %v424
      %442 = vst [vmem:[#allocation3 + $0x84] sm:$0xff] %v426
      %443 = vst [vmem:[#allocation3 + $0x8c] sm:$0xf] %v427
      %v444 = vld [vmem:[#allocation2] sm:$0xff]
      %v445 = vld [vmem:[#allocation2 + $0x8] sm:$0xff]
      %v446 = vld [vmem:[#allocation2 + $0x14] sm:$0xff]
      %v447 = vld [vmem:[#allocation2 + $0x1c] sm:$0xff]
      %v448 = vld [vmem:[#allocation2 + $0x28] sm:$0xff]
      %v449 = vld [vmem:[#allocation2 + $0x30] sm:$0xff]
      %v450 = vld [vmem:[#allocation2 + $0x3c] sm:$0xff]
      %v451 = vld [vmem:[#allocation2 + $0x44] sm:$0xff]
      %460 = vrot.lane.b32.xlu0 %v444, 1
      %v461 = vpop.permute.xlu0 %460
      %462 = vrot.lane.b32.xlu0 %v445, 1
      %v463 = vpop.permute.xlu0 %462
      %464 = vrot.lane.b32.xlu0 %v446, 1
      %v465 = vpop.permute.xlu0 %464
      %466 = vrot.lane.b32.xlu0 %v447, 1
      %v467 = vpop.permute.xlu0 %466
      %468 = vrot.lane.b32.xlu0 %v448, 1
      %v469 = vpop.permute.xlu0 %468
      %470 = vrot.lane.b32.xlu0 %v449, 1
      %v471 = vpop.permute.xlu0 %470
      %472 = vrot.lane.b32.xlu0 %v450, 1
      %v473 = vpop.permute.xlu0 %472
      %474 = vrot.lane.b32.xlu0 %v451, 1
      %v475 = vpop.permute.xlu0 %474
      %v476 = vrot.slane %v461, 4
      %v477 = vrot.slane %v463, 4
      %v478 = vrot.slane %v465, 4
      %v479 = vrot.slane %v467, 4
      %v480 = vrot.slane %v469, 4
      %v481 = vrot.slane %v471, 4
      %v482 = vrot.slane %v473, 4
      %v483 = vrot.slane %v475, 4
      %v484 = vsel %vm276, %v476, %v477
      %vm485 = vcmask 7168
      %v486 = vsel %vm485, %v461, %v484
      %v487 = vsel %vm485, %v463, %v477
      %v488 = vsel %vm276, %v478, %v479
      %v489 = vsel %vm485, %v465, %v488
      %v490 = vsel %vm485, %v467, %v479
      %v491 = vsel %vm276, %v480, %v481
      %v492 = vsel %vm485, %v469, %v491
      %v493 = vsel %vm485, %v471, %v481
      %v494 = vsel %vm276, %v482, %v483
      %v495 = vsel %vm485, %v473, %v494
      %v496 = vsel %vm485, %v475, %v483
      %505 = vst [vmem:[#allocation3 + $0x90] sm:$0xff] %v486
      %506 = vst [vmem:[#allocation3 + $0x98] sm:$0xf] %v487
      %507 = vst [vmem:[#allocation3 + $0x9c] sm:$0xff] %v489
      %508 = vst [vmem:[#allocation3 + $0xa4] sm:$0xf] %v490
      %509 = vst [vmem:[#allocation3 + $0xa8] sm:$0xff] %v492
      %510 = vst [vmem:[#allocation3 + $0xb0] sm:$0xf] %v493
      %511 = vst [vmem:[#allocation3 + $0xb4] sm:$0xff] %v495
      %512 = vst [vmem:[#allocation3 + $0xbc] sm:$0xf] %v496
      %v513 = vld [vmem:[#allocation2 + $0x4] sm:$0xff]
      %v514 = vld [vmem:[#allocation2 + $0xc] sm:$0xf]
      %v515 = vld [vmem:[#allocation2 + $0x18] sm:$0xff]
      %v516 = vld [vmem:[#allocation2 + $0x20] sm:$0xf]
      %v517 = vld [vmem:[#allocation2 + $0x2c] sm:$0xff]
      %v518 = vld [vmem:[#allocation2 + $0x34] sm:$0xf]
      %v519 = vld [vmem:[#allocation2 + $0x40] sm:$0xff]
      %v520 = vld [vmem:[#allocation2 + $0x48] sm:$0xf]
      %521 = vst [vmem:[#allocation3 + $0xc0] sm:$0xff] %v513
      %522 = vst [vmem:[#allocation3 + $0xc8] sm:$0xf] %v514
      %523 = vst [vmem:[#allocation3 + $0xcc] sm:$0xff] %v515
      %524 = vst [vmem:[#allocation3 + $0xd4] sm:$0xf] %v516
      %525 = vst [vmem:[#allocation3 + $0xd8] sm:$0xff] %v517
      %526 = vst [vmem:[#allocation3 + $0xe0] sm:$0xf] %v518
      %527 = vst [vmem:[#allocation3 + $0xe4] sm:$0xff] %v519
      %528 = vst [vmem:[#allocation3 + $0xec] sm:$0xf] %v520
      %v529 = vld [vmem:[#allocation2 + $0x4] sm:$0xff]
      %v530 = vld [vmem:[#allocation2 + $0xc] sm:$0xff]
      %v531 = vld [vmem:[#allocation2 + $0x18] sm:$0xff]
      %v532 = vld [vmem:[#allocation2 + $0x20] sm:$0xff]
      %v533 = vld [vmem:[#allocation2 + $0x2c] sm:$0xff]
      %v534 = vld [vmem:[#allocation2 + $0x34] sm:$0xff]
      %v535 = vld [vmem:[#allocation2 + $0x40] sm:$0xff]
      %v536 = vld [vmem:[#allocation2 + $0x48] sm:$0xff]
      %545 = vrot.lane.b32.xlu0 %v529, 127
      %v546 = vpop.permute.xlu0 %545
      %547 = vrot.lane.b32.xlu0 %v530, 127
      %v548 = vpop.permute.xlu0 %547
      %549 = vrot.lane.b32.xlu0 %v531, 127
      %v550 = vpop.permute.xlu0 %549
      %551 = vrot.lane.b32.xlu0 %v532, 127
      %v552 = vpop.permute.xlu0 %551
      %553 = vrot.lane.b32.xlu0 %v533, 127
      %v554 = vpop.permute.xlu0 %553
      %555 = vrot.lane.b32.xlu0 %v534, 127
      %v556 = vpop.permute.xlu0 %555
      %557 = vrot.lane.b32.xlu0 %v535, 127
      %v558 = vpop.permute.xlu0 %557
      %559 = vrot.lane.b32.xlu0 %v536, 127
      %v560 = vpop.permute.xlu0 %559
      %v561 = vrot.slane %v546, 4
      %v562 = vrot.slane %v548, 4
      %v563 = vrot.slane %v550, 4
      %v564 = vrot.slane %v552, 4
      %v565 = vrot.slane %v554, 4
      %v566 = vrot.slane %v556, 4
      %v567 = vrot.slane %v558, 4
      %v568 = vrot.slane %v560, 4
      %v569 = vsel %vm276, %v561, %v562
      %vm570 = vcmask 1039360
      %v571 = vsel %vm570, %v546, %v569
      %v572 = vsel %vm570, %v548, %v562
      %v573 = vsel %vm276, %v563, %v564
      %v574 = vsel %vm570, %v550, %v573
      %v575 = vsel %vm570, %v552, %v564
      %v576 = vsel %vm276, %v565, %v566
      %v577 = vsel %vm570, %v554, %v576
      %v578 = vsel %vm570, %v556, %v566
      %v579 = vsel %vm276, %v567, %v568
      %v580 = vsel %vm570, %v558, %v579
      %v581 = vsel %vm570, %v560, %v568
      %590 = vst [vmem:[#allocation3 + $0xf0] sm:$0xff] %v571
      %591 = vst [vmem:[#allocation3 + $0xf8] sm:$0xf] %v572
      %592 = vst [vmem:[#allocation3 + $0xfc] sm:$0xff] %v574
      %593 = vst [vmem:[#allocation3 + $0x104] sm:$0xf] %v575
      %594 = vst [vmem:[#allocation3 + $0x108] sm:$0xff] %v577
      %595 = vst [vmem:[#allocation3 + $0x110] sm:$0xf] %v578
      %596 = vst [vmem:[#allocation3 + $0x114] sm:$0xff] %v580
      %597 = vst [vmem:[#allocation3 + $0x11c] sm:$0xf] %v581
      %v598 = vld [vmem:[#allocation2 + $0x4] sm:$0xff]
      %v599 = vld [vmem:[#allocation2 + $0xc] sm:$0xff]
      %v600 = vld [vmem:[#allocation2 + $0x18] sm:$0xff]
      %v601 = vld [vmem:[#allocation2 + $0x20] sm:$0xff]
      %v602 = vld [vmem:[#allocation2 + $0x2c] sm:$0xff]
      %v603 = vld [vmem:[#allocation2 + $0x34] sm:$0xff]
      %v604 = vld [vmem:[#allocation2 + $0x40] sm:$0xff]
      %v605 = vld [vmem:[#allocation2 + $0x48] sm:$0xff]
      %614 = vrot.lane.b32.xlu0 %v598, 111
      %v615 = vpop.permute.xlu0 %614
      %616 = vrot.lane.b32.xlu0 %v599, 111
      %v617 = vpop.permute.xlu0 %616
      %618 = vrot.lane.b32.xlu0 %v600, 111
      %v619 = vpop.permute.xlu0 %618
      %620 = vrot.lane.b32.xlu0 %v601, 111
      %v621 = vpop.permute.xlu0 %620
      %622 = vrot.lane.b32.xlu0 %v602, 111
      %v623 = vpop.permute.xlu0 %622
      %624 = vrot.lane.b32.xlu0 %v603, 111
      %v625 = vpop.permute.xlu0 %624
      %626 = vrot.lane.b32.xlu0 %v604, 111
      %v627 = vpop.permute.xlu0 %626
      %628 = vrot.lane.b32.xlu0 %v605, 111
      %v629 = vpop.permute.xlu0 %628
      %v630 = vrot.slane %v615, 4
      %v631 = vrot.slane %v617, 4
      %v632 = vrot.slane %v619, 4
      %v633 = vrot.slane %v621, 4
      %v634 = vrot.slane %v623, 4
      %v635 = vrot.slane %v625, 4
      %v636 = vrot.slane %v627, 4
      %v637 = vrot.slane %v629, 4
      %v638 = vsel %vm276, %v630, %v631
      %vm639 = vcmask 908288
      %v640 = vsel %vm639, %v615, %v638
      %v641 = vsel %vm639, %v617, %v631
      %v642 = vsel %vm276, %v632, %v633
      %v643 = vsel %vm639, %v619, %v642
      %v644 = vsel %vm639, %v621, %v633
      %v645 = vsel %vm276, %v634, %v635
      %v646 = vsel %vm639, %v623, %v645
      %v647 = vsel %vm639, %v625, %v635
      %v648 = vsel %vm276, %v636, %v637
      %v649 = vsel %vm639, %v627, %v648
      %v650 = vsel %vm639, %v629, %v637
      %659 = vst [vmem:[#allocation3 + $0x120] sm:$0xff] %v640
      %660 = vst [vmem:[#allocation3 + $0x128] sm:$0xf] %v641
      %661 = vst [vmem:[#allocation3 + $0x12c] sm:$0xff] %v643
      %662 = vst [vmem:[#allocation3 + $0x134] sm:$0xf] %v644
      %663 = vst [vmem:[#allocation3 + $0x138] sm:$0xff] %v646
      %664 = vst [vmem:[#allocation3 + $0x140] sm:$0xf] %v647
      %665 = vst [vmem:[#allocation3 + $0x144] sm:$0xff] %v649
      %666 = vst [vmem:[#allocation3 + $0x14c] sm:$0xf] %v650
      %v667 = vld [vmem:[#allocation2 + $0x4] sm:$0xff]
      %v668 = vld [vmem:[#allocation2 + $0xc] sm:$0xff]
      %v669 = vld [vmem:[#allocation2 + $0x18] sm:$0xff]
      %v670 = vld [vmem:[#allocation2 + $0x20] sm:$0xff]
      %v671 = vld [vmem:[#allocation2 + $0x2c] sm:$0xff]
      %v672 = vld [vmem:[#allocation2 + $0x34] sm:$0xff]
      %v673 = vld [vmem:[#allocation2 + $0x40] sm:$0xff]
      %v674 = vld [vmem:[#allocation2 + $0x48] sm:$0xff]
      %683 = vrot.lane.b32.xlu0 %v667, 110
      %v684 = vpop.permute.xlu0 %683
      %685 = vrot.lane.b32.xlu0 %v668, 110
      %v686 = vpop.permute.xlu0 %685
      %687 = vrot.lane.b32.xlu0 %v669, 110
      %v688 = vpop.permute.xlu0 %687
      %689 = vrot.lane.b32.xlu0 %v670, 110
      %v690 = vpop.permute.xlu0 %689
      %691 = vrot.lane.b32.xlu0 %v671, 110
      %v692 = vpop.permute.xlu0 %691
      %693 = vrot.lane.b32.xlu0 %v672, 110
      %v694 = vpop.permute.xlu0 %693
      %695 = vrot.lane.b32.xlu0 %v673, 110
      %v696 = vpop.permute.xlu0 %695
      %697 = vrot.lane.b32.xlu0 %v674, 110
      %v698 = vpop.permute.xlu0 %697
      %v699 = vrot.slane %v684, 4
      %v700 = vrot.slane %v686, 4
      %v701 = vrot.slane %v688, 4
      %v702 = vrot.slane %v690, 4
      %v703 = vrot.slane %v692, 4
      %v704 = vrot.slane %v694, 4
      %v705 = vrot.slane %v696, 4
      %v706 = vrot.slane %v698, 4
      %v707 = vsel %vm276, %v699, %v700
      %vm708 = vcmask 900096
      %v709 = vsel %vm708, %v684, %v707
      %v710 = vsel %vm708, %v686, %v700
      %v711 = vsel %vm276, %v701, %v702
      %v712 = vsel %vm708, %v688, %v711
      %v713 = vsel %vm708, %v690, %v702
      %v714 = vsel %vm276, %v703, %v704
      %v715 = vsel %vm708, %v692, %v714
      %v716 = vsel %vm708, %v694, %v704
      %v717 = vsel %vm276, %v705, %v706
      %v718 = vsel %vm708, %v696, %v717
      %v719 = vsel %vm708, %v698, %v706
      %728 = vst [vmem:[#allocation3 + $0x150] sm:$0xff] %v709
      %729 = vst [vmem:[#allocation3 + $0x158] sm:$0xf] %v710
      %730 = vst [vmem:[#allocation3 + $0x15c] sm:$0xff] %v712
      %731 = vst [vmem:[#allocation3 + $0x164] sm:$0xf] %v713
      %732 = vst [vmem:[#allocation3 + $0x168] sm:$0xff] %v715
      %733 = vst [vmem:[#allocation3 + $0x170] sm:$0xf] %v716
      %734 = vst [vmem:[#allocation3 + $0x174] sm:$0xff] %v718
      %735 = vst [vmem:[#allocation3 + $0x17c] sm:$0xf] %v719
      %v736 = vld [vmem:[#allocation2 + $0x4] sm:$0xff]
      %v737 = vld [vmem:[#allocation2 + $0xc] sm:$0xff]
      %v738 = vld [vmem:[#allocation2 + $0x18] sm:$0xff]
      %v739 = vld [vmem:[#allocation2 + $0x20] sm:$0xff]
      %v740 = vld [vmem:[#allocation2 + $0x2c] sm:$0xff]
      %v741 = vld [vmem:[#allocation2 + $0x34] sm:$0xff]
      %v742 = vld [vmem:[#allocation2 + $0x40] sm:$0xff]
      %v743 = vld [vmem:[#allocation2 + $0x48] sm:$0xff]
      %752 = vrot.lane.b32.xlu0 %v736, 109
      %v753 = vpop.permute.xlu0 %752
      %754 = vrot.lane.b32.xlu0 %v737, 109
      %v755 = vpop.permute.xlu0 %754
      %756 = vrot.lane.b32.xlu0 %v738, 109
      %v757 = vpop.permute.xlu0 %756
      %758 = vrot.lane.b32.xlu0 %v739, 109
      %v759 = vpop.permute.xlu0 %758
      %760 = vrot.lane.b32.xlu0 %v740, 109
      %v761 = vpop.permute.xlu0 %760
      %762 = vrot.lane.b32.xlu0 %v741, 109
      %v763 = vpop.permute.xlu0 %762
      %764 = vrot.lane.b32.xlu0 %v742, 109
      %v765 = vpop.permute.xlu0 %764
      %766 = vrot.lane.b32.xlu0 %v743, 109
      %v767 = vpop.permute.xlu0 %766
      %v768 = vrot.slane %v753, 4
      %v769 = vrot.slane %v755, 4
      %v770 = vrot.slane %v757, 4
      %v771 = vrot.slane %v759, 4
      %v772 = vrot.slane %v761, 4
      %v773 = vrot.slane %v763, 4
      %v774 = vrot.slane %v765, 4
      %v775 = vrot.slane %v767, 4
      %v776 = vsel %vm276, %v768, %v769
      %vm777 = vcmask 891904
      %v778 = vsel %vm777, %v753, %v776
      %v779 = vsel %vm777, %v755, %v769
      %v780 = vsel %vm276, %v770, %v771
      %v781 = vsel %vm777, %v757, %v780
      %v782 = vsel %vm777, %v759, %v771
      %v783 = vsel %vm276, %v772, %v773
      %v784 = vsel %vm777, %v761, %v783
      %v785 = vsel %vm777, %v763, %v773
      %v786 = vsel %vm276, %v774, %v775
      %v787 = vsel %vm777, %v765, %v786
      %v788 = vsel %vm777, %v767, %v775
      %797 = vst [vmem:[#allocation3 + $0x180] sm:$0xff] %v778
      %798 = vst [vmem:[#allocation3 + $0x188] sm:$0xf] %v779
      %799 = vst [vmem:[#allocation3 + $0x18c] sm:$0xff] %v781
      %800 = vst [vmem:[#allocation3 + $0x194] sm:$0xf] %v782
      %801 = vst [vmem:[#allocation3 + $0x198] sm:$0xff] %v784
      %802 = vst [vmem:[#allocation3 + $0x1a0] sm:$0xf] %v785
      %803 = vst [vmem:[#allocation3 + $0x1a4] sm:$0xff] %v787
      %804 = vst [vmem:[#allocation3 + $0x1ac] sm:$0xf] %v788
      %v805 = vld [vmem:[%s1] sm:$0xff]
      %v806 = vld [vmem:[%s1 + $0x8] sm:$0xf]
      %v807 = vld [vmem:[%s1 + $0xc] sm:$0xff]
      %v808 = vld [vmem:[%s1 + $0x14] sm:$0xf]
      %v809 = vld [vmem:[%s1 + $0x18] sm:$0xff]
      %v810 = vld [vmem:[%s1 + $0x20] sm:$0xf]
      %v811 = vld [vmem:[%s1 + $0x24] sm:$0xff]
      %v812 = vld [vmem:[%s1 + $0x2c] sm:$0xf]
      %v813 = vld [vmem:[#allocation3] sm:$0xff]
      %v814 = vld [vmem:[#allocation3 + $0x8] sm:$0xf]
      %v815 = vld [vmem:[#allocation3 + $0xc] sm:$0xff]
      %v816 = vld [vmem:[#allocation3 + $0x14] sm:$0xf]
      %v817 = vld [vmem:[#allocation3 + $0x18] sm:$0xff]
      %v818 = vld [vmem:[#allocation3 + $0x20] sm:$0xf]
      %v819 = vld [vmem:[#allocation3 + $0x24] sm:$0xff]
      %v820 = vld [vmem:[#allocation3 + $0x2c] sm:$0xf]
      %v821 = vld [vmem:[#allocation3 + $0x30] sm:$0xff]
      %v822 = vld [vmem:[#allocation3 + $0x38] sm:$0xf]
      %v823 = vld [vmem:[#allocation3 + $0x3c] sm:$0xff]
      %v824 = vld [vmem:[#allocation3 + $0x44] sm:$0xf]
      %v825 = vld [vmem:[#allocation3 + $0x48] sm:$0xff]
      %v826 = vld [vmem:[#allocation3 + $0x50] sm:$0xf]
      %v827 = vld [vmem:[#allocation3 + $0x54] sm:$0xff]
      %v828 = vld [vmem:[#allocation3 + $0x5c] sm:$0xf]
      %v829 = vld [vmem:[#allocation3 + $0x60] sm:$0xff]
      %v830 = vld [vmem:[#allocation3 + $0x68] sm:$0xf]
      %v831 = vld [vmem:[#allocation3 + $0x6c] sm:$0xff]
      %v832 = vld [vmem:[#allocation3 + $0x74] sm:$0xf]
      %v833 = vld [vmem:[#allocation3 + $0x78] sm:$0xff]
      %v834 = vld [vmem:[#allocation3 + $0x80] sm:$0xf]
      %v835 = vld [vmem:[#allocation3 + $0x84] sm:$0xff]
      %v836 = vld [vmem:[#allocation3 + $0x8c] sm:$0xf]
      %v837 = vld [vmem:[#allocation3 + $0x90] sm:$0xff]
      %v838 = vld [vmem:[#allocation3 + $0x98] sm:$0xf]
      %v839 = vld [vmem:[#allocation3 + $0x9c] sm:$0xff]
      %v840 = vld [vmem:[#allocation3 + $0xa4] sm:$0xf]
      %v841 = vld [vmem:[#allocation3 + $0xa8] sm:$0xff]
      %v842 = vld [vmem:[#allocation3 + $0xb0] sm:$0xf]
      %v843 = vld [vmem:[#allocation3 + $0xb4] sm:$0xff]
      %v844 = vld [vmem:[#allocation3 + $0xbc] sm:$0xf]
      %v845 = vld [vmem:[#allocation3 + $0xc0] sm:$0xff]
      %v846 = vld [vmem:[#allocation3 + $0xc8] sm:$0xf]
      %v847 = vld [vmem:[#allocation3 + $0xcc] sm:$0xff]
      %v848 = vld [vmem:[#allocation3 + $0xd4] sm:$0xf]
      %v849 = vld [vmem:[#allocation3 + $0xd8] sm:$0xff]
      %v850 = vld [vmem:[#allocation3 + $0xe0] sm:$0xf]
      %v851 = vld [vmem:[#allocation3 + $0xe4] sm:$0xff]
      %v852 = vld [vmem:[#allocation3 + $0xec] sm:$0xf]
      %v853 = vld [vmem:[#allocation3 + $0xf0] sm:$0xff]
      %v854 = vld [vmem:[#allocation3 + $0xf8] sm:$0xf]
      %v855 = vld [vmem:[#allocation3 + $0xfc] sm:$0xff]
      %v856 = vld [vmem:[#allocation3 + $0x104] sm:$0xf]
      %v857 = vld [vmem:[#allocation3 + $0x108] sm:$0xff]
      %v858 = vld [vmem:[#allocation3 + $0x110] sm:$0xf]
      %v859 = vld [vmem:[#allocation3 + $0x114] sm:$0xff]
      %v860 = vld [vmem:[#allocation3 + $0x11c] sm:$0xf]
      %v861 = vld [vmem:[#allocation3 + $0x120] sm:$0xff]
      %v862 = vld [vmem:[#allocation3 + $0x128] sm:$0xf]
      %v863 = vld [vmem:[#allocation3 + $0x12c] sm:$0xff]
      %v864 = vld [vmem:[#allocation3 + $0x134] sm:$0xf]
      %v865 = vld [vmem:[#allocation3 + $0x138] sm:$0xff]
      %v866 = vld [vmem:[#allocation3 + $0x140] sm:$0xf]
      %v867 = vld [vmem:[#allocation3 + $0x144] sm:$0xff]
      %v868 = vld [vmem:[#allocation3 + $0x14c] sm:$0xf]
      %v869 = vld [vmem:[#allocation3 + $0x150] sm:$0xff]
      %v870 = vld [vmem:[#allocation3 + $0x158] sm:$0xf]
      %v871 = vld [vmem:[#allocation3 + $0x15c] sm:$0xff]
      %v872 = vld [vmem:[#allocation3 + $0x164] sm:$0xf]
      %v873 = vld [vmem:[#allocation3 + $0x168] sm:$0xff]
      %v874 = vld [vmem:[#allocation3 + $0x170] sm:$0xf]
      %v875 = vld [vmem:[#allocation3 + $0x174] sm:$0xff]
      %v876 = vld [vmem:[#allocation3 + $0x17c] sm:$0xf]
      %v877 = vld [vmem:[#allocation3 + $0x180] sm:$0xff]
      %v878 = vld [vmem:[#allocation3 + $0x188] sm:$0xf]
      %v879 = vld [vmem:[#allocation3 + $0x18c] sm:$0xff]
      %v880 = vld [vmem:[#allocation3 + $0x194] sm:$0xf]
      %v881 = vld [vmem:[#allocation3 + $0x198] sm:$0xff]
      %v882 = vld [vmem:[#allocation3 + $0x1a0] sm:$0xf]
      %v883 = vld [vmem:[#allocation3 + $0x1a4] sm:$0xff]
      %v884 = vld [vmem:[#allocation3 + $0x1ac] sm:$0xf]
      %v893 = vunpack.c.l.b16 %v805
      %v894 = vunpack.c.h.b16 %v805
      %v895 = vunpack.c.l.b16 %v806
      %v896 = vunpack.c.l.b16 %v807
      %v897 = vunpack.c.h.b16 %v807
      %v898 = vunpack.c.l.b16 %v808
      %v899 = vunpack.c.l.b16 %v809
      %v900 = vunpack.c.h.b16 %v809
      %v901 = vunpack.c.l.b16 %v810
      %v902 = vunpack.c.l.b16 %v811
      %v903 = vunpack.c.h.b16 %v811
      %v904 = vunpack.c.l.b16 %v812
      %v905 = vpack.c.b16 %v896, %v893
      %v906 = vpack.c.b16 %v897, %v894
      %v907 = vpack.c.b16 %v898, %v895
      %v908 = vpack.c.b16 %v902, %v899
      %v909 = vpack.c.b16 %v903, %v900
      %v910 = vpack.c.b16 %v904, %v901
      %v987 = vunpack.c.l.b16 %v813
      %v988 = vunpack.c.h.b16 %v813
      %v989 = vunpack.c.l.b16 %v814
      %v990 = vunpack.c.l.b16 %v815
      %v991 = vunpack.c.h.b16 %v815
      %v992 = vunpack.c.l.b16 %v816
      %v993 = vunpack.c.l.b16 %v817
      %v994 = vunpack.c.h.b16 %v817
      %v995 = vunpack.c.l.b16 %v818
      %v996 = vunpack.c.l.b16 %v819
      %v997 = vunpack.c.h.b16 %v819
      %v998 = vunpack.c.l.b16 %v820
      %v999 = vunpack.c.l.b16 %v821
      %v1000 = vunpack.c.h.b16 %v821
      %v1001 = vunpack.c.l.b16 %v822
      %v1002 = vunpack.c.l.b16 %v823
      %v1003 = vunpack.c.h.b16 %v823
      %v1004 = vunpack.c.l.b16 %v824
      %v1005 = vunpack.c.l.b16 %v825
      %v1006 = vunpack.c.h.b16 %v825
      %v1007 = vunpack.c.l.b16 %v826
      %v1008 = vunpack.c.l.b16 %v827
      %v1009 = vunpack.c.h.b16 %v827
      %v1010 = vunpack.c.l.b16 %v828
      %v1011 = vunpack.c.l.b16 %v829
      %v1012 = vunpack.c.h.b16 %v829
      %v1013 = vunpack.c.l.b16 %v830
      %v1014 = vunpack.c.l.b16 %v831
      %v1015 = vunpack.c.h.b16 %v831
      %v1016 = vunpack.c.l.b16 %v832
      %v1017 = vunpack.c.l.b16 %v833
      %v1018 = vunpack.c.h.b16 %v833
      %v1019 = vunpack.c.l.b16 %v834
      %v1020 = vunpack.c.l.b16 %v835
      %v1021 = vunpack.c.h.b16 %v835
      %v1022 = vunpack.c.l.b16 %v836
      %v1023 = vunpack.c.l.b16 %v837
      %v1024 = vunpack.c.h.b16 %v837
      %v1025 = vunpack.c.l.b16 %v838
      %v1026 = vunpack.c.l.b16 %v839
      %v1027 = vunpack.c.h.b16 %v839
      %v1028 = vunpack.c.l.b16 %v840
      %v1029 = vunpack.c.l.b16 %v841
      %v1030 = vunpack.c.h.b16 %v841
      %v1031 = vunpack.c.l.b16 %v842
      %v1032 = vunpack.c.l.b16 %v843
      %v1033 = vunpack.c.h.b16 %v843
      %v1034 = vunpack.c.l.b16 %v844
      %v1035 = vunpack.c.l.b16 %v845
      %v1036 = vunpack.c.h.b16 %v845
      %v1037 = vunpack.c.l.b16 %v846
      %v1038 = vunpack.c.l.b16 %v847
      %v1039 = vunpack.c.h.b16 %v847
      %v1040 = vunpack.c.l.b16 %v848
      %v1041 = vunpack.c.l.b16 %v849
      %v1042 = vunpack.c.h.b16 %v849
      %v1043 = vunpack.c.l.b16 %v850
      %v1044 = vunpack.c.l.b16 %v851
      %v1045 = vunpack.c.h.b16 %v851
      %v1046 = vunpack.c.l.b16 %v852
      %v1047 = vunpack.c.l.b16 %v853
      %v1048 = vunpack.c.h.b16 %v853
      %v1049 = vunpack.c.l.b16 %v854
      %v1050 = vunpack.c.l.b16 %v855
      %v1051 = vunpack.c.h.b16 %v855
      %v1052 = vunpack.c.l.b16 %v856
      %v1053 = vunpack.c.l.b16 %v857
      %v1054 = vunpack.c.h.b16 %v857
      %v1055 = vunpack.c.l.b16 %v858
      %v1056 = vunpack.c.l.b16 %v859
      %v1057 = vunpack.c.h.b16 %v859
      %v1058 = vunpack.c.l.b16 %v860
      %v1059 = vunpack.c.l.b16 %v861
      %v1060 = vunpack.c.h.b16 %v861
      %v1061 = vunpack.c.l.b16 %v862
      %v1062 = vunpack.c.l.b16 %v863
      %v1063 = vunpack.c.h.b16 %v863
      %v1064 = vunpack.c.l.b16 %v864
      %v1065 = vunpack.c.l.b16 %v865
      %v1066 = vunpack.c.h.b16 %v865
      %v1067 = vunpack.c.l.b16 %v866
      %v1068 = vunpack.c.l.b16 %v867
      %v1069 = vunpack.c.h.b16 %v867
      %v1070 = vunpack.c.l.b16 %v868
      %v1071 = vunpack.c.l.b16 %v869
      %v1072 = vunpack.c.h.b16 %v869
      %v1073 = vunpack.c.l.b16 %v870
      %v1074 = vunpack.c.l.b16 %v871
      %v1075 = vunpack.c.h.b16 %v871
      %v1076 = vunpack.c.l.b16 %v872
      %v1077 = vunpack.c.l.b16 %v873
      %v1078 = vunpack.c.h.b16 %v873
      %v1079 = vunpack.c.l.b16 %v874
      %v1080 = vunpack.c.l.b16 %v875
      %v1081 = vunpack.c.h.b16 %v875
      %v1082 = vunpack.c.l.b16 %v876
      %v1083 = vunpack.c.l.b16 %v877
      %v1084 = vunpack.c.h.b16 %v877
      %v1085 = vunpack.c.l.b16 %v878
      %v1086 = vunpack.c.l.b16 %v879
      %v1087 = vunpack.c.h.b16 %v879
      %v1088 = vunpack.c.l.b16 %v880
      %v1089 = vunpack.c.l.b16 %v881
      %v1090 = vunpack.c.h.b16 %v881
      %v1091 = vunpack.c.l.b16 %v882
      %v1092 = vunpack.c.l.b16 %v883
      %v1093 = vunpack.c.h.b16 %v883
      %v1094 = vunpack.c.l.b16 %v884
      %v1095 = vpack.c.b16 %v990, %v987
      %v1096 = vpack.c.b16 %v991, %v988
      %v1097 = vpack.c.b16 %v992, %v989
      %v1098 = vpack.c.b16 %v996, %v993
      %v1099 = vpack.c.b16 %v997, %v994
      %v1100 = vpack.c.b16 %v998, %v995
      %v1101 = vpack.c.b16 %v1002, %v999
      %v1102 = vpack.c.b16 %v1003, %v1000
      %v1103 = vpack.c.b16 %v1004, %v1001
      %v1104 = vpack.c.b16 %v1008, %v1005
      %v1105 = vpack.c.b16 %v1009, %v1006
      %v1106 = vpack.c.b16 %v1010, %v1007
      %v1107 = vpack.c.b16 %v1014, %v1011
      %v1108 = vpack.c.b16 %v1015, %v1012
      %v1109 = vpack.c.b16 %v1016, %v1013
      %v1110 = vpack.c.b16 %v1020, %v1017
      %v1111 = vpack.c.b16 %v1021, %v1018
      %v1112 = vpack.c.b16 %v1022, %v1019
      %v1113 = vpack.c.b16 %v1026, %v1023
      %v1114 = vpack.c.b16 %v1027, %v1024
      %v1115 = vpack.c.b16 %v1028, %v1025
      %v1116 = vpack.c.b16 %v1032, %v1029
      %v1117 = vpack.c.b16 %v1033, %v1030
      %v1118 = vpack.c.b16 %v1034, %v1031
      %v1119 = vpack.c.b16 %v1038, %v1035
      %v1120 = vpack.c.b16 %v1039, %v1036
      %v1121 = vpack.c.b16 %v1040, %v1037
      %v1122 = vpack.c.b16 %v1044, %v1041
      %v1123 = vpack.c.b16 %v1045, %v1042
      %v1124 = vpack.c.b16 %v1046, %v1043
      %v1125 = vpack.c.b16 %v1050, %v1047
      %v1126 = vpack.c.b16 %v1051, %v1048
      %v1127 = vpack.c.b16 %v1052, %v1049
      %v1128 = vpack.c.b16 %v1056, %v1053
      %v1129 = vpack.c.b16 %v1057, %v1054
      %v1130 = vpack.c.b16 %v1058, %v1055
      %v1131 = vpack.c.b16 %v1062, %v1059
      %v1132 = vpack.c.b16 %v1063, %v1060
      %v1133 = vpack.c.b16 %v1064, %v1061
      %v1134 = vpack.c.b16 %v1068, %v1065
      %v1135 = vpack.c.b16 %v1069, %v1066
      %v1136 = vpack.c.b16 %v1070, %v1067
      %v1137 = vpack.c.b16 %v1074, %v1071
      %v1138 = vpack.c.b16 %v1075, %v1072
      %v1139 = vpack.c.b16 %v1076, %v1073
      %v1140 = vpack.c.b16 %v1080, %v1077
      %v1141 = vpack.c.b16 %v1081, %v1078
      %v1142 = vpack.c.b16 %v1082, %v1079
      %v1143 = vpack.c.b16 %v1086, %v1083
      %v1144 = vpack.c.b16 %v1087, %v1084
      %v1145 = vpack.c.b16 %v1088, %v1085
      %v1146 = vpack.c.b16 %v1092, %v1089
      %v1147 = vpack.c.b16 %v1093, %v1090
      %v1148 = vpack.c.b16 %v1094, %v1091
      %vm1203 = vcmask 261120
      %v1205 = vsel %vm1203, %v907, 0
      %v1208 = vsel %vm1203, %v910, 0
      %1210 = vmatpush.bf16.msra.mxu0 %v1116
      %1211 = vmatpush.bf16.msra.mxu0 %v1113
      %1212 = vmatpush.bf16.msra.mxu0 %v1110
      %1213 = vmatpush.bf16.msra.mxu0 %v1107
      %1214 = vmatpush.bf16.msra.mxu0 %v1104
      %1215 = vmatpush.bf16.msra.mxu0 %v1101
      %1216 = vmatpush.bf16.msra.mxu0 %v1098
      %1217 = vmatpush.bf16.msra.mxu0 %v1095
      %1218 = vmatmul.bf16.gmra.mxu0 %v905
      %v1219 = vpop.f32.mrf.mxu0
      %v1220 = vadd.f32 0.0, %v1219
      %v1221 = vpop.f32.mrf.mxu0
      %v1222 = vadd.f32 0.0, %v1221
      %1223 = vmatmul.bf16.gmra.mxu0 %v908
      %v1224 = vpop.f32.mrf.mxu0
      %v1225 = vadd.f32 0.0, %v1224
      %v1226 = vpop.f32.mrf.mxu0
      %v1227 = vadd.f32 0.0, %v1226
      %1228 = vdwg.mxu0
      %1229 = vmatpush.bf16.msra.mxu0 %v1140
      %1230 = vmatpush.bf16.msra.mxu0 %v1137
      %1231 = vmatpush.bf16.msra.mxu0 %v1134
      %1232 = vmatpush.bf16.msra.mxu0 %v1131
      %1233 = vmatpush.bf16.msra.mxu0 %v1128
      %1234 = vmatpush.bf16.msra.mxu0 %v1125
      %1235 = vmatpush.bf16.msra.mxu0 %v1122
      %1236 = vmatpush.bf16.msra.mxu0 %v1119
      %1237 = vmatmul.bf16.gmra.mxu0 %v906
      %v1238 = vpop.f32.mrf.mxu0
      %v1239 = vadd.f32 %v1220, %v1238
      %v1240 = vpop.f32.mrf.mxu0
      %v1241 = vadd.f32 %v1222, %v1240
      %1242 = vmatmul.bf16.gmra.mxu0 %v909
      %v1243 = vpop.f32.mrf.mxu0
      %v1244 = vadd.f32 %v1225, %v1243
      %v1245 = vpop.f32.mrf.mxu0
      %v1246 = vadd.f32 %v1227, %v1245
      %1247 = vdwg.mxu0
      %1248 = vmatpush.bf16.msra.mxu0 0
      %1249 = vmatpush.bf16.msra.mxu0 0
      %1250 = vmatpush.bf16.msra.mxu0 0
      %1251 = vmatpush.bf16.msra.mxu0 0
      %1252 = vmatpush.bf16.msra.mxu0 0
      %1253 = vmatpush.bf16.msra.mxu0 0
      %1254 = vmatpush.bf16.msra.mxu0 %v1146
      %1255 = vmatpush.bf16.msra.mxu0 %v1143
      %1256 = vmatmul.bf16.gmra.mxu0 %v1205
      %v1257 = vpop.f32.mrf.mxu0
      %v1258 = vadd.f32 %v1239, %v1257
      %v1259 = vpop.f32.mrf.mxu0
      %v1260 = vadd.f32 %v1241, %v1259
      %1261 = vmatmul.bf16.gmra.mxu0 %v1208
      %v1262 = vpop.f32.mrf.mxu0
      %v1263 = vadd.f32 %v1244, %v1262
      %v1264 = vpop.f32.mrf.mxu0
      %v1265 = vadd.f32 %v1246, %v1264
      %1266 = vdwg.mxu0
      %1267 = vmatpush.bf16.msra.mxu0 %v1117
      %1268 = vmatpush.bf16.msra.mxu0 %v1114
      %1269 = vmatpush.bf16.msra.mxu0 %v1111
      %1270 = vmatpush.bf16.msra.mxu0 %v1108
      %1271 = vmatpush.bf16.msra.mxu0 %v1105
      %1272 = vmatpush.bf16.msra.mxu0 %v1102
      %1273 = vmatpush.bf16.msra.mxu0 %v1099
      %1274 = vmatpush.bf16.msra.mxu0 %v1096
      %1275 = vmatmul.bf16.gmra.mxu0 %v905
      %v1276 = vpop.f32.mrf.mxu0
      %v1277 = vadd.f32 0.0, %v1276
      %v1278 = vpop.f32.mrf.mxu0
      %v1279 = vadd.f32 0.0, %v1278
      %1280 = vmatmul.bf16.gmra.mxu0 %v908
      %v1281 = vpop.f32.mrf.mxu0
      %v1282 = vadd.f32 0.0, %v1281
      %v1283 = vpop.f32.mrf.mxu0
      %v1284 = vadd.f32 0.0, %v1283
      %1285 = vdwg.mxu0
      %1286 = vmatpush.bf16.msra.mxu0 %v1141
      %1287 = vmatpush.bf16.msra.mxu0 %v1138
      %1288 = vmatpush.bf16.msra.mxu0 %v1135
      %1289 = vmatpush.bf16.msra.mxu0 %v1132
      %1290 = vmatpush.bf16.msra.mxu0 %v1129
      %1291 = vmatpush.bf16.msra.mxu0 %v1126
      %1292 = vmatpush.bf16.msra.mxu0 %v1123
      %1293 = vmatpush.bf16.msra.mxu0 %v1120
      %1294 = vmatmul.bf16.gmra.mxu0 %v906
      %v1295 = vpop.f32.mrf.mxu0
      %v1296 = vadd.f32 %v1277, %v1295
      %v1297 = vpop.f32.mrf.mxu0
      %v1298 = vadd.f32 %v1279, %v1297
      %1299 = vmatmul.bf16.gmra.mxu0 %v909
      %v1300 = vpop.f32.mrf.mxu0
      %v1301 = vadd.f32 %v1282, %v1300
      %v1302 = vpop.f32.mrf.mxu0
      %v1303 = vadd.f32 %v1284, %v1302
      %1304 = vdwg.mxu0
      %1305 = vmatpush.bf16.msra.mxu0 0
      %1306 = vmatpush.bf16.msra.mxu0 0
      %1307 = vmatpush.bf16.msra.mxu0 0
      %1308 = vmatpush.bf16.msra.mxu0 0
      %1309 = vmatpush.bf16.msra.mxu0 0
      %1310 = vmatpush.bf16.msra.mxu0 0
      %1311 = vmatpush.bf16.msra.mxu0 %v1147
      %1312 = vmatpush.bf16.msra.mxu0 %v1144
      %1313 = vmatmul.bf16.gmra.mxu0 %v1205
      %v1314 = vpop.f32.mrf.mxu0
      %v1315 = vadd.f32 %v1296, %v1314
      %v1316 = vpop.f32.mrf.mxu0
      %v1317 = vadd.f32 %v1298, %v1316
      %1318 = vmatmul.bf16.gmra.mxu0 %v1208
      %v1319 = vpop.f32.mrf.mxu0
      %v1320 = vadd.f32 %v1301, %v1319
      %v1321 = vpop.f32.mrf.mxu0
      %v1322 = vadd.f32 %v1303, %v1321
      %1323 = vdwg.mxu0
      %1324 = vmatpush.bf16.msra.mxu0 %v1118
      %1325 = vmatpush.bf16.msra.mxu0 %v1115
      %1326 = vmatpush.bf16.msra.mxu0 %v1112
      %1327 = vmatpush.bf16.msra.mxu0 %v1109
      %1328 = vmatpush.bf16.msra.mxu0 %v1106
      %1329 = vmatpush.bf16.msra.mxu0 %v1103
      %1330 = vmatpush.bf16.msra.mxu0 %v1100
      %1331 = vmatpush.bf16.msra.mxu0 %v1097
      %1332 = vmatmul.bf16.gmra.mxu0 %v905
      %v1333 = vpop.f32.mrf.mxu0
      %v1334 = vadd.f32 0.0, %v1333
      %v1335 = vpop.f32.mrf.mxu0
      %v1336 = vadd.f32 0.0, %v1335
      %1337 = vmatmul.bf16.gmra.mxu0 %v908
      %v1338 = vpop.f32.mrf.mxu0
      %v1339 = vadd.f32 0.0, %v1338
      %v1340 = vpop.f32.mrf.mxu0
      %v1341 = vadd.f32 0.0, %v1340
      %1342 = vdwg.mxu0
      %1343 = vmatpush.bf16.msra.mxu0 %v1142
      %1344 = vmatpush.bf16.msra.mxu0 %v1139
      %1345 = vmatpush.bf16.msra.mxu0 %v1136
      %1346 = vmatpush.bf16.msra.mxu0 %v1133
      %1347 = vmatpush.bf16.msra.mxu0 %v1130
      %1348 = vmatpush.bf16.msra.mxu0 %v1127
      %1349 = vmatpush.bf16.msra.mxu0 %v1124
      %1350 = vmatpush.bf16.msra.mxu0 %v1121
      %1351 = vmatmul.bf16.gmra.mxu0 %v906
      %v1352 = vpop.f32.mrf.mxu0
      %v1353 = vadd.f32 %v1334, %v1352
      %v1354 = vpop.f32.mrf.mxu0
      %v1355 = vadd.f32 %v1336, %v1354
      %1356 = vmatmul.bf16.gmra.mxu0 %v909
      %v1357 = vpop.f32.mrf.mxu0
      %v1358 = vadd.f32 %v1339, %v1357
      %v1359 = vpop.f32.mrf.mxu0
      %v1360 = vadd.f32 %v1341, %v1359
      %1361 = vdwg.mxu0
      %1362 = vmatpush.bf16.msra.mxu0 0
      %1363 = vmatpush.bf16.msra.mxu0 0
      %1364 = vmatpush.bf16.msra.mxu0 0
      %1365 = vmatpush.bf16.msra.mxu0 0
      %1366 = vmatpush.bf16.msra.mxu0 0
      %1367 = vmatpush.bf16.msra.mxu0 0
      %1368 = vmatpush.bf16.msra.mxu0 %v1148
      %1369 = vmatpush.bf16.msra.mxu0 %v1145
      %1370 = vmatmul.bf16.gmra.mxu0 %v1205
      %v1371 = vpop.f32.mrf.mxu0
      %v1372 = vadd.f32 %v1353, %v1371
      %v1373 = vpop.f32.mrf.mxu0
      %v1374 = vadd.f32 %v1355, %v1373
      %1375 = vmatmul.bf16.gmra.mxu0 %v1208
      %v1376 = vpop.f32.mrf.mxu0
      %v1377 = vadd.f32 %v1358, %v1376
      %v1378 = vpop.f32.mrf.mxu0
      %v1379 = vadd.f32 %v1360, %v1378
      %1380 = vdwg.mxu0
      %v1381 = vld [vmem:[%s2] sm:$0x7]
      %v1383 = vperm.slane %v1381, 0
      %v1384 = vperm.slane %v1381, 1
      %v1385 = vperm.slane %v1381, 2
      %v1389 = vmul.f32 %v1258, %v1383
      %v1390 = vmul.f32 %v1315, %v1384
      %v1391 = vmul.f32 %v1372, %v1385
      %v1392 = vmul.f32 %v1260, %v1383
      %v1393 = vmul.f32 %v1317, %v1384
      %v1394 = vmul.f32 %v1374, %v1385
      %v1395 = vmul.f32 %v1263, %v1383
      %v1396 = vmul.f32 %v1320, %v1384
      %v1397 = vmul.f32 %v1377, %v1385
      %v1398 = vmul.f32 %v1265, %v1383
      %v1399 = vmul.f32 %v1322, %v1384
      %v1400 = vmul.f32 %v1379, %v1385
      %v1401 = vadd.f32 %v1389, %v1390
      %v1402 = vadd.f32 %v1401, %v1391
      %1403 = vadd.xlane.f32.xlu0 %v1402
      %v1404 = vpop.xlane.xlu0 %1403
      %v1405 = vadd.f32 %v1392, %v1393
      %v1406 = vadd.f32 %v1405, %v1394
      %1407 = vadd.xlane.f32.xlu0 %v1406
      %v1408 = vpop.xlane.xlu0 %1407
      %v1409 = vadd.f32 %v1395, %v1396
      %v1410 = vadd.f32 %v1409, %v1397
      %1411 = vadd.xlane.f32.xlu0 %v1410
      %v1412 = vpop.xlane.xlu0 %1411
      %v1413 = vadd.f32 %v1398, %v1399
      %v1414 = vadd.f32 %v1413, %v1400
      %1415 = vadd.xlane.f32.xlu0 %v1414
      %v1416 = vpop.xlane.xlu0 %1415
      %vm1417 = vcmask 7168
      %1418 = vst.msk [vmem:[%s205] sm:$0xff] %vm1417, %v1404
      %1419 = vst.msk [vmem:[%s205 + $0x8] sm:$0xff] %vm1417, %v1408
      %1420 = vst.msk [vmem:[%s205 + $0x10] sm:$0xff] %vm1417, %v1412
      %1421 = vst.msk [vmem:[%s205 + $0x18] sm:$0xff] %vm1417, %v1416
      %v1422 = vmul.f32 %v1389, %v1258
      %v1423 = vmul.f32 %v1390, %v1315
      %v1424 = vmul.f32 %v1391, %v1372
      %v1425 = vmul.f32 %v1392, %v1260
      %v1426 = vmul.f32 %v1393, %v1317
      %v1427 = vmul.f32 %v1394, %v1374
      %v1428 = vmul.f32 %v1395, %v1263
      %v1429 = vmul.f32 %v1396, %v1320
      %v1430 = vmul.f32 %v1397, %v1377
      %v1431 = vmul.f32 %v1398, %v1265
      %v1432 = vmul.f32 %v1399, %v1322
      %v1433 = vmul.f32 %v1400, %v1379
      %v1434 = vadd.f32 %v1422, %v1423
      %v1435 = vadd.f32 %v1434, %v1424
      %1436 = vadd.xlane.f32.xlu0 %v1435
      %v1437 = vpop.xlane.xlu0 %1436
      %v1438 = vadd.f32 %v1425, %v1426
      %v1439 = vadd.f32 %v1438, %v1427
      %1440 = vadd.xlane.f32.xlu0 %v1439
      %v1441 = vpop.xlane.xlu0 %1440
      %v1442 = vadd.f32 %v1428, %v1429
      %v1443 = vadd.f32 %v1442, %v1430
      %1444 = vadd.xlane.f32.xlu0 %v1443
      %v1445 = vpop.xlane.xlu0 %1444
      %v1446 = vadd.f32 %v1431, %v1432
      %v1447 = vadd.f32 %v1446, %v1433
      %1448 = vadd.xlane.f32.xlu0 %v1447
      %v1449 = vpop.xlane.xlu0 %1448
      %1450 = vst.msk [vmem:[%s210] sm:$0xff] %vm1417, %v1437
      %1451 = vst.msk [vmem:[%s210 + $0x8] sm:$0xff] %vm1417, %v1441
      %1452 = vst.msk [vmem:[%s210 + $0x10] sm:$0xff] %vm1417, %v1445
      %1453 = vst.msk [vmem:[%s210 + $0x18] sm:$0xff] %vm1417, %v1449
      %p1454 = scmp.lt.s32.totalorder %s16, 1
      %s1455 = scalar_select %p1454, %s16, 1
      %s1456 = smul.addr %s1455, 4
      %s1457 = smul.addr %s1456, 8
      %s1458 = scalar_lea.vmem %s3, %s1457
      %p1459 = scmp.lt.s32.totalorder %s16, 1
      %s1460 = scalar_select %p1459, %s16, 1
      %s1461 = smul.addr %s1460, 4
      %s1462 = smul.addr %s1461, 8
      %s1463 = scalar_lea.vmem %s4, %s1462
      // Predicated region
      $region33: #{res_block_forward.2} parent=31 // pred_check
        %p1464 = pneg %p102
      $region34: #{res_block_forward.2} parent=31 // pred_check_branch
        %1466 = sbr.rel (%p1464) target = $region36
      $region35: #{res_block_forward.2} parent=31 // pred_region
        _
      $region36: #{res_block_forward.2} parent=31 // pred_fallthru
        _
      // Predicated region
      $region37: #{res_block_forward.2} parent=31 // pred_check
        %p1467 = pneg %p128
      $region38: #{res_block_forward.2} parent=31 // pred_check_branch
        %1469 = sbr.rel (%p1467) target = $region40
      $region39: #{res_block_forward.2} parent=31 // pred_region
        _
      $region40: #{res_block_forward.2} parent=31 // pred_fallthru
        _
    $region32: #{res_block_forward.2} parent=5 // pred_fallthru
      _
    %p1470 = scmp.le.s32.totalorder 2, %s11
    // Predicated region
    $region41: #{res_block_forward.2} parent=5 // pred_check
      %p1471 = pneg %p1470
    $region42: #{res_block_forward.2} parent=5 // pred_check_branch
      %1473 = sbr.rel (%p1471) target = $region44
    $region43: #{res_block_forward.2} parent=5 // pred_region
      %s1474 = ssub.s32 %s11, 2
      // Predicated region
      $region45: #{res_block_forward.2} parent=43 // pred_check
        %p1475 = pneg %p108
      $region46: #{res_block_forward.2} parent=43 // pred_check_branch
        %1477 = sbr.rel (%p1475) target = $region48
      $region47: #{res_block_forward.2} parent=43 // pred_region
        %p1478 = scmp.lt.s32.totalorder %s17, 1
        %s1479 = scalar_select %p1478, %s17, 1
        %s1480 = smul.addr %s1479, 4
        %s1481 = smul.addr %s1480, 8
        %s1482 = scalar_lea.vmem %s3, %s1481
      $region48: #{res_block_forward.2} parent=43 // pred_fallthru
        _
      // Predicated region
      $region49: #{res_block_forward.2} parent=43 // pred_check
        %p1483 = pneg %p134
      $region50: #{res_block_forward.2} parent=43 // pred_check_branch
        %1485 = sbr.rel (%p1483) target = $region52
      $region51: #{res_block_forward.2} parent=43 // pred_region
        %p1486 = scmp.lt.s32.totalorder %s17, 1
        %s1487 = scalar_select %p1486, %s17, 1
        %s1488 = smul.addr %s1487, 4
        %s1489 = smul.addr %s1488, 8
        %s1490 = scalar_lea.vmem %s4, %s1489
      $region52: #{res_block_forward.2} parent=43 // pred_fallthru
        _
    $region44: #{res_block_forward.2} parent=5 // pred_fallthru
      _
  $region6: #{res_block_forward.2} parent=0 // loop_footer
    %s15 = sadd.s32 1, %s11
  $region7: #{res_block_forward.2} parent=0 // loop_footer_branch
    %10 = sbr.rel target = $region3
  $region8: #{res_block_forward.2} parent=0 // loop_exit
    _

// kernel: res_block_forward.3
$region0: #{res_block_forward.3}
  #allocation0 [shape = 'u32[]', space=smem, size = 0x4, offset = 0x4, fixed_abs, tag = 'smem constant byte address 0x4 - core index']
  #allocation1 [shape = 'u32[72,128]{1,0:T(1,128)}', space=vmem, size = 0x9000, scoped, tag = 'internal scratch']
  #allocation2 [shape = 'bf16[32,640]{1,0:T(8,128)(2,1)}', space=vmem, size = 0xa000, scoped, tag = 'scratch operand']
  #allocation3 [shape = 'bf16[288,384]{1,0:T(8,128)(2,1)}', space=vmem, size = 0x36000, scoped, tag = 'scratch operand']
  #allocation4 [shape = 'bf16[32,640]{1,0:T(8,128)(2,1)}', space=vmem, size = 0xa000, scoped, tag = 'scratch operand']
  #allocation5 [shape = 'bf16[288,384]{1,0:T(8,128)(2,1)}', space=vmem, size = 0x36000, scoped, tag = 'scratch operand']
  %s0 = inlined_call_operand.vmem [shape: bf16[2,32,384], index: 0, kind: input, shape index: {}]
  %s1 = inlined_call_operand.vmem [shape: bf16[32,288], index: 1, kind: input, shape index: {}]
  %s2 = inlined_call_operand.vmem [shape: bf16[32,288], index: 2, kind: input, shape index: {}]
  %s3 = inlined_call_operand.vmem [shape: f32[1,384], index: 3, kind: input, shape index: {}]
  %s4 = inlined_call_operand.vmem [shape: f32[32,1], index: 4, kind: input, shape index: {}]
  %s5 = inlined_call_operand.vmem [shape: f32[32,1], index: 5, kind: input, shape index: {}]
  %s6 = inlined_call_operand.vmem [shape: f32[2,32,384], index: 6, kind: output, shape index: {}]
  %s7 = sld [smem:[#allocation0]]
  $region57: #{res_block_forward.3} parent=0
    _
  %s9 = ssub.s32 1, %s7
  %s10 = scalar_select 0, %s9, %s7
  loop: start=0, step=1, limit=4
  $region2: #{res_block_forward.3} parent=0 // loop_pre_header
    _
  $region3: #{res_block_forward.3} parent=0 // loop_header
    %s12 = sphi 0, %s16
    %p13 = scmp.ge.s32.totalorder %s12, 4
    %s22 = sphi 0, %s24
    %s25 = sphi 0, %s22
    %s26 = sphi 0, %s25
    %s42 = sphi 0, %s26
    %s46 = sphi 0, %s46
    %s48 = sphi 0, %s46
    %s49 = sphi 0, %s48
    %s63 = sphi 0, %s49
    %s67 = sphi 0, %s67
    %s69 = sphi 0, %s67
    %s70 = sphi 0, %s69
    %s84 = sphi 0, %s70
    %s88 = sphi 0, %s88
    %s90 = sphi 0, %s88
    %s91 = sphi 0, %s90
    %s105 = sphi 0, %s91
    %s109 = sphi 0, %s109
    %s111 = sphi 0, %s109
    %s112 = sphi 0, %s111
    %s126 = sphi 0, %s112
    %s130 = sphi 0, %s130
    %s132 = sphi 0, %s130
    %s133 = sphi 0, %s132
    %s147 = sphi 0, %s133
    %s153 = sphi 0, %s155
    %s156 = sphi 0, %s153
    %s157 = sphi 0, %s156
    %s173 = sphi 0, %s157
  $region4: #{res_block_forward.3} parent=0 // loop_header_branch
    %15 = sbr.rel (%p13) target = $region8
  $region5: #{res_block_forward.3} parent=0 // loop_body
    %s17 = ssub.s32 %s12, 1
    %s18 = ssub.s32 %s12, 2
    %s19 = sadd.s32 %s12, 1
    %s20 = ssub.s32 %s12, %s19
    %p21 = scmp.eq.s32.totalorder %s20, 0
    %s23 = sadd.s32 %s22, 1
    %s24 = scalar_select %p21, %s22, %s23
    %p27 = pneg %p21
    %p28 = scmp.eq.s32.totalorder %s12, 1
    %p29 = por %p27, %p28
    %p30 = scmp.ne.s32.totalorder %s22, %s25
    %p31 = scmp.eq.s32.totalorder %s12, 0
    %p32 = por %p30, %p31
    %p33 = scmp.ne.s32.totalorder %s22, %s25
    %p34 = scmp.eq.s32.totalorder %s17, 1
    %p35 = por %p33, %p34
    %p36 = scmp.ne.s32.totalorder %s25, %s26
    %p37 = scmp.eq.s32.totalorder %s17, 0
    %p38 = por %p36, %p37
    %p39 = scmp.ne.s32.totalorder %s25, %s26
    %p40 = scmp.eq.s32.totalorder %s18, 1
    %p41 = por %p39, %p40
    %p43 = scmp.ne.s32.totalorder %s26, %s42
    %p44 = scmp.eq.s32.totalorder %s18, 0
    %p45 = por %p43, %p44
    %s47 = sadd.s32 %s46, 1
    %p50 = scmp.eq.s32.totalorder %s12, 1
    %p51 = scmp.ne.s32.totalorder %s46, %s48
    %p52 = scmp.eq.s32.totalorder %s12, 0
    %p53 = por %p51, %p52
    %p54 = scmp.ne.s32.totalorder %s46, %s48
    %p55 = scmp.eq.s32.totalorder %s17, 1
    %p56 = por %p54, %p55
    %p57 = scmp.ne.s32.totalorder %s48, %s49
    %p58 = scmp.eq.s32.totalorder %s17, 0
    %p59 = por %p57, %p58
    %p60 = scmp.ne.s32.totalorder %s48, %s49
    %p61 = scmp.eq.s32.totalorder %s18, 1
    %p62 = por %p60, %p61
    %p64 = scmp.ne.s32.totalorder %s49, %s63
    %p65 = scmp.eq.s32.totalorder %s18, 0
    %p66 = por %p64, %p65
    %s68 = sadd.s32 %s67, 1
    %p71 = scmp.eq.s32.totalorder %s12, 1
    %p72 = scmp.ne.s32.totalorder %s67, %s69
    %p73 = scmp.eq.s32.totalorder %s12, 0
    %p74 = por %p72, %p73
    %p75 = scmp.ne.s32.totalorder %s67, %s69
    %p76 = scmp.eq.s32.totalorder %s17, 1
    %p77 = por %p75, %p76
    %p78 = scmp.ne.s32.totalorder %s69, %s70
    %p79 = scmp.eq.s32.totalorder %s17, 0
    %p80 = por %p78, %p79
    %p81 = scmp.ne.s32.totalorder %s69, %s70
    %p82 = scmp.eq.s32.totalorder %s18, 1
    %p83 = por %p81, %p82
    %p85 = scmp.ne.s32.totalorder %s70, %s84
    %p86 = scmp.eq.s32.totalorder %s18, 0
    %p87 = por %p85, %p86
    %s89 = sadd.s32 %s88, 1
    %p92 = scmp.eq.s32.totalorder %s12, 1
    %p93 = scmp.ne.s32.totalorder %s88, %s90
    %p94 = scmp.eq.s32.totalorder %s12, 0
    %p95 = por %p93, %p94
    %p96 = scmp.ne.s32.totalorder %s88, %s90
    %p97 = scmp.eq.s32.totalorder %s17, 1
    %p98 = por %p96, %p97
    %p99 = scmp.ne.s32.totalorder %s90, %s91
    %p100 = scmp.eq.s32.totalorder %s17, 0
    %p101 = por %p99, %p100
    %p102 = scmp.ne.s32.totalorder %s90, %s91
    %p103 = scmp.eq.s32.totalorder %s18, 1
    %p104 = por %p102, %p103
    %p106 = scmp.ne.s32.totalorder %s91, %s105
    %p107 = scmp.eq.s32.totalorder %s18, 0
    %p108 = por %p106, %p107
    %s110 = sadd.s32 %s109, 1
    %p113 = scmp.eq.s32.totalorder %s12, 1
    %p114 = scmp.ne.s32.totalorder %s109, %s111
    %p115 = scmp.eq.s32.totalorder %s12, 0
    %p116 = por %p114, %p115
    %p117 = scmp.ne.s32.totalorder %s109, %s111
    %p118 = scmp.eq.s32.totalorder %s17, 1
    %p119 = por %p117, %p118
    %p120 = scmp.ne.s32.totalorder %s111, %s112
    %p121 = scmp.eq.s32.totalorder %s17, 0
    %p122 = por %p120, %p121
    %p123 = scmp.ne.s32.totalorder %s111, %s112
    %p124 = scmp.eq.s32.totalorder %s18, 1
    %p125 = por %p123, %p124
    %p127 = scmp.ne.s32.totalorder %s112, %s126
    %p128 = scmp.eq.s32.totalorder %s18, 0
    %p129 = por %p127, %p128
    %s131 = sadd.s32 %s130, 1
    %p134 = scmp.eq.s32.totalorder %s12, 1
    %p135 = scmp.ne.s32.totalorder %s130, %s132
    %p136 = scmp.eq.s32.totalorder %s12, 0
    %p137 = por %p135, %p136
    %p138 = scmp.ne.s32.totalorder %s130, %s132
    %p139 = scmp.eq.s32.totalorder %s17, 1
    %p140 = por %p138, %p139
    %p141 = scmp.ne.s32.totalorder %s132, %s133
    %p142 = scmp.eq.s32.totalorder %s17, 0
    %p143 = por %p141, %p142
    %p144 = scmp.ne.s32.totalorder %s132, %s133
    %p145 = scmp.eq.s32.totalorder %s18, 1
    %p146 = por %p144, %p145
    %p148 = scmp.ne.s32.totalorder %s133, %s147
    %p149 = scmp.eq.s32.totalorder %s18, 0
    %p150 = por %p148, %p149
    %s151 = ssub.s32 %s12, %s19
    %p152 = scmp.eq.s32.totalorder %s151, 0
    %s154 = sadd.s32 %s153, 1
    %s155 = scalar_select %p152, %s153, %s154
    %p158 = pneg %p152
    %p159 = scmp.eq.s32.totalorder %s12, 1
    %p160 = por %p158, %p159
    %p161 = scmp.ne.s32.totalorder %s153, %s156
    %p162 = scmp.eq.s32.totalorder %s12, 0
    %p163 = por %p161, %p162
    %p164 = scmp.ne.s32.totalorder %s153, %s156
    %p165 = scmp.eq.s32.totalorder %s17, 1
    %p166 = por %p164, %p165
    %p167 = scmp.ne.s32.totalorder %s156, %s157
    %p168 = scmp.eq.s32.totalorder %s17, 0
    %p169 = por %p167, %p168
    %p170 = scmp.ne.s32.totalorder %s156, %s157
    %p171 = scmp.eq.s32.totalorder %s18, 1
    %p172 = por %p170, %p171
    %p174 = scmp.ne.s32.totalorder %s157, %s173
    %p175 = scmp.eq.s32.totalorder %s18, 0
    %p176 = por %p174, %p175
    %p177 = scmp.le.s32.totalorder 1, %s12
    %p178 = scmp.lt.s32.totalorder %s12, 3
    %p179 = pnand %p177, %p178
    %p180 = pneg %p179
    // Predicated region
    $region9: #{res_block_forward.3} parent=5 // pred_check
      _
    $region10: #{res_block_forward.3} parent=5 // pred_check_branch
      %182 = sbr.rel (%p179) target = $region12
    $region11: #{res_block_forward.3} parent=5 // pred_region
      %s183 = ssub.s32 %s12, 1
      // Predicated region
      $region13: #{res_block_forward.3} parent=11 // pred_check
        %p184 = pneg %p59
      $region14: #{res_block_forward.3} parent=11 // pred_check_branch
        %186 = sbr.rel (%p184) target = $region16
      $region15: #{res_block_forward.3} parent=11 // pred_region
        _
      $region16: #{res_block_forward.3} parent=11 // pred_fallthru
        _
      // Predicated region
      $region17: #{res_block_forward.3} parent=11 // pred_check
        %p187 = pneg %p80
      $region18: #{res_block_forward.3} parent=11 // pred_check_branch
        %189 = sbr.rel (%p187) target = $region20
      $region19: #{res_block_forward.3} parent=11 // pred_region
        _
      $region20: #{res_block_forward.3} parent=11 // pred_fallthru
        _
      // Predicated region
      $region21: #{res_block_forward.3} parent=11 // pred_check
        %p190 = pneg %p101
      $region22: #{res_block_forward.3} parent=11 // pred_check_branch
        %192 = sbr.rel (%p190) target = $region24
      $region23: #{res_block_forward.3} parent=11 // pred_region
        _
      $region24: #{res_block_forward.3} parent=11 // pred_fallthru
        _
      // Predicated region
      $region25: #{res_block_forward.3} parent=11 // pred_check
        %p193 = pneg %p122
      $region26: #{res_block_forward.3} parent=11 // pred_check_branch
        %195 = sbr.rel (%p193) target = $region28
      $region27: #{res_block_forward.3} parent=11 // pred_region
        _
      $region28: #{res_block_forward.3} parent=11 // pred_fallthru
        _
      // Predicated region
      $region29: #{res_block_forward.3} parent=11 // pred_check
        %p196 = pneg %p143
      $region30: #{res_block_forward.3} parent=11 // pred_check_branch
        %198 = sbr.rel (%p196) target = $region32
      $region31: #{res_block_forward.3} parent=11 // pred_region
        _
      $region32: #{res_block_forward.3} parent=11 // pred_fallthru
        _
    $region12: #{res_block_forward.3} parent=5 // pred_fallthru
      _
    %p199 = scmp.lt.s32.totalorder %s12, 2
    // Predicated region
    $region33: #{res_block_forward.3} parent=5 // pred_check
      %p200 = pneg %p199
    $region34: #{res_block_forward.3} parent=5 // pred_check_branch
      %202 = sbr.rel (%p200) target = $region36
    $region35: #{res_block_forward.3} parent=5 // pred_region
      // Predicated region
      $region37: #{res_block_forward.3} parent=35 // pred_check
        %p203 = pneg %p32
      $region38: #{res_block_forward.3} parent=35 // pred_check_branch
        %205 = sbr.rel (%p203) target = $region40
      $region39: #{res_block_forward.3} parent=35 // pred_region
        %p206 = scmp.lt.s32.totalorder %s12, 1
        %s207 = scalar_select %p206, %s12, 1
        %s208 = smul.addr %s207, 12
        %s209 = smul.addr %s208, 4
        %s210 = scalar_lea.vmem %s0, %s209
      $region40: #{res_block_forward.3} parent=35 // pred_fallthru
        _
    $region36: #{res_block_forward.3} parent=5 // pred_fallthru
      _
    %p211 = scmp.le.s32.totalorder 1, %s12
    %p212 = scmp.lt.s32.totalorder %s12, 3
    %p213 = pnand %p211, %p212
    %p214 = pneg %p213
    // Predicated region
    $region41: #{res_block_forward.3} parent=5 // pred_check
      _
    $region42: #{res_block_forward.3} parent=5 // pred_check_branch
      %216 = sbr.rel (%p213) target = $region44
    $region43: #{res_block_forward.3} parent=5 // pred_region
      %s217 = ssub.s32 %s12, 1
      %p218 = scmp.lt.s32.totalorder %s17, 1
      %s219 = scalar_select %p218, %s17, 1
      %s220 = smul.addr %s219, 12
      %s221 = smul.addr %s220, 4
      %s222 = scalar_lea.vmem %s0, %s221
      %p223 = pneg %p38
      %p224 = pneg %p35
      %p225 = pneg %p59
      %p226 = pneg %p56
      %p227 = pneg %p80
      %p228 = pneg %p77
      %p229 = pneg %p101
      %p230 = pneg %p98
      %p231 = pneg %p122
      %p232 = pneg %p119
      %p233 = pneg %p143
      %p234 = pneg %p140
      %p235 = pneg %p169
      %p236 = pneg %p166
      %p237 = scmp.lt.s32.totalorder %s17, 1
      %s238 = scalar_select %p237, %s17, 1
      %s239 = smul.addr %s238, 12
      %s240 = smul.addr %s239, 8
      %s241 = scalar_lea.vmem %s6, %s240
      %p242 = scmp.lt.s32.totalorder %s17, 1
      %s243 = scalar_select %p242, %s17, 1
      %s244 = smul.addr %s243, 12
      %s245 = smul.addr %s244, 4
      %s246 = scalar_lea.vmem %s0, %s245
      %p247 = scmp.lt.s32.totalorder %s17, 1
      %s248 = scalar_select %p247, %s17, 1
      %s249 = smul.addr %s248, 12
      %s250 = smul.addr %s249, 8
      %s251 = scalar_lea.vmem %s6, %s250
      %253 = vst [vmem:[#allocation2] sm:$0xf] 0
      %254 = vst [vmem:[#allocation2 + $0x14] sm:$0xf] 0
      %255 = vst [vmem:[#allocation2 + $0x28] sm:$0xf] 0
      %256 = vst [vmem:[#allocation2 + $0x3c] sm:$0xf] 0
      %257 = vst [vmem:[#allocation2 + $0x10] sm:$0xf] 0
      %258 = vst [vmem:[#allocation2 + $0x24] sm:$0xf] 0
      %259 = vst [vmem:[#allocation2 + $0x38] sm:$0xf] 0
      %260 = vst [vmem:[#allocation2 + $0x4c] sm:$0xf] 0
      %v261 = vld [vmem:[%s246] sm:$0xff]
      %v262 = vld [vmem:[%s246 + $0x8] sm:$0xf]
      %v263 = vld [vmem:[%s246 + $0xc] sm:$0xff]
      %v264 = vld [vmem:[%s246 + $0x14] sm:$0xf]
      %v265 = vld [vmem:[%s246 + $0x18] sm:$0xff]
      %v266 = vld [vmem:[%s246 + $0x20] sm:$0xf]
      %v267 = vld [vmem:[%s246 + $0x24] sm:$0xff]
      %v268 = vld [vmem:[%s246 + $0x2c] sm:$0xf]
      %269 = vst [vmem:[#allocation2 + $0x4] sm:$0xff] %v261
      %270 = vst [vmem:[#allocation2 + $0xc] sm:$0xf] %v262
      %271 = vst [vmem:[#allocation2 + $0x18] sm:$0xff] %v263
      %272 = vst [vmem:[#allocation2 + $0x20] sm:$0xf] %v264
      %273 = vst [vmem:[#allocation2 + $0x2c] sm:$0xff] %v265
      %274 = vst [vmem:[#allocation2 + $0x34] sm:$0xf] %v266
      %275 = vst [vmem:[#allocation2 + $0x40] sm:$0xff] %v267
      %276 = vst [vmem:[#allocation2 + $0x48] sm:$0xf] %v268
      %v277 = vld [vmem:[#allocation2] sm:$0xff]
      %v278 = vld [vmem:[#allocation2 + $0x8] sm:$0xff]
      %v279 = vld [vmem:[#allocation2 + $0x14] sm:$0xff]
      %v280 = vld [vmem:[#allocation2 + $0x1c] sm:$0xff]
      %v281 = vld [vmem:[#allocation2 + $0x28] sm:$0xff]
      %v282 = vld [vmem:[#allocation2 + $0x30] sm:$0xff]
      %v283 = vld [vmem:[#allocation2 + $0x3c] sm:$0xff]
      %v284 = vld [vmem:[#allocation2 + $0x44] sm:$0xff]
      %293 = vrot.lane.b32.xlu0 %v277, 19
      %v294 = vpop.permute.xlu0 %293
      %295 = vrot.lane.b32.xlu0 %v278, 19
      %v296 = vpop.permute.xlu0 %295
      %297 = vrot.lane.b32.xlu0 %v279, 19
      %v298 = vpop.permute.xlu0 %297
      %299 = vrot.lane.b32.xlu0 %v280, 19
      %v300 = vpop.permute.xlu0 %299
      %301 = vrot.lane.b32.xlu0 %v281, 19
      %v302 = vpop.permute.xlu0 %301
      %303 = vrot.lane.b32.xlu0 %v282, 19
      %v304 = vpop.permute.xlu0 %303
      %305 = vrot.lane.b32.xlu0 %v283, 19
      %v306 = vpop.permute.xlu0 %305
      %307 = vrot.lane.b32.xlu0 %v284, 19
      %v308 = vpop.permute.xlu0 %307
      %v309 = vrot.slane %v294, 4
      %v310 = vrot.slane %v296, 4
      %v311 = vrot.slane %v298, 4
      %v312 = vrot.slane %v300, 4
      %v313 = vrot.slane %v302, 4
      %v314 = vrot.slane %v304, 4
      %v315 = vrot.slane %v306, 4
      %v316 = vrot.slane %v308, 4
      %vm317 = vcmask 1043456
      %v318 = vsel %vm317, %v309, %v310
      %vm319 = vcmask 154624
      %v320 = vsel %vm319, %v294, %v318
      %v321 = vsel %vm319, %v296, %v310
      %v322 = vsel %vm317, %v311, %v312
      %v323 = vsel %vm319, %v298, %v322
      %v324 = vsel %vm319, %v300, %v312
      %v325 = vsel %vm317, %v313, %v314
      %v326 = vsel %vm319, %v302, %v325
      %v327 = vsel %vm319, %v304, %v314
      %v328 = vsel %vm317, %v315, %v316
      %v329 = vsel %vm319, %v306, %v328
      %v330 = vsel %vm319, %v308, %v316
      %339 = vst [vmem:[#allocation3] sm:$0xff] %v320
      %340 = vst [vmem:[#allocation3 + $0x8] sm:$0xf] %v321
      %341 = vst [vmem:[#allocation3 + $0xc] sm:$0xff] %v323
      %342 = vst [vmem:[#allocation3 + $0x14] sm:$0xf] %v324
      %343 = vst [vmem:[#allocation3 + $0x18] sm:$0xff] %v326
      %344 = vst [vmem:[#allocation3 + $0x20] sm:$0xf] %v327
      %345 = vst [vmem:[#allocation3 + $0x24] sm:$0xff] %v329
      %346 = vst [vmem:[#allocation3 + $0x2c] sm:$0xf] %v330
      %v347 = vld [vmem:[#allocation2] sm:$0xff]
      %v348 = vld [vmem:[#allocation2 + $0x8] sm:$0xff]
      %v349 = vld [vmem:[#allocation2 + $0x14] sm:$0xff]
      %v350 = vld [vmem:[#allocation2 + $0x1c] sm:$0xff]
      %v351 = vld [vmem:[#allocation2 + $0x28] sm:$0xff]
      %v352 = vld [vmem:[#allocation2 + $0x30] sm:$0xff]
      %v353 = vld [vmem:[#allocation2 + $0x3c] sm:$0xff]
      %v354 = vld [vmem:[#allocation2 + $0x44] sm:$0xff]
      %363 = vrot.lane.b32.xlu0 %v347, 18
      %v364 = vpop.permute.xlu0 %363
      %365 = vrot.lane.b32.xlu0 %v348, 18
      %v366 = vpop.permute.xlu0 %365
      %367 = vrot.lane.b32.xlu0 %v349, 18
      %v368 = vpop.permute.xlu0 %367
      %369 = vrot.lane.b32.xlu0 %v350, 18
      %v370 = vpop.permute.xlu0 %369
      %371 = vrot.lane.b32.xlu0 %v351, 18
      %v372 = vpop.permute.xlu0 %371
      %373 = vrot.lane.b32.xlu0 %v352, 18
      %v374 = vpop.permute.xlu0 %373
      %375 = vrot.lane.b32.xlu0 %v353, 18
      %v376 = vpop.permute.xlu0 %375
      %377 = vrot.lane.b32.xlu0 %v354, 18
      %v378 = vpop.permute.xlu0 %377
      %v379 = vrot.slane %v364, 4
      %v380 = vrot.slane %v366, 4
      %v381 = vrot.slane %v368, 4
      %v382 = vrot.slane %v370, 4
      %v383 = vrot.slane %v372, 4
      %v384 = vrot.slane %v374, 4
      %v385 = vrot.slane %v376, 4
      %v386 = vrot.slane %v378, 4
      %v387 = vsel %vm317, %v379, %v380
      %vm388 = vcmask 146432
      %v389 = vsel %vm388, %v364, %v387
      %v390 = vsel %vm388, %v366, %v380
      %v391 = vsel %vm317, %v381, %v382
      %v392 = vsel %vm388, %v368, %v391
      %v393 = vsel %vm388, %v370, %v382
      %v394 = vsel %vm317, %v383, %v384
      %v395 = vsel %vm388, %v372, %v394
      %v396 = vsel %vm388, %v374, %v384
      %v397 = vsel %vm317, %v385, %v386
      %v398 = vsel %vm388, %v376, %v397
      %v399 = vsel %vm388, %v378, %v386
      %408 = vst [vmem:[#allocation3 + $0x30] sm:$0xff] %v389
      %409 = vst [vmem:[#allocation3 + $0x38] sm:$0xf] %v390
      %410 = vst [vmem:[#allocation3 + $0x3c] sm:$0xff] %v392
      %411 = vst [vmem:[#allocation3 + $0x44] sm:$0xf] %v393
      %412 = vst [vmem:[#allocation3 + $0x48] sm:$0xff] %v395
      %413 = vst [vmem:[#allocation3 + $0x50] sm:$0xf] %v396
      %414 = vst [vmem:[#allocation3 + $0x54] sm:$0xff] %v398
      %415 = vst [vmem:[#allocation3 + $0x5c] sm:$0xf] %v399
      %v416 = vld [vmem:[#allocation2] sm:$0xff]
      %v417 = vld [vmem:[#allocation2 + $0x8] sm:$0xff]
      %v418 = vld [vmem:[#allocation2 + $0x14] sm:$0xff]
      %v419 = vld [vmem:[#allocation2 + $0x1c] sm:$0xff]
      %v420 = vld [vmem:[#allocation2 + $0x28] sm:$0xff]
      %v421 = vld [vmem:[#allocation2 + $0x30] sm:$0xff]
      %v422 = vld [vmem:[#allocation2 + $0x3c] sm:$0xff]
      %v423 = vld [vmem:[#allocation2 + $0x44] sm:$0xff]
      %432 = vrot.lane.b32.xlu0 %v416, 17
      %v433 = vpop.permute.xlu0 %432
      %434 = vrot.lane.b32.xlu0 %v417, 17
      %v435 = vpop.permute.xlu0 %434
      %436 = vrot.lane.b32.xlu0 %v418, 17
      %v437 = vpop.permute.xlu0 %436
      %438 = vrot.lane.b32.xlu0 %v419, 17
      %v439 = vpop.permute.xlu0 %438
      %440 = vrot.lane.b32.xlu0 %v420, 17
      %v441 = vpop.permute.xlu0 %440
      %442 = vrot.lane.b32.xlu0 %v421, 17
      %v443 = vpop.permute.xlu0 %442
      %444 = vrot.lane.b32.xlu0 %v422, 17
      %v445 = vpop.permute.xlu0 %444
      %446 = vrot.lane.b32.xlu0 %v423, 17
      %v447 = vpop.permute.xlu0 %446
      %v448 = vrot.slane %v433, 4
      %v449 = vrot.slane %v435, 4
      %v450 = vrot.slane %v437, 4
      %v451 = vrot.slane %v439, 4
      %v452 = vrot.slane %v441, 4
      %v453 = vrot.slane %v443, 4
      %v454 = vrot.slane %v445, 4
      %v455 = vrot.slane %v447, 4
      %v456 = vsel %vm317, %v448, %v449
      %vm457 = vcmask 138240
      %v458 = vsel %vm457, %v433, %v456
      %v459 = vsel %vm457, %v435, %v449
      %v460 = vsel %vm317, %v450, %v451
      %v461 = vsel %vm457, %v437, %v460
      %v462 = vsel %vm457, %v439, %v451
      %v463 = vsel %vm317, %v452, %v453
      %v464 = vsel %vm457, %v441, %v463
      %v465 = vsel %vm457, %v443, %v453
      %v466 = vsel %vm317, %v454, %v455
      %v467 = vsel %vm457, %v445, %v466
      %v468 = vsel %vm457, %v447, %v455
      %477 = vst [vmem:[#allocation3 + $0x60] sm:$0xff] %v458
      %478 = vst [vmem:[#allocation3 + $0x68] sm:$0xf] %v459
      %479 = vst [vmem:[#allocation3 + $0x6c] sm:$0xff] %v461
      %480 = vst [vmem:[#allocation3 + $0x74] sm:$0xf] %v462
      %481 = vst [vmem:[#allocation3 + $0x78] sm:$0xff] %v464
      %482 = vst [vmem:[#allocation3 + $0x80] sm:$0xf] %v465
      %483 = vst [vmem:[#allocation3 + $0x84] sm:$0xff] %v467
      %484 = vst [vmem:[#allocation3 + $0x8c] sm:$0xf] %v468
      %v485 = vld [vmem:[#allocation2] sm:$0xff]
      %v486 = vld [vmem:[#allocation2 + $0x8] sm:$0xff]
      %v487 = vld [vmem:[#allocation2 + $0x14] sm:$0xff]
      %v488 = vld [vmem:[#allocation2 + $0x1c] sm:$0xff]
      %v489 = vld [vmem:[#allocation2 + $0x28] sm:$0xff]
      %v490 = vld [vmem:[#allocation2 + $0x30] sm:$0xff]
      %v491 = vld [vmem:[#allocation2 + $0x3c] sm:$0xff]
      %v492 = vld [vmem:[#allocation2 + $0x44] sm:$0xff]
      %501 = vrot.lane.b32.xlu0 %v485, 1
      %v502 = vpop.permute.xlu0 %501
      %503 = vrot.lane.b32.xlu0 %v486, 1
      %v504 = vpop.permute.xlu0 %503
      %505 = vrot.lane.b32.xlu0 %v487, 1
      %v506 = vpop.permute.xlu0 %505
      %507 = vrot.lane.b32.xlu0 %v488, 1
      %v508 = vpop.permute.xlu0 %507
      %509 = vrot.lane.b32.xlu0 %v489, 1
      %v510 = vpop.permute.xlu0 %509
      %511 = vrot.lane.b32.xlu0 %v490, 1
      %v512 = vpop.permute.xlu0 %511
      %513 = vrot.lane.b32.xlu0 %v491, 1
      %v514 = vpop.permute.xlu0 %513
      %515 = vrot.lane.b32.xlu0 %v492, 1
      %v516 = vpop.permute.xlu0 %515
      %v517 = vrot.slane %v502, 4
      %v518 = vrot.slane %v504, 4
      %v519 = vrot.slane %v506, 4
      %v520 = vrot.slane %v508, 4
      %v521 = vrot.slane %v510, 4
      %v522 = vrot.slane %v512, 4
      %v523 = vrot.slane %v514, 4
      %v524 = vrot.slane %v516, 4
      %v525 = vsel %vm317, %v517, %v518
      %vm526 = vcmask 7168
      %v527 = vsel %vm526, %v502, %v525
      %v528 = vsel %vm526, %v504, %v518
      %v529 = vsel %vm317, %v519, %v520
      %v530 = vsel %vm526, %v506, %v529
      %v531 = vsel %vm526, %v508, %v520
      %v532 = vsel %vm317, %v521, %v522
      %v533 = vsel %vm526, %v510, %v532
      %v534 = vsel %vm526, %v512, %v522
      %v535 = vsel %vm317, %v523, %v524
      %v536 = vsel %vm526, %v514, %v535
      %v537 = vsel %vm526, %v516, %v524
      %546 = vst [vmem:[#allocation3 + $0x90] sm:$0xff] %v527
      %547 = vst [vmem:[#allocation3 + $0x98] sm:$0xf] %v528
      %548 = vst [vmem:[#allocation3 + $0x9c] sm:$0xff] %v530
      %549 = vst [vmem:[#allocation3 + $0xa4] sm:$0xf] %v531
      %550 = vst [vmem:[#allocation3 + $0xa8] sm:$0xff] %v533
      %551 = vst [vmem:[#allocation3 + $0xb0] sm:$0xf] %v534
      %552 = vst [vmem:[#allocation3 + $0xb4] sm:$0xff] %v536
      %553 = vst [vmem:[#allocation3 + $0xbc] sm:$0xf] %v537
      %v554 = vld [vmem:[#allocation2 + $0x4] sm:$0xff]
      %v555 = vld [vmem:[#allocation2 + $0xc] sm:$0xf]
      %v556 = vld [vmem:[#allocation2 + $0x18] sm:$0xff]
      %v557 = vld [vmem:[#allocation2 + $0x20] sm:$0xf]
      %v558 = vld [vmem:[#allocation2 + $0x2c] sm:$0xff]
      %v559 = vld [vmem:[#allocation2 + $0x34] sm:$0xf]
      %v560 = vld [vmem:[#allocation2 + $0x40] sm:$0xff]
      %v561 = vld [vmem:[#allocation2 + $0x48] sm:$0xf]
      %562 = vst [vmem:[#allocation3 + $0xc0] sm:$0xff] %v554
      %563 = vst [vmem:[#allocation3 + $0xc8] sm:$0xf] %v555
      %564 = vst [vmem:[#allocation3 + $0xcc] sm:$0xff] %v556
      %565 = vst [vmem:[#allocation3 + $0xd4] sm:$0xf] %v557
      %566 = vst [vmem:[#allocation3 + $0xd8] sm:$0xff] %v558
      %567 = vst [vmem:[#allocation3 + $0xe0] sm:$0xf] %v559
      %568 = vst [vmem:[#allocation3 + $0xe4] sm:$0xff] %v560
      %569 = vst [vmem:[#allocation3 + $0xec] sm:$0xf] %v561
      %v570 = vld [vmem:[#allocation2 + $0x4] sm:$0xff]
      %v571 = vld [vmem:[#allocation2 + $0xc] sm:$0xff]
      %v572 = vld [vmem:[#allocation2 + $0x18] sm:$0xff]
      %v573 = vld [vmem:[#allocation2 + $0x20] sm:$0xff]
      %v574 = vld [vmem:[#allocation2 + $0x2c] sm:$0xff]
      %v575 = vld [vmem:[#allocation2 + $0x34] sm:$0xff]
      %v576 = vld [vmem:[#allocation2 + $0x40] sm:$0xff]
      %v577 = vld [vmem:[#allocation2 + $0x48] sm:$0xff]
      %586 = vrot.lane.b32.xlu0 %v570, 127
      %v587 = vpop.permute.xlu0 %586
      %588 = vrot.lane.b32.xlu0 %v571, 127
      %v589 = vpop.permute.xlu0 %588
      %590 = vrot.lane.b32.xlu0 %v572, 127
      %v591 = vpop.permute.xlu0 %590
      %592 = vrot.lane.b32.xlu0 %v573, 127
      %v593 = vpop.permute.xlu0 %592
      %594 = vrot.lane.b32.xlu0 %v574, 127
      %v595 = vpop.permute.xlu0 %594
      %596 = vrot.lane.b32.xlu0 %v575, 127
      %v597 = vpop.permute.xlu0 %596
      %598 = vrot.lane.b32.xlu0 %v576, 127
      %v599 = vpop.permute.xlu0 %598
      %600 = vrot.lane.b32.xlu0 %v577, 127
      %v601 = vpop.permute.xlu0 %600
      %v602 = vrot.slane %v587, 4
      %v603 = vrot.slane %v589, 4
      %v604 = vrot.slane %v591, 4
      %v605 = vrot.slane %v593, 4
      %v606 = vrot.slane %v595, 4
      %v607 = vrot.slane %v597, 4
      %v608 = vrot.slane %v599, 4
      %v609 = vrot.slane %v601, 4
      %v610 = vsel %vm317, %v602, %v603
      %vm611 = vcmask 1039360
      %v612 = vsel %vm611, %v587, %v610
      %v613 = vsel %vm611, %v589, %v603
      %v614 = vsel %vm317, %v604, %v605
      %v615 = vsel %vm611, %v591, %v614
      %v616 = vsel %vm611, %v593, %v605
      %v617 = vsel %vm317, %v606, %v607
      %v618 = vsel %vm611, %v595, %v617
      %v619 = vsel %vm611, %v597, %v607
      %v620 = vsel %vm317, %v608, %v609
      %v621 = vsel %vm611, %v599, %v620
      %v622 = vsel %vm611, %v601, %v609
      %631 = vst [vmem:[#allocation3 + $0xf0] sm:$0xff] %v612
      %632 = vst [vmem:[#allocation3 + $0xf8] sm:$0xf] %v613
      %633 = vst [vmem:[#allocation3 + $0xfc] sm:$0xff] %v615
      %634 = vst [vmem:[#allocation3 + $0x104] sm:$0xf] %v616
      %635 = vst [vmem:[#allocation3 + $0x108] sm:$0xff] %v618
      %636 = vst [vmem:[#allocation3 + $0x110] sm:$0xf] %v619
      %637 = vst [vmem:[#allocation3 + $0x114] sm:$0xff] %v621
      %638 = vst [vmem:[#allocation3 + $0x11c] sm:$0xf] %v622
      %v639 = vld [vmem:[#allocation2 + $0x4] sm:$0xff]
      %v640 = vld [vmem:[#allocation2 + $0xc] sm:$0xff]
      %v641 = vld [vmem:[#allocation2 + $0x18] sm:$0xff]
      %v642 = vld [vmem:[#allocation2 + $0x20] sm:$0xff]
      %v643 = vld [vmem:[#allocation2 + $0x2c] sm:$0xff]
      %v644 = vld [vmem:[#allocation2 + $0x34] sm:$0xff]
      %v645 = vld [vmem:[#allocation2 + $0x40] sm:$0xff]
      %v646 = vld [vmem:[#allocation2 + $0x48] sm:$0xff]
      %655 = vrot.lane.b32.xlu0 %v639, 111
      %v656 = vpop.permute.xlu0 %655
      %657 = vrot.lane.b32.xlu0 %v640, 111
      %v658 = vpop.permute.xlu0 %657
      %659 = vrot.lane.b32.xlu0 %v641, 111
      %v660 = vpop.permute.xlu0 %659
      %661 = vrot.lane.b32.xlu0 %v642, 111
      %v662 = vpop.permute.xlu0 %661
      %663 = vrot.lane.b32.xlu0 %v643, 111
      %v664 = vpop.permute.xlu0 %663
      %665 = vrot.lane.b32.xlu0 %v644, 111
      %v666 = vpop.permute.xlu0 %665
      %667 = vrot.lane.b32.xlu0 %v645, 111
      %v668 = vpop.permute.xlu0 %667
      %669 = vrot.lane.b32.xlu0 %v646, 111
      %v670 = vpop.permute.xlu0 %669
      %v671 = vrot.slane %v656, 4
      %v672 = vrot.slane %v658, 4
      %v673 = vrot.slane %v660, 4
      %v674 = vrot.slane %v662, 4
      %v675 = vrot.slane %v664, 4
      %v676 = vrot.slane %v666, 4
      %v677 = vrot.slane %v668, 4
      %v678 = vrot.slane %v670, 4
      %v679 = vsel %vm317, %v671, %v672
      %vm680 = vcmask 908288
      %v681 = vsel %vm680, %v656, %v679
      %v682 = vsel %vm680, %v658, %v672
      %v683 = vsel %vm317, %v673, %v674
      %v684 = vsel %vm680, %v660, %v683
      %v685 = vsel %vm680, %v662, %v674
      %v686 = vsel %vm317, %v675, %v676
      %v687 = vsel %vm680, %v664, %v686
      %v688 = vsel %vm680, %v666, %v676
      %v689 = vsel %vm317, %v677, %v678
      %v690 = vsel %vm680, %v668, %v689
      %v691 = vsel %vm680, %v670, %v678
      %700 = vst [vmem:[#allocation3 + $0x120] sm:$0xff] %v681
      %701 = vst [vmem:[#allocation3 + $0x128] sm:$0xf] %v682
      %702 = vst [vmem:[#allocation3 + $0x12c] sm:$0xff] %v684
      %703 = vst [vmem:[#allocation3 + $0x134] sm:$0xf] %v685
      %704 = vst [vmem:[#allocation3 + $0x138] sm:$0xff] %v687
      %705 = vst [vmem:[#allocation3 + $0x140] sm:$0xf] %v688
      %706 = vst [vmem:[#allocation3 + $0x144] sm:$0xff] %v690
      %707 = vst [vmem:[#allocation3 + $0x14c] sm:$0xf] %v691
      %v708 = vld [vmem:[#allocation2 + $0x4] sm:$0xff]
      %v709 = vld [vmem:[#allocation2 + $0xc] sm:$0xff]
      %v710 = vld [vmem:[#allocation2 + $0x18] sm:$0xff]
      %v711 = vld [vmem:[#allocation2 + $0x20] sm:$0xff]
      %v712 = vld [vmem:[#allocation2 + $0x2c] sm:$0xff]
      %v713 = vld [vmem:[#allocation2 + $0x34] sm:$0xff]
      %v714 = vld [vmem:[#allocation2 + $0x40] sm:$0xff]
      %v715 = vld [vmem:[#allocation2 + $0x48] sm:$0xff]
      %724 = vrot.lane.b32.xlu0 %v708, 110
      %v725 = vpop.permute.xlu0 %724
      %726 = vrot.lane.b32.xlu0 %v709, 110
      %v727 = vpop.permute.xlu0 %726
      %728 = vrot.lane.b32.xlu0 %v710, 110
      %v729 = vpop.permute.xlu0 %728
      %730 = vrot.lane.b32.xlu0 %v711, 110
      %v731 = vpop.permute.xlu0 %730
      %732 = vrot.lane.b32.xlu0 %v712, 110
      %v733 = vpop.permute.xlu0 %732
      %734 = vrot.lane.b32.xlu0 %v713, 110
      %v735 = vpop.permute.xlu0 %734
      %736 = vrot.lane.b32.xlu0 %v714, 110
      %v737 = vpop.permute.xlu0 %736
      %738 = vrot.lane.b32.xlu0 %v715, 110
      %v739 = vpop.permute.xlu0 %738
      %v740 = vrot.slane %v725, 4
      %v741 = vrot.slane %v727, 4
      %v742 = vrot.slane %v729, 4
      %v743 = vrot.slane %v731, 4
      %v744 = vrot.slane %v733, 4
      %v745 = vrot.slane %v735, 4
      %v746 = vrot.slane %v737, 4
      %v747 = vrot.slane %v739, 4
      %v748 = vsel %vm317, %v740, %v741
      %vm749 = vcmask 900096
      %v750 = vsel %vm749, %v725, %v748
      %v751 = vsel %vm749, %v727, %v741
      %v752 = vsel %vm317, %v742, %v743
      %v753 = vsel %vm749, %v729, %v752
      %v754 = vsel %vm749, %v731, %v743
      %v755 = vsel %vm317, %v744, %v745
      %v756 = vsel %vm749, %v733, %v755
      %v757 = vsel %vm749, %v735, %v745
      %v758 = vsel %vm317, %v746, %v747
      %v759 = vsel %vm749, %v737, %v758
      %v760 = vsel %vm749, %v739, %v747
      %769 = vst [vmem:[#allocation3 + $0x150] sm:$0xff] %v750
      %770 = vst [vmem:[#allocation3 + $0x158] sm:$0xf] %v751
      %771 = vst [vmem:[#allocation3 + $0x15c] sm:$0xff] %v753
      %772 = vst [vmem:[#allocation3 + $0x164] sm:$0xf] %v754
      %773 = vst [vmem:[#allocation3 + $0x168] sm:$0xff] %v756
      %774 = vst [vmem:[#allocation3 + $0x170] sm:$0xf] %v757
      %775 = vst [vmem:[#allocation3 + $0x174] sm:$0xff] %v759
      %776 = vst [vmem:[#allocation3 + $0x17c] sm:$0xf] %v760
      %v777 = vld [vmem:[#allocation2 + $0x4] sm:$0xff]
      %v778 = vld [vmem:[#allocation2 + $0xc] sm:$0xff]
      %v779 = vld [vmem:[#allocation2 + $0x18] sm:$0xff]
      %v780 = vld [vmem:[#allocation2 + $0x20] sm:$0xff]
      %v781 = vld [vmem:[#allocation2 + $0x2c] sm:$0xff]
      %v782 = vld [vmem:[#allocation2 + $0x34] sm:$0xff]
      %v783 = vld [vmem:[#allocation2 + $0x40] sm:$0xff]
      %v784 = vld [vmem:[#allocation2 + $0x48] sm:$0xff]
      %793 = vrot.lane.b32.xlu0 %v777, 109
      %v794 = vpop.permute.xlu0 %793
      %795 = vrot.lane.b32.xlu0 %v778, 109
      %v796 = vpop.permute.xlu0 %795
      %797 = vrot.lane.b32.xlu0 %v779, 109
      %v798 = vpop.permute.xlu0 %797
      %799 = vrot.lane.b32.xlu0 %v780, 109
      %v800 = vpop.permute.xlu0 %799
      %801 = vrot.lane.b32.xlu0 %v781, 109
      %v802 = vpop.permute.xlu0 %801
      %803 = vrot.lane.b32.xlu0 %v782, 109
      %v804 = vpop.permute.xlu0 %803
      %805 = vrot.lane.b32.xlu0 %v783, 109
      %v806 = vpop.permute.xlu0 %805
      %807 = vrot.lane.b32.xlu0 %v784, 109
      %v808 = vpop.permute.xlu0 %807
      %v809 = vrot.slane %v794, 4
      %v810 = vrot.slane %v796, 4
      %v811 = vrot.slane %v798, 4
      %v812 = vrot.slane %v800, 4
      %v813 = vrot.slane %v802, 4
      %v814 = vrot.slane %v804, 4
      %v815 = vrot.slane %v806, 4
      %v816 = vrot.slane %v808, 4
      %v817 = vsel %vm317, %v809, %v810
      %vm818 = vcmask 891904
      %v819 = vsel %vm818, %v794, %v817
      %v820 = vsel %vm818, %v796, %v810
      %v821 = vsel %vm317, %v811, %v812
      %v822 = vsel %vm818, %v798, %v821
      %v823 = vsel %vm818, %v800, %v812
      %v824 = vsel %vm317, %v813, %v814
      %v825 = vsel %vm818, %v802, %v824
      %v826 = vsel %vm818, %v804, %v814
      %v827 = vsel %vm317, %v815, %v816
      %v828 = vsel %vm818, %v806, %v827
      %v829 = vsel %vm818, %v808, %v816
      %838 = vst [vmem:[#allocation3 + $0x180] sm:$0xff] %v819
      %839 = vst [vmem:[#allocation3 + $0x188] sm:$0xf] %v820
      %840 = vst [vmem:[#allocation3 + $0x18c] sm:$0xff] %v822
      %841 = vst [vmem:[#allocation3 + $0x194] sm:$0xf] %v823
      %842 = vst [vmem:[#allocation3 + $0x198] sm:$0xff] %v825
      %843 = vst [vmem:[#allocation3 + $0x1a0] sm:$0xf] %v826
      %844 = vst [vmem:[#allocation3 + $0x1a4] sm:$0xff] %v828
      %845 = vst [vmem:[#allocation3 + $0x1ac] sm:$0xf] %v829
      %v846 = vld [vmem:[%s1] sm:$0xff]
      %v847 = vld [vmem:[%s1 + $0x8] sm:$0xf]
      %v848 = vld [vmem:[%s1 + $0xc] sm:$0xff]
      %v849 = vld [vmem:[%s1 + $0x14] sm:$0xf]
      %v850 = vld [vmem:[%s1 + $0x18] sm:$0xff]
      %v851 = vld [vmem:[%s1 + $0x20] sm:$0xf]
      %v852 = vld [vmem:[%s1 + $0x24] sm:$0xff]
      %v853 = vld [vmem:[%s1 + $0x2c] sm:$0xf]
      %v854 = vld [vmem:[#allocation3] sm:$0xff]
      %v855 = vld [vmem:[#allocation3 + $0x8] sm:$0xf]
      %v856 = vld [vmem:[#allocation3 + $0xc] sm:$0xff]
      %v857 = vld [vmem:[#allocation3 + $0x14] sm:$0xf]
      %v858 = vld [vmem:[#allocation3 + $0x18] sm:$0xff]
      %v859 = vld [vmem:[#allocation3 + $0x20] sm:$0xf]
      %v860 = vld [vmem:[#allocation3 + $0x24] sm:$0xff]
      %v861 = vld [vmem:[#allocation3 + $0x2c] sm:$0xf]
      %v862 = vld [vmem:[#allocation3 + $0x30] sm:$0xff]
      %v863 = vld [vmem:[#allocation3 + $0x38] sm:$0xf]
      %v864 = vld [vmem:[#allocation3 + $0x3c] sm:$0xff]
      %v865 = vld [vmem:[#allocation3 + $0x44] sm:$0xf]
      %v866 = vld [vmem:[#allocation3 + $0x48] sm:$0xff]
      %v867 = vld [vmem:[#allocation3 + $0x50] sm:$0xf]
      %v868 = vld [vmem:[#allocation3 + $0x54] sm:$0xff]
      %v869 = vld [vmem:[#allocation3 + $0x5c] sm:$0xf]
      %v870 = vld [vmem:[#allocation3 + $0x60] sm:$0xff]
      %v871 = vld [vmem:[#allocation3 + $0x68] sm:$0xf]
      %v872 = vld [vmem:[#allocation3 + $0x6c] sm:$0xff]
      %v873 = vld [vmem:[#allocation3 + $0x74] sm:$0xf]
      %v874 = vld [vmem:[#allocation3 + $0x78] sm:$0xff]
      %v875 = vld [vmem:[#allocation3 + $0x80] sm:$0xf]
      %v876 = vld [vmem:[#allocation3 + $0x84] sm:$0xff]
      %v877 = vld [vmem:[#allocation3 + $0x8c] sm:$0xf]
      %v878 = vld [vmem:[#allocation3 + $0x90] sm:$0xff]
      %v879 = vld [vmem:[#allocation3 + $0x98] sm:$0xf]
      %v880 = vld [vmem:[#allocation3 + $0x9c] sm:$0xff]
      %v881 = vld [vmem:[#allocation3 + $0xa4] sm:$0xf]
      %v882 = vld [vmem:[#allocation3 + $0xa8] sm:$0xff]
      %v883 = vld [vmem:[#allocation3 + $0xb0] sm:$0xf]
      %v884 = vld [vmem:[#allocation3 + $0xb4] sm:$0xff]
      %v885 = vld [vmem:[#allocation3 + $0xbc] sm:$0xf]
      %v886 = vld [vmem:[#allocation3 + $0xc0] sm:$0xff]
      %v887 = vld [vmem:[#allocation3 + $0xc8] sm:$0xf]
      %v888 = vld [vmem:[#allocation3 + $0xcc] sm:$0xff]
      %v889 = vld [vmem:[#allocation3 + $0xd4] sm:$0xf]
      %v890 = vld [vmem:[#allocation3 + $0xd8] sm:$0xff]
      %v891 = vld [vmem:[#allocation3 + $0xe0] sm:$0xf]
      %v892 = vld [vmem:[#allocation3 + $0xe4] sm:$0xff]
      %v893 = vld [vmem:[#allocation3 + $0xec] sm:$0xf]
      %v894 = vld [vmem:[#allocation3 + $0xf0] sm:$0xff]
      %v895 = vld [vmem:[#allocation3 + $0xf8] sm:$0xf]
      %v896 = vld [vmem:[#allocation3 + $0xfc] sm:$0xff]
      %v897 = vld [vmem:[#allocation3 + $0x104] sm:$0xf]
      %v898 = vld [vmem:[#allocation3 + $0x108] sm:$0xff]
      %v899 = vld [vmem:[#allocation3 + $0x110] sm:$0xf]
      %v900 = vld [vmem:[#allocation3 + $0x114] sm:$0xff]
      %v901 = vld [vmem:[#allocation3 + $0x11c] sm:$0xf]
      %v902 = vld [vmem:[#allocation3 + $0x120] sm:$0xff]
      %v903 = vld [vmem:[#allocation3 + $0x128] sm:$0xf]
      %v904 = vld [vmem:[#allocation3 + $0x12c] sm:$0xff]
      %v905 = vld [vmem:[#allocation3 + $0x134] sm:$0xf]
      %v906 = vld [vmem:[#allocation3 + $0x138] sm:$0xff]
      %v907 = vld [vmem:[#allocation3 + $0x140] sm:$0xf]
      %v908 = vld [vmem:[#allocation3 + $0x144] sm:$0xff]
      %v909 = vld [vmem:[#allocation3 + $0x14c] sm:$0xf]
      %v910 = vld [vmem:[#allocation3 + $0x150] sm:$0xff]
      %v911 = vld [vmem:[#allocation3 + $0x158] sm:$0xf]
      %v912 = vld [vmem:[#allocation3 + $0x15c] sm:$0xff]
      %v913 = vld [vmem:[#allocation3 + $0x164] sm:$0xf]
      %v914 = vld [vmem:[#allocation3 + $0x168] sm:$0xff]
      %v915 = vld [vmem:[#allocation3 + $0x170] sm:$0xf]
      %v916 = vld [vmem:[#allocation3 + $0x174] sm:$0xff]
      %v917 = vld [vmem:[#allocation3 + $0x17c] sm:$0xf]
      %v918 = vld [vmem:[#allocation3 + $0x180] sm:$0xff]
      %v919 = vld [vmem:[#allocation3 + $0x188] sm:$0xf]
      %v920 = vld [vmem:[#allocation3 + $0x18c] sm:$0xff]
      %v921 = vld [vmem:[#allocation3 + $0x194] sm:$0xf]
      %v922 = vld [vmem:[#allocation3 + $0x198] sm:$0xff]
      %v923 = vld [vmem:[#allocation3 + $0x1a0] sm:$0xf]
      %v924 = vld [vmem:[#allocation3 + $0x1a4] sm:$0xff]
      %v925 = vld [vmem:[#allocation3 + $0x1ac] sm:$0xf]
      %v934 = vunpack.c.l.b16 %v846
      %v935 = vunpack.c.h.b16 %v846
      %v936 = vunpack.c.l.b16 %v847
      %v937 = vunpack.c.l.b16 %v848
      %v938 = vunpack.c.h.b16 %v848
      %v939 = vunpack.c.l.b16 %v849
      %v940 = vunpack.c.l.b16 %v850
      %v941 = vunpack.c.h.b16 %v850
      %v942 = vunpack.c.l.b16 %v851
      %v943 = vunpack.c.l.b16 %v852
      %v944 = vunpack.c.h.b16 %v852
      %v945 = vunpack.c.l.b16 %v853
      %v946 = vpack.c.b16 %v937, %v934
      %v947 = vpack.c.b16 %v938, %v935
      %v948 = vpack.c.b16 %v939, %v936
      %v949 = vpack.c.b16 %v943, %v940
      %v950 = vpack.c.b16 %v944, %v941
      %v951 = vpack.c.b16 %v945, %v942
      %v1028 = vunpack.c.l.b16 %v854
      %v1029 = vunpack.c.h.b16 %v854
      %v1030 = vunpack.c.l.b16 %v855
      %v1031 = vunpack.c.l.b16 %v856
      %v1032 = vunpack.c.h.b16 %v856
      %v1033 = vunpack.c.l.b16 %v857
      %v1034 = vunpack.c.l.b16 %v858
      %v1035 = vunpack.c.h.b16 %v858
      %v1036 = vunpack.c.l.b16 %v859
      %v1037 = vunpack.c.l.b16 %v860
      %v1038 = vunpack.c.h.b16 %v860
      %v1039 = vunpack.c.l.b16 %v861
      %v1040 = vunpack.c.l.b16 %v862
      %v1041 = vunpack.c.h.b16 %v862
      %v1042 = vunpack.c.l.b16 %v863
      %v1043 = vunpack.c.l.b16 %v864
      %v1044 = vunpack.c.h.b16 %v864
      %v1045 = vunpack.c.l.b16 %v865
      %v1046 = vunpack.c.l.b16 %v866
      %v1047 = vunpack.c.h.b16 %v866
      %v1048 = vunpack.c.l.b16 %v867
      %v1049 = vunpack.c.l.b16 %v868
      %v1050 = vunpack.c.h.b16 %v868
      %v1051 = vunpack.c.l.b16 %v869
      %v1052 = vunpack.c.l.b16 %v870
      %v1053 = vunpack.c.h.b16 %v870
      %v1054 = vunpack.c.l.b16 %v871
      %v1055 = vunpack.c.l.b16 %v872
      %v1056 = vunpack.c.h.b16 %v872
      %v1057 = vunpack.c.l.b16 %v873
      %v1058 = vunpack.c.l.b16 %v874
      %v1059 = vunpack.c.h.b16 %v874
      %v1060 = vunpack.c.l.b16 %v875
      %v1061 = vunpack.c.l.b16 %v876
      %v1062 = vunpack.c.h.b16 %v876
      %v1063 = vunpack.c.l.b16 %v877
      %v1064 = vunpack.c.l.b16 %v878
      %v1065 = vunpack.c.h.b16 %v878
      %v1066 = vunpack.c.l.b16 %v879
      %v1067 = vunpack.c.l.b16 %v880
      %v1068 = vunpack.c.h.b16 %v880
      %v1069 = vunpack.c.l.b16 %v881
      %v1070 = vunpack.c.l.b16 %v882
      %v1071 = vunpack.c.h.b16 %v882
      %v1072 = vunpack.c.l.b16 %v883
      %v1073 = vunpack.c.l.b16 %v884
      %v1074 = vunpack.c.h.b16 %v884
      %v1075 = vunpack.c.l.b16 %v885
      %v1076 = vunpack.c.l.b16 %v886
      %v1077 = vunpack.c.h.b16 %v886
      %v1078 = vunpack.c.l.b16 %v887
      %v1079 = vunpack.c.l.b16 %v888
      %v1080 = vunpack.c.h.b16 %v888
      %v1081 = vunpack.c.l.b16 %v889
      %v1082 = vunpack.c.l.b16 %v890
      %v1083 = vunpack.c.h.b16 %v890
      %v1084 = vunpack.c.l.b16 %v891
      %v1085 = vunpack.c.l.b16 %v892
      %v1086 = vunpack.c.h.b16 %v892
      %v1087 = vunpack.c.l.b16 %v893
      %v1088 = vunpack.c.l.b16 %v894
      %v1089 = vunpack.c.h.b16 %v894
      %v1090 = vunpack.c.l.b16 %v895
      %v1091 = vunpack.c.l.b16 %v896
      %v1092 = vunpack.c.h.b16 %v896
      %v1093 = vunpack.c.l.b16 %v897
      %v1094 = vunpack.c.l.b16 %v898
      %v1095 = vunpack.c.h.b16 %v898
      %v1096 = vunpack.c.l.b16 %v899
      %v1097 = vunpack.c.l.b16 %v900
      %v1098 = vunpack.c.h.b16 %v900
      %v1099 = vunpack.c.l.b16 %v901
      %v1100 = vunpack.c.l.b16 %v902
      %v1101 = vunpack.c.h.b16 %v902
      %v1102 = vunpack.c.l.b16 %v903
      %v1103 = vunpack.c.l.b16 %v904
      %v1104 = vunpack.c.h.b16 %v904
      %v1105 = vunpack.c.l.b16 %v905
      %v1106 = vunpack.c.l.b16 %v906
      %v1107 = vunpack.c.h.b16 %v906
      %v1108 = vunpack.c.l.b16 %v907
      %v1109 = vunpack.c.l.b16 %v908
      %v1110 = vunpack.c.h.b16 %v908
      %v1111 = vunpack.c.l.b16 %v909
      %v1112 = vunpack.c.l.b16 %v910
      %v1113 = vunpack.c.h.b16 %v910
      %v1114 = vunpack.c.l.b16 %v911
      %v1115 = vunpack.c.l.b16 %v912
      %v1116 = vunpack.c.h.b16 %v912
      %v1117 = vunpack.c.l.b16 %v913
      %v1118 = vunpack.c.l.b16 %v914
      %v1119 = vunpack.c.h.b16 %v914
      %v1120 = vunpack.c.l.b16 %v915
      %v1121 = vunpack.c.l.b16 %v916
      %v1122 = vunpack.c.h.b16 %v916
      %v1123 = vunpack.c.l.b16 %v917
      %v1124 = vunpack.c.l.b16 %v918
      %v1125 = vunpack.c.h.b16 %v918
      %v1126 = vunpack.c.l.b16 %v919
      %v1127 = vunpack.c.l.b16 %v920
      %v1128 = vunpack.c.h.b16 %v920
      %v1129 = vunpack.c.l.b16 %v921
      %v1130 = vunpack.c.l.b16 %v922
      %v1131 = vunpack.c.h.b16 %v922
      %v1132 = vunpack.c.l.b16 %v923
      %v1133 = vunpack.c.l.b16 %v924
      %v1134 = vunpack.c.h.b16 %v924
      %v1135 = vunpack.c.l.b16 %v925
      %v1136 = vpack.c.b16 %v1031, %v1028
      %v1137 = vpack.c.b16 %v1032, %v1029
      %v1138 = vpack.c.b16 %v1033, %v1030
      %v1139 = vpack.c.b16 %v1037, %v1034
      %v1140 = vpack.c.b16 %v1038, %v1035
      %v1141 = vpack.c.b16 %v1039, %v1036
      %v1142 = vpack.c.b16 %v1043, %v1040
      %v1143 = vpack.c.b16 %v1044, %v1041
      %v1144 = vpack.c.b16 %v1045, %v1042
      %v1145 = vpack.c.b16 %v1049, %v1046
      %v1146 = vpack.c.b16 %v1050, %v1047
      %v1147 = vpack.c.b16 %v1051, %v1048
      %v1148 = vpack.c.b16 %v1055, %v1052
      %v1149 = vpack.c.b16 %v1056, %v1053
      %v1150 = vpack.c.b16 %v1057, %v1054
      %v1151 = vpack.c.b16 %v1061, %v1058
      %v1152 = vpack.c.b16 %v1062, %v1059
      %v1153 = vpack.c.b16 %v1063, %v1060
      %v1154 = vpack.c.b16 %v1067, %v1064
      %v1155 = vpack.c.b16 %v1068, %v1065
      %v1156 = vpack.c.b16 %v1069, %v1066
      %v1157 = vpack.c.b16 %v1073, %v1070
      %v1158 = vpack.c.b16 %v1074, %v1071
      %v1159 = vpack.c.b16 %v1075, %v1072
      %v1160 = vpack.c.b16 %v1079, %v1076
      %v1161 = vpack.c.b16 %v1080, %v1077
      %v1162 = vpack.c.b16 %v1081, %v1078
      %v1163 = vpack.c.b16 %v1085, %v1082
      %v1164 = vpack.c.b16 %v1086, %v1083
      %v1165 = vpack.c.b16 %v1087, %v1084
      %v1166 = vpack.c.b16 %v1091, %v1088
      %v1167 = vpack.c.b16 %v1092, %v1089
      %v1168 = vpack.c.b16 %v1093, %v1090
      %v1169 = vpack.c.b16 %v1097, %v1094
      %v1170 = vpack.c.b16 %v1098, %v1095
      %v1171 = vpack.c.b16 %v1099, %v1096
      %v1172 = vpack.c.b16 %v1103, %v1100
      %v1173 = vpack.c.b16 %v1104, %v1101
      %v1174 = vpack.c.b16 %v1105, %v1102
      %v1175 = vpack.c.b16 %v1109, %v1106
      %v1176 = vpack.c.b16 %v1110, %v1107
      %v1177 = vpack.c.b16 %v1111, %v1108
      %v1178 = vpack.c.b16 %v1115, %v1112
      %v1179 = vpack.c.b16 %v1116, %v1113
      %v1180 = vpack.c.b16 %v1117, %v1114
      %v1181 = vpack.c.b16 %v1121, %v1118
      %v1182 = vpack.c.b16 %v1122, %v1119
      %v1183 = vpack.c.b16 %v1123, %v1120
      %v1184 = vpack.c.b16 %v1127, %v1124
      %v1185 = vpack.c.b16 %v1128, %v1125
      %v1186 = vpack.c.b16 %v1129, %v1126
      %v1187 = vpack.c.b16 %v1133, %v1130
      %v1188 = vpack.c.b16 %v1134, %v1131
      %v1189 = vpack.c.b16 %v1135, %v1132
      %vm1244 = vcmask 261120
      %v1246 = vsel %vm1244, %v948, 0
      %v1249 = vsel %vm1244, %v951, 0
      %1251 = vmatpush.bf16.msra.mxu0 %v1157
      %1252 = vmatpush.bf16.msra.mxu0 %v1154
      %1253 = vmatpush.bf16.msra.mxu0 %v1151
      %1254 = vmatpush.bf16.msra.mxu0 %v1148
      %1255 = vmatpush.bf16.msra.mxu0 %v1145
      %1256 = vmatpush.bf16.msra.mxu0 %v1142
      %1257 = vmatpush.bf16.msra.mxu0 %v1139
      %1258 = vmatpush.bf16.msra.mxu0 %v1136
      %1259 = vmatmul.bf16.gmra.mxu0 %v946
      %v1260 = vpop.f32.mrf.mxu0
      %v1261 = vadd.f32 0.0, %v1260
      %v1262 = vpop.f32.mrf.mxu0
      %v1263 = vadd.f32 0.0, %v1262
      %1264 = vmatmul.bf16.gmra.mxu0 %v949
      %v1265 = vpop.f32.mrf.mxu0
      %v1266 = vadd.f32 0.0, %v1265
      %v1267 = vpop.f32.mrf.mxu0
      %v1268 = vadd.f32 0.0, %v1267
      %1269 = vdwg.mxu0
      %1270 = vmatpush.bf16.msra.mxu0 %v1181
      %1271 = vmatpush.bf16.msra.mxu0 %v1178
      %1272 = vmatpush.bf16.msra.mxu0 %v1175
      %1273 = vmatpush.bf16.msra.mxu0 %v1172
      %1274 = vmatpush.bf16.msra.mxu0 %v1169
      %1275 = vmatpush.bf16.msra.mxu0 %v1166
      %1276 = vmatpush.bf16.msra.mxu0 %v1163
      %1277 = vmatpush.bf16.msra.mxu0 %v1160
      %1278 = vmatmul.bf16.gmra.mxu0 %v947
      %v1279 = vpop.f32.mrf.mxu0
      %v1280 = vadd.f32 %v1261, %v1279
      %v1281 = vpop.f32.mrf.mxu0
      %v1282 = vadd.f32 %v1263, %v1281
      %1283 = vmatmul.bf16.gmra.mxu0 %v950
      %v1284 = vpop.f32.mrf.mxu0
      %v1285 = vadd.f32 %v1266, %v1284
      %v1286 = vpop.f32.mrf.mxu0
      %v1287 = vadd.f32 %v1268, %v1286
      %1288 = vdwg.mxu0
      %1289 = vmatpush.bf16.msra.mxu0 0
      %1290 = vmatpush.bf16.msra.mxu0 0
      %1291 = vmatpush.bf16.msra.mxu0 0
      %1292 = vmatpush.bf16.msra.mxu0 0
      %1293 = vmatpush.bf16.msra.mxu0 0
      %1294 = vmatpush.bf16.msra.mxu0 0
      %1295 = vmatpush.bf16.msra.mxu0 %v1187
      %1296 = vmatpush.bf16.msra.mxu0 %v1184
      %1297 = vmatmul.bf16.gmra.mxu0 %v1246
      %v1298 = vpop.f32.mrf.mxu0
      %v1299 = vadd.f32 %v1280, %v1298
      %v1300 = vpop.f32.mrf.mxu0
      %v1301 = vadd.f32 %v1282, %v1300
      %1302 = vmatmul.bf16.gmra.mxu0 %v1249
      %v1303 = vpop.f32.mrf.mxu0
      %v1304 = vadd.f32 %v1285, %v1303
      %v1305 = vpop.f32.mrf.mxu0
      %v1306 = vadd.f32 %v1287, %v1305
      %1307 = vdwg.mxu0
      %1308 = vmatpush.bf16.msra.mxu0 %v1158
      %1309 = vmatpush.bf16.msra.mxu0 %v1155
      %1310 = vmatpush.bf16.msra.mxu0 %v1152
      %1311 = vmatpush.bf16.msra.mxu0 %v1149
      %1312 = vmatpush.bf16.msra.mxu0 %v1146
      %1313 = vmatpush.bf16.msra.mxu0 %v1143
      %1314 = vmatpush.bf16.msra.mxu0 %v1140
      %1315 = vmatpush.bf16.msra.mxu0 %v1137
      %1316 = vmatmul.bf16.gmra.mxu0 %v946
      %v1317 = vpop.f32.mrf.mxu0
      %v1318 = vadd.f32 0.0, %v1317
      %v1319 = vpop.f32.mrf.mxu0
      %v1320 = vadd.f32 0.0, %v1319
      %1321 = vmatmul.bf16.gmra.mxu0 %v949
      %v1322 = vpop.f32.mrf.mxu0
      %v1323 = vadd.f32 0.0, %v1322
      %v1324 = vpop.f32.mrf.mxu0
      %v1325 = vadd.f32 0.0, %v1324
      %1326 = vdwg.mxu0
      %1327 = vmatpush.bf16.msra.mxu0 %v1182
      %1328 = vmatpush.bf16.msra.mxu0 %v1179
      %1329 = vmatpush.bf16.msra.mxu0 %v1176
      %1330 = vmatpush.bf16.msra.mxu0 %v1173
      %1331 = vmatpush.bf16.msra.mxu0 %v1170
      %1332 = vmatpush.bf16.msra.mxu0 %v1167
      %1333 = vmatpush.bf16.msra.mxu0 %v1164
      %1334 = vmatpush.bf16.msra.mxu0 %v1161
      %1335 = vmatmul.bf16.gmra.mxu0 %v947
      %v1336 = vpop.f32.mrf.mxu0
      %v1337 = vadd.f32 %v1318, %v1336
      %v1338 = vpop.f32.mrf.mxu0
      %v1339 = vadd.f32 %v1320, %v1338
      %1340 = vmatmul.bf16.gmra.mxu0 %v950
      %v1341 = vpop.f32.mrf.mxu0
      %v1342 = vadd.f32 %v1323, %v1341
      %v1343 = vpop.f32.mrf.mxu0
      %v1344 = vadd.f32 %v1325, %v1343
      %1345 = vdwg.mxu0
      %1346 = vmatpush.bf16.msra.mxu0 0
      %1347 = vmatpush.bf16.msra.mxu0 0
      %1348 = vmatpush.bf16.msra.mxu0 0
      %1349 = vmatpush.bf16.msra.mxu0 0
      %1350 = vmatpush.bf16.msra.mxu0 0
      %1351 = vmatpush.bf16.msra.mxu0 0
      %1352 = vmatpush.bf16.msra.mxu0 %v1188
      %1353 = vmatpush.bf16.msra.mxu0 %v1185
      %1354 = vmatmul.bf16.gmra.mxu0 %v1246
      %v1355 = vpop.f32.mrf.mxu0
      %v1356 = vadd.f32 %v1337, %v1355
      %v1357 = vpop.f32.mrf.mxu0
      %v1358 = vadd.f32 %v1339, %v1357
      %1359 = vmatmul.bf16.gmra.mxu0 %v1249
      %v1360 = vpop.f32.mrf.mxu0
      %v1361 = vadd.f32 %v1342, %v1360
      %v1362 = vpop.f32.mrf.mxu0
      %v1363 = vadd.f32 %v1344, %v1362
      %1364 = vdwg.mxu0
      %1365 = vmatpush.bf16.msra.mxu0 %v1159
      %1366 = vmatpush.bf16.msra.mxu0 %v1156
      %1367 = vmatpush.bf16.msra.mxu0 %v1153
      %1368 = vmatpush.bf16.msra.mxu0 %v1150
      %1369 = vmatpush.bf16.msra.mxu0 %v1147
      %1370 = vmatpush.bf16.msra.mxu0 %v1144
      %1371 = vmatpush.bf16.msra.mxu0 %v1141
      %1372 = vmatpush.bf16.msra.mxu0 %v1138
      %1373 = vmatmul.bf16.gmra.mxu0 %v946
      %v1374 = vpop.f32.mrf.mxu0
      %v1375 = vadd.f32 0.0, %v1374
      %v1376 = vpop.f32.mrf.mxu0
      %v1377 = vadd.f32 0.0, %v1376
      %1378 = vmatmul.bf16.gmra.mxu0 %v949
      %v1379 = vpop.f32.mrf.mxu0
      %v1380 = vadd.f32 0.0, %v1379
      %v1381 = vpop.f32.mrf.mxu0
      %v1382 = vadd.f32 0.0, %v1381
      %1383 = vdwg.mxu0
      %1384 = vmatpush.bf16.msra.mxu0 %v1183
      %1385 = vmatpush.bf16.msra.mxu0 %v1180
      %1386 = vmatpush.bf16.msra.mxu0 %v1177
      %1387 = vmatpush.bf16.msra.mxu0 %v1174
      %1388 = vmatpush.bf16.msra.mxu0 %v1171
      %1389 = vmatpush.bf16.msra.mxu0 %v1168
      %1390 = vmatpush.bf16.msra.mxu0 %v1165
      %1391 = vmatpush.bf16.msra.mxu0 %v1162
      %1392 = vmatmul.bf16.gmra.mxu0 %v947
      %v1393 = vpop.f32.mrf.mxu0
      %v1394 = vadd.f32 %v1375, %v1393
      %v1395 = vpop.f32.mrf.mxu0
      %v1396 = vadd.f32 %v1377, %v1395
      %1397 = vmatmul.bf16.gmra.mxu0 %v950
      %v1398 = vpop.f32.mrf.mxu0
      %v1399 = vadd.f32 %v1380, %v1398
      %v1400 = vpop.f32.mrf.mxu0
      %v1401 = vadd.f32 %v1382, %v1400
      %1402 = vdwg.mxu0
      %1403 = vmatpush.bf16.msra.mxu0 0
      %1404 = vmatpush.bf16.msra.mxu0 0
      %1405 = vmatpush.bf16.msra.mxu0 0
      %1406 = vmatpush.bf16.msra.mxu0 0
      %1407 = vmatpush.bf16.msra.mxu0 0
      %1408 = vmatpush.bf16.msra.mxu0 0
      %1409 = vmatpush.bf16.msra.mxu0 %v1189
      %1410 = vmatpush.bf16.msra.mxu0 %v1186
      %1411 = vmatmul.bf16.gmra.mxu0 %v1246
      %v1412 = vpop.f32.mrf.mxu0
      %v1413 = vadd.f32 %v1394, %v1412
      %v1414 = vpop.f32.mrf.mxu0
      %v1415 = vadd.f32 %v1396, %v1414
      %1416 = vmatmul.bf16.gmra.mxu0 %v1249
      %v1417 = vpop.f32.mrf.mxu0
      %v1418 = vadd.f32 %v1399, %v1417
      %v1419 = vpop.f32.mrf.mxu0
      %v1420 = vadd.f32 %v1401, %v1419
      %1421 = vdwg.mxu0
      %v1422 = vld [vmem:[%s4] sm:$0xff]
      %v1423 = vld [vmem:[%s4 + $0x8] sm:$0xff]
      %v1424 = vld [vmem:[%s4 + $0x10] sm:$0xff]
      %v1425 = vld [vmem:[%s4 + $0x18] sm:$0xff]
      %1427 = vset.pattern.permute.xlu0 0
      %1428 = vperm.xlu0 %1427, %v1422
      %v1429 = vpop.permute.xlu0 %1428
      %1432 = vset.pattern.permute.xlu0 0
      %1433 = vperm.xlu0 %1432, %v1423
      %v1434 = vpop.permute.xlu0 %1433
      %1437 = vset.pattern.permute.xlu0 0
      %1438 = vperm.xlu0 %1437, %v1424
      %v1439 = vpop.permute.xlu0 %1438
      %1442 = vset.pattern.permute.xlu0 0
      %1443 = vperm.xlu0 %1442, %v1425
      %v1444 = vpop.permute.xlu0 %1443
      %v1446 = vmul.f32 %v1429, %v1299
      %v1447 = vmul.f32 %v1429, %v1356
      %v1448 = vmul.f32 %v1429, %v1413
      %v1449 = vmul.f32 %v1434, %v1301
      %v1450 = vmul.f32 %v1434, %v1358
      %v1451 = vmul.f32 %v1434, %v1415
      %v1452 = vmul.f32 %v1439, %v1304
      %v1453 = vmul.f32 %v1439, %v1361
      %v1454 = vmul.f32 %v1439, %v1418
      %v1455 = vmul.f32 %v1444, %v1306
      %v1456 = vmul.f32 %v1444, %v1363
      %v1457 = vmul.f32 %v1444, %v1420
      %v1458 = vld [vmem:[%s5] sm:$0xff]
      %v1459 = vld [vmem:[%s5 + $0x8] sm:$0xff]
      %v1460 = vld [vmem:[%s5 + $0x10] sm:$0xff]
      %v1461 = vld [vmem:[%s5 + $0x18] sm:$0xff]
      %1463 = vset.pattern.permute.xlu0 0
      %1464 = vperm.xlu0 %1463, %v1458
      %v1465 = vpop.permute.xlu0 %1464
      %1468 = vset.pattern.permute.xlu0 0
      %1469 = vperm.xlu0 %1468, %v1459
      %v1470 = vpop.permute.xlu0 %1469
      %1473 = vset.pattern.permute.xlu0 0
      %1474 = vperm.xlu0 %1473, %v1460
      %v1475 = vpop.permute.xlu0 %1474
      %1478 = vset.pattern.permute.xlu0 0
      %1479 = vperm.xlu0 %1478, %v1461
      %v1480 = vpop.permute.xlu0 %1479
      %v1482 = vadd.f32 %v1446, %v1465
      %v1483 = vadd.f32 %v1447, %v1465
      %v1484 = vadd.f32 %v1448, %v1465
      %v1485 = vadd.f32 %v1449, %v1470
      %v1486 = vadd.f32 %v1450, %v1470
      %v1487 = vadd.f32 %v1451, %v1470
      %v1488 = vadd.f32 %v1452, %v1475
      %v1489 = vadd.f32 %v1453, %v1475
      %v1490 = vadd.f32 %v1454, %v1475
      %v1491 = vadd.f32 %v1455, %v1480
      %v1492 = vadd.f32 %v1456, %v1480
      %v1493 = vadd.f32 %v1457, %v1480
      %vm1494 = vcmp.gt.f32.partialorder %v1482, 0.0
      %vm1495 = vcmp.gt.f32.partialorder %v1483, 0.0
      %vm1496 = vcmp.gt.f32.partialorder %v1484, 0.0
      %vm1497 = vcmp.gt.f32.partialorder %v1485, 0.0
      %vm1498 = vcmp.gt.f32.partialorder %v1486, 0.0
      %vm1499 = vcmp.gt.f32.partialorder %v1487, 0.0
      %vm1500 = vcmp.gt.f32.partialorder %v1488, 0.0
      %vm1501 = vcmp.gt.f32.partialorder %v1489, 0.0
      %vm1502 = vcmp.gt.f32.partialorder %v1490, 0.0
      %vm1503 = vcmp.gt.f32.partialorder %v1491, 0.0
      %vm1504 = vcmp.gt.f32.partialorder %v1492, 0.0
      %vm1505 = vcmp.gt.f32.partialorder %v1493, 0.0
      %v1506 = vmul.f32 %v1482, 0.2
      %v1507 = vmul.f32 %v1483, 0.2
      %v1508 = vmul.f32 %v1484, 0.2
      %v1509 = vmul.f32 %v1485, 0.2
      %v1510 = vmul.f32 %v1486, 0.2
      %v1511 = vmul.f32 %v1487, 0.2
      %v1512 = vmul.f32 %v1488, 0.2
      %v1513 = vmul.f32 %v1489, 0.2
      %v1514 = vmul.f32 %v1490, 0.2
      %v1515 = vmul.f32 %v1491, 0.2
      %v1516 = vmul.f32 %v1492, 0.2
      %v1517 = vmul.f32 %v1493, 0.2
      %v1518 = vsel %vm1494, %v1482, %v1506
      %v1519 = vsel %vm1495, %v1483, %v1507
      %v1520 = vsel %vm1496, %v1484, %v1508
      %v1521 = vsel %vm1497, %v1485, %v1509
      %v1522 = vsel %vm1498, %v1486, %v1510
      %v1523 = vsel %vm1499, %v1487, %v1511
      %v1524 = vsel %vm1500, %v1488, %v1512
      %v1525 = vsel %vm1501, %v1489, %v1513
      %v1526 = vsel %vm1502, %v1490, %v1514
      %v1527 = vsel %vm1503, %v1491, %v1515
      %v1528 = vsel %vm1504, %v1492, %v1516
      %v1529 = vsel %vm1505, %v1493, %v1517
      %1530 = vst [vmem:[#allocation4] sm:$0xf] 0
      %1531 = vst [vmem:[#allocation4 + $0x14] sm:$0xf] 0
      %1532 = vst [vmem:[#allocation4 + $0x28] sm:$0xf] 0
      %1533 = vst [vmem:[#allocation4 + $0x3c] sm:$0xf] 0
      %1534 = vst [vmem:[#allocation4 + $0x10] sm:$0xf] 0
      %1535 = vst [vmem:[#allocation4 + $0x24] sm:$0xf] 0
      %1536 = vst [vmem:[#allocation4 + $0x38] sm:$0xf] 0
      %1537 = vst [vmem:[#allocation4 + $0x4c] sm:$0xf] 0
      %v1538 = vld [vmem:[%s3] sm:$0x7]
      %v1540 = vperm.slane %v1538, 0
      %v1541 = vperm.slane %v1538, 1
      %v1542 = vperm.slane %v1538, 2
      %v1546 = vmul.f32 %v1518, %v1540
      %v1547 = vmul.f32 %v1519, %v1541
      %v1548 = vmul.f32 %v1520, %v1542
      %v1549 = vmul.f32 %v1521, %v1540
      %v1550 = vmul.f32 %v1522, %v1541
      %v1551 = vmul.f32 %v1523, %v1542
      %v1552 = vmul.f32 %v1524, %v1540
      %v1553 = vmul.f32 %v1525, %v1541
      %v1554 = vmul.f32 %v1526, %v1542
      %v1555 = vmul.f32 %v1527, %v1540
      %v1556 = vmul.f32 %v1528, %v1541
      %v1557 = vmul.f32 %v1529, %v1542
      %v1558 = vpack.c.bf16 %v1547, %v1546
      %v1559 = vpack.c.bf16 %v1548, %v1548
      %v1560 = vpack.c.bf16 %v1550, %v1549
      %v1561 = vpack.c.bf16 %v1551, %v1551
      %v1562 = vpack.c.bf16 %v1553, %v1552
      %v1563 = vpack.c.bf16 %v1554, %v1554
      %v1564 = vpack.c.bf16 %v1556, %v1555
      %v1565 = vpack.c.bf16 %v1557, %v1557
      %1566 = vst [vmem:[#allocation4 + $0x4] sm:$0xff] %v1558
      %1567 = vst [vmem:[#allocation4 + $0xc] sm:$0xf] %v1559
      %1568 = vst [vmem:[#allocation4 + $0x18] sm:$0xff] %v1560
      %1569 = vst [vmem:[#allocation4 + $0x20] sm:$0xf] %v1561
      %1570 = vst [vmem:[#allocation4 + $0x2c] sm:$0xff] %v1562
      %1571 = vst [vmem:[#allocation4 + $0x34] sm:$0xf] %v1563
      %1572 = vst [vmem:[#allocation4 + $0x40] sm:$0xff] %v1564
      %1573 = vst [vmem:[#allocation4 + $0x48] sm:$0xf] %v1565
      %v1574 = vld [vmem:[#allocation4] sm:$0xff]
      %v1575 = vld [vmem:[#allocation4 + $0x8] sm:$0xff]
      %v1576 = vld [vmem:[#allocation4 + $0x14] sm:$0xff]
      %v1577 = vld [vmem:[#allocation4 + $0x1c] sm:$0xff]
      %v1578 = vld [vmem:[#allocation4 + $0x28] sm:$0xff]
      %v1579 = vld [vmem:[#allocation4 + $0x30] sm:$0xff]
      %v1580 = vld [vmem:[#allocation4 + $0x3c] sm:$0xff]
      %v1581 = vld [vmem:[#allocation4 + $0x44] sm:$0xff]
      %1590 = vrot.lane.b32.xlu0 %v1574, 19
      %v1591 = vpop.permute.xlu0 %1590
      %1592 = vrot.lane.b32.xlu0 %v1575, 19
      %v1593 = vpop.permute.xlu0 %1592
      %1594 = vrot.lane.b32.xlu0 %v1576, 19
      %v1595 = vpop.permute.xlu0 %1594
      %1596 = vrot.lane.b32.xlu0 %v1577, 19
      %v1597 = vpop.permute.xlu0 %1596
      %1598 = vrot.lane.b32.xlu0 %v1578, 19
      %v1599 = vpop.permute.xlu0 %1598
      %1600 = vrot.lane.b32.xlu0 %v1579, 19
      %v1601 = vpop.permute.xlu0 %1600
      %1602 = vrot.lane.b32.xlu0 %v1580, 19
      %v1603 = vpop.permute.xlu0 %1602
      %1604 = vrot.lane.b32.xlu0 %v1581, 19
      %v1605 = vpop.permute.xlu0 %1604
      %v1606 = vrot.slane %v1591, 4
      %v1607 = vrot.slane %v1593, 4
      %v1608 = vrot.slane %v1595, 4
      %v1609 = vrot.slane %v1597, 4
      %v1610 = vrot.slane %v1599, 4
      %v1611 = vrot.slane %v1601, 4
      %v1612 = vrot.slane %v1603, 4
      %v1613 = vrot.slane %v1605, 4
      %v1614 = vsel %vm317, %v1606, %v1607
      %v1615 = vsel %vm319, %v1591, %v1614
      %v1616 = vsel %vm319, %v1593, %v1607
      %v1617 = vsel %vm317, %v1608, %v1609
      %v1618 = vsel %vm319, %v1595, %v1617
      %v1619 = vsel %vm319, %v1597, %v1609
      %v1620 = vsel %vm317, %v1610, %v1611
      %v1621 = vsel %vm319, %v1599, %v1620
      %v1622 = vsel %vm319, %v1601, %v1611
      %v1623 = vsel %vm317, %v1612, %v1613
      %v1624 = vsel %vm319, %v1603, %v1623
      %v1625 = vsel %vm319, %v1605, %v1613
      %1634 = vst [vmem:[#allocation5] sm:$0xff] %v1615
      %1635 = vst [vmem:[#allocation5 + $0x8] sm:$0xf] %v1616
      %1636 = vst [vmem:[#allocation5 + $0xc] sm:$0xff] %v1618
      %1637 = vst [vmem:[#allocation5 + $0x14] sm:$0xf] %v1619
      %1638 = vst [vmem:[#allocation5 + $0x18] sm:$0xff] %v1621
      %1639 = vst [vmem:[#allocation5 + $0x20] sm:$0xf] %v1622
      %1640 = vst [vmem:[#allocation5 + $0x24] sm:$0xff] %v1624
      %1641 = vst [vmem:[#allocation5 + $0x2c] sm:$0xf] %v1625
      %v1642 = vld [vmem:[#allocation4] sm:$0xff]
      %v1643 = vld [vmem:[#allocation4 + $0x8] sm:$0xff]
      %v1644 = vld [vmem:[#allocation4 + $0x14] sm:$0xff]
      %v1645 = vld [vmem:[#allocation4 + $0x1c] sm:$0xff]
      %v1646 = vld [vmem:[#allocation4 + $0x28] sm:$0xff]
      %v1647 = vld [vmem:[#allocation4 + $0x30] sm:$0xff]
      %v1648 = vld [vmem:[#allocation4 + $0x3c] sm:$0xff]
      %v1649 = vld [vmem:[#allocation4 + $0x44] sm:$0xff]
      %1658 = vrot.lane.b32.xlu0 %v1642, 18
      %v1659 = vpop.permute.xlu0 %1658
      %1660 = vrot.lane.b32.xlu0 %v1643, 18
      %v1661 = vpop.permute.xlu0 %1660
      %1662 = vrot.lane.b32.xlu0 %v1644, 18
      %v1663 = vpop.permute.xlu0 %1662
      %1664 = vrot.lane.b32.xlu0 %v1645, 18
      %v1665 = vpop.permute.xlu0 %1664
      %1666 = vrot.lane.b32.xlu0 %v1646, 18
      %v1667 = vpop.permute.xlu0 %1666
      %1668 = vrot.lane.b32.xlu0 %v1647, 18
      %v1669 = vpop.permute.xlu0 %1668
      %1670 = vrot.lane.b32.xlu0 %v1648, 18
      %v1671 = vpop.permute.xlu0 %1670
      %1672 = vrot.lane.b32.xlu0 %v1649, 18
      %v1673 = vpop.permute.xlu0 %1672
      %v1674 = vrot.slane %v1659, 4
      %v1675 = vrot.slane %v1661, 4
      %v1676 = vrot.slane %v1663, 4
      %v1677 = vrot.slane %v1665, 4
      %v1678 = vrot.slane %v1667, 4
      %v1679 = vrot.slane %v1669, 4
      %v1680 = vrot.slane %v1671, 4
      %v1681 = vrot.slane %v1673, 4
      %v1682 = vsel %vm317, %v1674, %v1675
      %v1683 = vsel %vm388, %v1659, %v1682
      %v1684 = vsel %vm388, %v1661, %v1675
      %v1685 = vsel %vm317, %v1676, %v1677
      %v1686 = vsel %vm388, %v1663, %v1685
      %v1687 = vsel %vm388, %v1665, %v1677
      %v1688 = vsel %vm317, %v1678, %v1679
      %v1689 = vsel %vm388, %v1667, %v1688
      %v1690 = vsel %vm388, %v1669, %v1679
      %v1691 = vsel %vm317, %v1680, %v1681
      %v1692 = vsel %vm388, %v1671, %v1691
      %v1693 = vsel %vm388, %v1673, %v1681
      %1702 = vst [vmem:[#allocation5 + $0x30] sm:$0xff] %v1683
      %1703 = vst [vmem:[#allocation5 + $0x38] sm:$0xf] %v1684
      %1704 = vst [vmem:[#allocation5 + $0x3c] sm:$0xff] %v1686
      %1705 = vst [vmem:[#allocation5 + $0x44] sm:$0xf] %v1687
      %1706 = vst [vmem:[#allocation5 + $0x48] sm:$0xff] %v1689
      %1707 = vst [vmem:[#allocation5 + $0x50] sm:$0xf] %v1690
      %1708 = vst [vmem:[#allocation5 + $0x54] sm:$0xff] %v1692
      %1709 = vst [vmem:[#allocation5 + $0x5c] sm:$0xf] %v1693
      %v1710 = vld [vmem:[#allocation4] sm:$0xff]
      %v1711 = vld [vmem:[#allocation4 + $0x8] sm:$0xff]
      %v1712 = vld [vmem:[#allocation4 + $0x14] sm:$0xff]
      %v1713 = vld [vmem:[#allocation4 + $0x1c] sm:$0xff]
      %v1714 = vld [vmem:[#allocation4 + $0x28] sm:$0xff]
      %v1715 = vld [vmem:[#allocation4 + $0x30] sm:$0xff]
      %v1716 = vld [vmem:[#allocation4 + $0x3c] sm:$0xff]
      %v1717 = vld [vmem:[#allocation4 + $0x44] sm:$0xff]
      %1726 = vrot.lane.b32.xlu0 %v1710, 17
      %v1727 = vpop.permute.xlu0 %1726
      %1728 = vrot.lane.b32.xlu0 %v1711, 17
      %v1729 = vpop.permute.xlu0 %1728
      %1730 = vrot.lane.b32.xlu0 %v1712, 17
      %v1731 = vpop.permute.xlu0 %1730
      %1732 = vrot.lane.b32.xlu0 %v1713, 17
      %v1733 = vpop.permute.xlu0 %1732
      %1734 = vrot.lane.b32.xlu0 %v1714, 17
      %v1735 = vpop.permute.xlu0 %1734
      %1736 = vrot.lane.b32.xlu0 %v1715, 17
      %v1737 = vpop.permute.xlu0 %1736
      %1738 = vrot.lane.b32.xlu0 %v1716, 17
      %v1739 = vpop.permute.xlu0 %1738
      %1740 = vrot.lane.b32.xlu0 %v1717, 17
      %v1741 = vpop.permute.xlu0 %1740
      %v1742 = vrot.slane %v1727, 4
      %v1743 = vrot.slane %v1729, 4
      %v1744 = vrot.slane %v1731, 4
      %v1745 = vrot.slane %v1733, 4
      %v1746 = vrot.slane %v1735, 4
      %v1747 = vrot.slane %v1737, 4
      %v1748 = vrot.slane %v1739, 4
      %v1749 = vrot.slane %v1741, 4
      %v1750 = vsel %vm317, %v1742, %v1743
      %v1751 = vsel %vm457, %v1727, %v1750
      %v1752 = vsel %vm457, %v1729, %v1743
      %v1753 = vsel %vm317, %v1744, %v1745
      %v1754 = vsel %vm457, %v1731, %v1753
      %v1755 = vsel %vm457, %v1733, %v1745
      %v1756 = vsel %vm317, %v1746, %v1747
      %v1757 = vsel %vm457, %v1735, %v1756
      %v1758 = vsel %vm457, %v1737, %v1747
      %v1759 = vsel %vm317, %v1748, %v1749
      %v1760 = vsel %vm457, %v1739, %v1759
      %v1761 = vsel %vm457, %v1741, %v1749
      %1770 = vst [vmem:[#allocation5 + $0x60] sm:$0xff] %v1751
      %1771 = vst [vmem:[#allocation5 + $0x68] sm:$0xf] %v1752
      %1772 = vst [vmem:[#allocation5 + $0x6c] sm:$0xff] %v1754
      %1773 = vst [vmem:[#allocation5 + $0x74] sm:$0xf] %v1755
      %1774 = vst [vmem:[#allocation5 + $0x78] sm:$0xff] %v1757
      %1775 = vst [vmem:[#allocation5 + $0x80] sm:$0xf] %v1758
      %1776 = vst [vmem:[#allocation5 + $0x84] sm:$0xff] %v1760
      %1777 = vst [vmem:[#allocation5 + $0x8c] sm:$0xf] %v1761
      %v1778 = vld [vmem:[#allocation4] sm:$0xff]
      %v1779 = vld [vmem:[#allocation4 + $0x8] sm:$0xff]
      %v1780 = vld [vmem:[#allocation4 + $0x14] sm:$0xff]
      %v1781 = vld [vmem:[#allocation4 + $0x1c] sm:$0xff]
      %v1782 = vld [vmem:[#allocation4 + $0x28] sm:$0xff]
      %v1783 = vld [vmem:[#allocation4 + $0x30] sm:$0xff]
      %v1784 = vld [vmem:[#allocation4 + $0x3c] sm:$0xff]
      %v1785 = vld [vmem:[#allocation4 + $0x44] sm:$0xff]
      %1794 = vrot.lane.b32.xlu0 %v1778, 1
      %v1795 = vpop.permute.xlu0 %1794
      %1796 = vrot.lane.b32.xlu0 %v1779, 1
      %v1797 = vpop.permute.xlu0 %1796
      %1798 = vrot.lane.b32.xlu0 %v1780, 1
      %v1799 = vpop.permute.xlu0 %1798
      %1800 = vrot.lane.b32.xlu0 %v1781, 1
      %v1801 = vpop.permute.xlu0 %1800
      %1802 = vrot.lane.b32.xlu0 %v1782, 1
      %v1803 = vpop.permute.xlu0 %1802
      %1804 = vrot.lane.b32.xlu0 %v1783, 1
      %v1805 = vpop.permute.xlu0 %1804
      %1806 = vrot.lane.b32.xlu0 %v1784, 1
      %v1807 = vpop.permute.xlu0 %1806
      %1808 = vrot.lane.b32.xlu0 %v1785, 1
      %v1809 = vpop.permute.xlu0 %1808
      %v1810 = vrot.slane %v1795, 4
      %v1811 = vrot.slane %v1797, 4
      %v1812 = vrot.slane %v1799, 4
      %v1813 = vrot.slane %v1801, 4
      %v1814 = vrot.slane %v1803, 4
      %v1815 = vrot.slane %v1805, 4
      %v1816 = vrot.slane %v1807, 4
      %v1817 = vrot.slane %v1809, 4
      %v1818 = vsel %vm317, %v1810, %v1811
      %v1819 = vsel %vm526, %v1795, %v1818
      %v1820 = vsel %vm526, %v1797, %v1811
      %v1821 = vsel %vm317, %v1812, %v1813
      %v1822 = vsel %vm526, %v1799, %v1821
      %v1823 = vsel %vm526, %v1801, %v1813
      %v1824 = vsel %vm317, %v1814, %v1815
      %v1825 = vsel %vm526, %v1803, %v1824
      %v1826 = vsel %vm526, %v1805, %v1815
      %v1827 = vsel %vm317, %v1816, %v1817
      %v1828 = vsel %vm526, %v1807, %v1827
      %v1829 = vsel %vm526, %v1809, %v1817
      %1838 = vst [vmem:[#allocation5 + $0x90] sm:$0xff] %v1819
      %1839 = vst [vmem:[#allocation5 + $0x98] sm:$0xf] %v1820
      %1840 = vst [vmem:[#allocation5 + $0x9c] sm:$0xff] %v1822
      %1841 = vst [vmem:[#allocation5 + $0xa4] sm:$0xf] %v1823
      %1842 = vst [vmem:[#allocation5 + $0xa8] sm:$0xff] %v1825
      %1843 = vst [vmem:[#allocation5 + $0xb0] sm:$0xf] %v1826
      %1844 = vst [vmem:[#allocation5 + $0xb4] sm:$0xff] %v1828
      %1845 = vst [vmem:[#allocation5 + $0xbc] sm:$0xf] %v1829
      %v1846 = vld [vmem:[#allocation4 + $0x4] sm:$0xff]
      %v1847 = vld [vmem:[#allocation4 + $0xc] sm:$0xf]
      %v1848 = vld [vmem:[#allocation4 + $0x18] sm:$0xff]
      %v1849 = vld [vmem:[#allocation4 + $0x20] sm:$0xf]
      %v1850 = vld [vmem:[#allocation4 + $0x2c] sm:$0xff]
      %v1851 = vld [vmem:[#allocation4 + $0x34] sm:$0xf]
      %v1852 = vld [vmem:[#allocation4 + $0x40] sm:$0xff]
      %v1853 = vld [vmem:[#allocation4 + $0x48] sm:$0xf]
      %1854 = vst [vmem:[#allocation5 + $0xc0] sm:$0xff] %v1846
      %1855 = vst [vmem:[#allocation5 + $0xc8] sm:$0xf] %v1847
      %1856 = vst [vmem:[#allocation5 + $0xcc] sm:$0xff] %v1848
      %1857 = vst [vmem:[#allocation5 + $0xd4] sm:$0xf] %v1849
      %1858 = vst [vmem:[#allocation5 + $0xd8] sm:$0xff] %v1850
      %1859 = vst [vmem:[#allocation5 + $0xe0] sm:$0xf] %v1851
      %1860 = vst [vmem:[#allocation5 + $0xe4] sm:$0xff] %v1852
      %1861 = vst [vmem:[#allocation5 + $0xec] sm:$0xf] %v1853
      %v1862 = vld [vmem:[#allocation4 + $0x4] sm:$0xff]
      %v1863 = vld [vmem:[#allocation4 + $0xc] sm:$0xff]
      %v1864 = vld [vmem:[#allocation4 + $0x18] sm:$0xff]
      %v1865 = vld [vmem:[#allocation4 + $0x20] sm:$0xff]
      %v1866 = vld [vmem:[#allocation4 + $0x2c] sm:$0xff]
      %v1867 = vld [vmem:[#allocation4 + $0x34] sm:$0xff]
      %v1868 = vld [vmem:[#allocation4 + $0x40] sm:$0xff]
      %v1869 = vld [vmem:[#allocation4 + $0x48] sm:$0xff]
      %1878 = vrot.lane.b32.xlu0 %v1862, 127
      %v1879 = vpop.permute.xlu0 %1878
      %1880 = vrot.lane.b32.xlu0 %v1863, 127
      %v1881 = vpop.permute.xlu0 %1880
      %1882 = vrot.lane.b32.xlu0 %v1864, 127
      %v1883 = vpop.permute.xlu0 %1882
      %1884 = vrot.lane.b32.xlu0 %v1865, 127
      %v1885 = vpop.permute.xlu0 %1884
      %1886 = vrot.lane.b32.xlu0 %v1866, 127
      %v1887 = vpop.permute.xlu0 %1886
      %1888 = vrot.lane.b32.xlu0 %v1867, 127
      %v1889 = vpop.permute.xlu0 %1888
      %1890 = vrot.lane.b32.xlu0 %v1868, 127
      %v1891 = vpop.permute.xlu0 %1890
      %1892 = vrot.lane.b32.xlu0 %v1869, 127
      %v1893 = vpop.permute.xlu0 %1892
      %v1894 = vrot.slane %v1879, 4
      %v1895 = vrot.slane %v1881, 4
      %v1896 = vrot.slane %v1883, 4
      %v1897 = vrot.slane %v1885, 4
      %v1898 = vrot.slane %v1887, 4
      %v1899 = vrot.slane %v1889, 4
      %v1900 = vrot.slane %v1891, 4
      %v1901 = vrot.slane %v1893, 4
      %v1902 = vsel %vm317, %v1894, %v1895
      %v1903 = vsel %vm611, %v1879, %v1902
      %v1904 = vsel %vm611, %v1881, %v1895
      %v1905 = vsel %vm317, %v1896, %v1897
      %v1906 = vsel %vm611, %v1883, %v1905
      %v1907 = vsel %vm611, %v1885, %v1897
      %v1908 = vsel %vm317, %v1898, %v1899
      %v1909 = vsel %vm611, %v1887, %v1908
      %v1910 = vsel %vm611, %v1889, %v1899
      %v1911 = vsel %vm317, %v1900, %v1901
      %v1912 = vsel %vm611, %v1891, %v1911
      %v1913 = vsel %vm611, %v1893, %v1901
      %1922 = vst [vmem:[#allocation5 + $0xf0] sm:$0xff] %v1903
      %1923 = vst [vmem:[#allocation5 + $0xf8] sm:$0xf] %v1904
      %1924 = vst [vmem:[#allocation5 + $0xfc] sm:$0xff] %v1906
      %1925 = vst [vmem:[#allocation5 + $0x104] sm:$0xf] %v1907
      %1926 = vst [vmem:[#allocation5 + $0x108] sm:$0xff] %v1909
      %1927 = vst [vmem:[#allocation5 + $0x110] sm:$0xf] %v1910
      %1928 = vst [vmem:[#allocation5 + $0x114] sm:$0xff] %v1912
      %1929 = vst [vmem:[#allocation5 + $0x11c] sm:$0xf] %v1913
      %v1930 = vld [vmem:[#allocation4 + $0x4] sm:$0xff]
      %v1931 = vld [vmem:[#allocation4 + $0xc] sm:$0xff]
      %v1932 = vld [vmem:[#allocation4 + $0x18] sm:$0xff]
      %v1933 = vld [vmem:[#allocation4 + $0x20] sm:$0xff]
      %v1934 = vld [vmem:[#allocation4 + $0x2c] sm:$0xff]
      %v1935 = vld [vmem:[#allocation4 + $0x34] sm:$0xff]
      %v1936 = vld [vmem:[#allocation4 + $0x40] sm:$0xff]
      %v1937 = vld [vmem:[#allocation4 + $0x48] sm:$0xff]
      %1946 = vrot.lane.b32.xlu0 %v1930, 111
      %v1947 = vpop.permute.xlu0 %1946
      %1948 = vrot.lane.b32.xlu0 %v1931, 111
      %v1949 = vpop.permute.xlu0 %1948
      %1950 = vrot.lane.b32.xlu0 %v1932, 111
      %v1951 = vpop.permute.xlu0 %1950
      %1952 = vrot.lane.b32.xlu0 %v1933, 111
      %v1953 = vpop.permute.xlu0 %1952
      %1954 = vrot.lane.b32.xlu0 %v1934, 111
      %v1955 = vpop.permute.xlu0 %1954
      %1956 = vrot.lane.b32.xlu0 %v1935, 111
      %v1957 = vpop.permute.xlu0 %1956
      %1958 = vrot.lane.b32.xlu0 %v1936, 111
      %v1959 = vpop.permute.xlu0 %1958
      %1960 = vrot.lane.b32.xlu0 %v1937, 111
      %v1961 = vpop.permute.xlu0 %1960
      %v1962 = vrot.slane %v1947, 4
      %v1963 = vrot.slane %v1949, 4
      %v1964 = vrot.slane %v1951, 4
      %v1965 = vrot.slane %v1953, 4
      %v1966 = vrot.slane %v1955, 4
      %v1967 = vrot.slane %v1957, 4
      %v1968 = vrot.slane %v1959, 4
      %v1969 = vrot.slane %v1961, 4
      %v1970 = vsel %vm317, %v1962, %v1963
      %v1971 = vsel %vm680, %v1947, %v1970
      %v1972 = vsel %vm680, %v1949, %v1963
      %v1973 = vsel %vm317, %v1964, %v1965
      %v1974 = vsel %vm680, %v1951, %v1973
      %v1975 = vsel %vm680, %v1953, %v1965
      %v1976 = vsel %vm317, %v1966, %v1967
      %v1977 = vsel %vm680, %v1955, %v1976
      %v1978 = vsel %vm680, %v1957, %v1967
      %v1979 = vsel %vm317, %v1968, %v1969
      %v1980 = vsel %vm680, %v1959, %v1979
      %v1981 = vsel %vm680, %v1961, %v1969
      %1990 = vst [vmem:[#allocation5 + $0x120] sm:$0xff] %v1971
      %1991 = vst [vmem:[#allocation5 + $0x128] sm:$0xf] %v1972
      %1992 = vst [vmem:[#allocation5 + $0x12c] sm:$0xff] %v1974
      %1993 = vst [vmem:[#allocation5 + $0x134] sm:$0xf] %v1975
      %1994 = vst [vmem:[#allocation5 + $0x138] sm:$0xff] %v1977
      %1995 = vst [vmem:[#allocation5 + $0x140] sm:$0xf] %v1978
      %1996 = vst [vmem:[#allocation5 + $0x144] sm:$0xff] %v1980
      %1997 = vst [vmem:[#allocation5 + $0x14c] sm:$0xf] %v1981
      %v1998 = vld [vmem:[#allocation4 + $0x4] sm:$0xff]
      %v1999 = vld [vmem:[#allocation4 + $0xc] sm:$0xff]
      %v2000 = vld [vmem:[#allocation4 + $0x18] sm:$0xff]
      %v2001 = vld [vmem:[#allocation4 + $0x20] sm:$0xff]
      %v2002 = vld [vmem:[#allocation4 + $0x2c] sm:$0xff]
      %v2003 = vld [vmem:[#allocation4 + $0x34] sm:$0xff]
      %v2004 = vld [vmem:[#allocation4 + $0x40] sm:$0xff]
      %v2005 = vld [vmem:[#allocation4 + $0x48] sm:$0xff]
      %2014 = vrot.lane.b32.xlu0 %v1998, 110
      %v2015 = vpop.permute.xlu0 %2014
      %2016 = vrot.lane.b32.xlu0 %v1999, 110
      %v2017 = vpop.permute.xlu0 %2016
      %2018 = vrot.lane.b32.xlu0 %v2000, 110
      %v2019 = vpop.permute.xlu0 %2018
      %2020 = vrot.lane.b32.xlu0 %v2001, 110
      %v2021 = vpop.permute.xlu0 %2020
      %2022 = vrot.lane.b32.xlu0 %v2002, 110
      %v2023 = vpop.permute.xlu0 %2022
      %2024 = vrot.lane.b32.xlu0 %v2003, 110
      %v2025 = vpop.permute.xlu0 %2024
      %2026 = vrot.lane.b32.xlu0 %v2004, 110
      %v2027 = vpop.permute.xlu0 %2026
      %2028 = vrot.lane.b32.xlu0 %v2005, 110
      %v2029 = vpop.permute.xlu0 %2028
      %v2030 = vrot.slane %v2015, 4
      %v2031 = vrot.slane %v2017, 4
      %v2032 = vrot.slane %v2019, 4
      %v2033 = vrot.slane %v2021, 4
      %v2034 = vrot.slane %v2023, 4
      %v2035 = vrot.slane %v2025, 4
      %v2036 = vrot.slane %v2027, 4
      %v2037 = vrot.slane %v2029, 4
      %v2038 = vsel %vm317, %v2030, %v2031
      %v2039 = vsel %vm749, %v2015, %v2038
      %v2040 = vsel %vm749, %v2017, %v2031
      %v2041 = vsel %vm317, %v2032, %v2033
      %v2042 = vsel %vm749, %v2019, %v2041
      %v2043 = vsel %vm749, %v2021, %v2033
      %v2044 = vsel %vm317, %v2034, %v2035
      %v2045 = vsel %vm749, %v2023, %v2044
      %v2046 = vsel %vm749, %v2025, %v2035
      %v2047 = vsel %vm317, %v2036, %v2037
      %v2048 = vsel %vm749, %v2027, %v2047
      %v2049 = vsel %vm749, %v2029, %v2037
      %2058 = vst [vmem:[#allocation5 + $0x150] sm:$0xff] %v2039
      %2059 = vst [vmem:[#allocation5 + $0x158] sm:$0xf] %v2040
      %2060 = vst [vmem:[#allocation5 + $0x15c] sm:$0xff] %v2042
      %2061 = vst [vmem:[#allocation5 + $0x164] sm:$0xf] %v2043
      %2062 = vst [vmem:[#allocation5 + $0x168] sm:$0xff] %v2045
      %2063 = vst [vmem:[#allocation5 + $0x170] sm:$0xf] %v2046
      %2064 = vst [vmem:[#allocation5 + $0x174] sm:$0xff] %v2048
      %2065 = vst [vmem:[#allocation5 + $0x17c] sm:$0xf] %v2049
      %v2066 = vld [vmem:[#allocation4 + $0x4] sm:$0xff]
      %v2067 = vld [vmem:[#allocation4 + $0xc] sm:$0xff]
      %v2068 = vld [vmem:[#allocation4 + $0x18] sm:$0xff]
      %v2069 = vld [vmem:[#allocation4 + $0x20] sm:$0xff]
      %v2070 = vld [vmem:[#allocation4 + $0x2c] sm:$0xff]
      %v2071 = vld [vmem:[#allocation4 + $0x34] sm:$0xff]
      %v2072 = vld [vmem:[#allocation4 + $0x40] sm:$0xff]
      %v2073 = vld [vmem:[#allocation4 + $0x48] sm:$0xff]
      %2082 = vrot.lane.b32.xlu0 %v2066, 109
      %v2083 = vpop.permute.xlu0 %2082
      %2084 = vrot.lane.b32.xlu0 %v2067, 109
      %v2085 = vpop.permute.xlu0 %2084
      %2086 = vrot.lane.b32.xlu0 %v2068, 109
      %v2087 = vpop.permute.xlu0 %2086
      %2088 = vrot.lane.b32.xlu0 %v2069, 109
      %v2089 = vpop.permute.xlu0 %2088
      %2090 = vrot.lane.b32.xlu0 %v2070, 109
      %v2091 = vpop.permute.xlu0 %2090
      %2092 = vrot.lane.b32.xlu0 %v2071, 109
      %v2093 = vpop.permute.xlu0 %2092
      %2094 = vrot.lane.b32.xlu0 %v2072, 109
      %v2095 = vpop.permute.xlu0 %2094
      %2096 = vrot.lane.b32.xlu0 %v2073, 109
      %v2097 = vpop.permute.xlu0 %2096
      %v2098 = vrot.slane %v2083, 4
      %v2099 = vrot.slane %v2085, 4
      %v2100 = vrot.slane %v2087, 4
      %v2101 = vrot.slane %v2089, 4
      %v2102 = vrot.slane %v2091, 4
      %v2103 = vrot.slane %v2093, 4
      %v2104 = vrot.slane %v2095, 4
      %v2105 = vrot.slane %v2097, 4
      %v2106 = vsel %vm317, %v2098, %v2099
      %v2107 = vsel %vm818, %v2083, %v2106
      %v2108 = vsel %vm818, %v2085, %v2099
      %v2109 = vsel %vm317, %v2100, %v2101
      %v2110 = vsel %vm818, %v2087, %v2109
      %v2111 = vsel %vm818, %v2089, %v2101
      %v2112 = vsel %vm317, %v2102, %v2103
      %v2113 = vsel %vm818, %v2091, %v2112
      %v2114 = vsel %vm818, %v2093, %v2103
      %v2115 = vsel %vm317, %v2104, %v2105
      %v2116 = vsel %vm818, %v2095, %v2115
      %v2117 = vsel %vm818, %v2097, %v2105
      %2126 = vst [vmem:[#allocation5 + $0x180] sm:$0xff] %v2107
      %2127 = vst [vmem:[#allocation5 + $0x188] sm:$0xf] %v2108
      %2128 = vst [vmem:[#allocation5 + $0x18c] sm:$0xff] %v2110
      %2129 = vst [vmem:[#allocation5 + $0x194] sm:$0xf] %v2111
      %2130 = vst [vmem:[#allocation5 + $0x198] sm:$0xff] %v2113
      %2131 = vst [vmem:[#allocation5 + $0x1a0] sm:$0xf] %v2114
      %2132 = vst [vmem:[#allocation5 + $0x1a4] sm:$0xff] %v2116
      %2133 = vst [vmem:[#allocation5 + $0x1ac] sm:$0xf] %v2117
      %v2134 = vld [vmem:[%s2] sm:$0xff]
      %v2135 = vld [vmem:[%s2 + $0x8] sm:$0xf]
      %v2136 = vld [vmem:[%s2 + $0xc] sm:$0xff]
      %v2137 = vld [vmem:[%s2 + $0x14] sm:$0xf]
      %v2138 = vld [vmem:[%s2 + $0x18] sm:$0xff]
      %v2139 = vld [vmem:[%s2 + $0x20] sm:$0xf]
      %v2140 = vld [vmem:[%s2 + $0x24] sm:$0xff]
      %v2141 = vld [vmem:[%s2 + $0x2c] sm:$0xf]
      %v2142 = vld [vmem:[#allocation5] sm:$0xff]
      %v2143 = vld [vmem:[#allocation5 + $0x8] sm:$0xf]
      %v2144 = vld [vmem:[#allocation5 + $0xc] sm:$0xff]
      %v2145 = vld [vmem:[#allocation5 + $0x14] sm:$0xf]
      %v2146 = vld [vmem:[#allocation5 + $0x18] sm:$0xff]
      %v2147 = vld [vmem:[#allocation5 + $0x20] sm:$0xf]
      %v2148 = vld [vmem:[#allocation5 + $0x24] sm:$0xff]
      %v2149 = vld [vmem:[#allocation5 + $0x2c] sm:$0xf]
      %v2150 = vld [vmem:[#allocation5 + $0x30] sm:$0xff]
      %v2151 = vld [vmem:[#allocation5 + $0x38] sm:$0xf]
      %v2152 = vld [vmem:[#allocation5 + $0x3c] sm:$0xff]
      %v2153 = vld [vmem:[#allocation5 + $0x44] sm:$0xf]
      %v2154 = vld [vmem:[#allocation5 + $0x48] sm:$0xff]
      %v2155 = vld [vmem:[#allocation5 + $0x50] sm:$0xf]
      %v2156 = vld [vmem:[#allocation5 + $0x54] sm:$0xff]
      %v2157 = vld [vmem:[#allocation5 + $0x5c] sm:$0xf]
      %v2158 = vld [vmem:[#allocation5 + $0x60] sm:$0xff]
      %v2159 = vld [vmem:[#allocation5 + $0x68] sm:$0xf]
      %v2160 = vld [vmem:[#allocation5 + $0x6c] sm:$0xff]
      %v2161 = vld [vmem:[#allocation5 + $0x74] sm:$0xf]
      %v2162 = vld [vmem:[#allocation5 + $0x78] sm:$0xff]
      %v2163 = vld [vmem:[#allocation5 + $0x80] sm:$0xf]
      %v2164 = vld [vmem:[#allocation5 + $0x84] sm:$0xff]
      %v2165 = vld [vmem:[#allocation5 + $0x8c] sm:$0xf]
      %v2166 = vld [vmem:[#allocation5 + $0x90] sm:$0xff]
      %v2167 = vld [vmem:[#allocation5 + $0x98] sm:$0xf]
      %v2168 = vld [vmem:[#allocation5 + $0x9c] sm:$0xff]
      %v2169 = vld [vmem:[#allocation5 + $0xa4] sm:$0xf]
      %v2170 = vld [vmem:[#allocation5 + $0xa8] sm:$0xff]
      %v2171 = vld [vmem:[#allocation5 + $0xb0] sm:$0xf]
      %v2172 = vld [vmem:[#allocation5 + $0xb4] sm:$0xff]
      %v2173 = vld [vmem:[#allocation5 + $0xbc] sm:$0xf]
      %v2174 = vld [vmem:[#allocation5 + $0xc0] sm:$0xff]
      %v2175 = vld [vmem:[#allocation5 + $0xc8] sm:$0xf]
      %v2176 = vld [vmem:[#allocation5 + $0xcc] sm:$0xff]
      %v2177 = vld [vmem:[#allocation5 + $0xd4] sm:$0xf]
      %v2178 = vld [vmem:[#allocation5 + $0xd8] sm:$0xff]
      %v2179 = vld [vmem:[#allocation5 + $0xe0] sm:$0xf]
      %v2180 = vld [vmem:[#allocation5 + $0xe4] sm:$0xff]
      %v2181 = vld [vmem:[#allocation5 + $0xec] sm:$0xf]
      %v2182 = vld [vmem:[#allocation5 + $0xf0] sm:$0xff]
      %v2183 = vld [vmem:[#allocation5 + $0xf8] sm:$0xf]
      %v2184 = vld [vmem:[#allocation5 + $0xfc] sm:$0xff]
      %v2185 = vld [vmem:[#allocation5 + $0x104] sm:$0xf]
      %v2186 = vld [vmem:[#allocation5 + $0x108] sm:$0xff]
      %v2187 = vld [vmem:[#allocation5 + $0x110] sm:$0xf]
      %v2188 = vld [vmem:[#allocation5 + $0x114] sm:$0xff]
      %v2189 = vld [vmem:[#allocation5 + $0x11c] sm:$0xf]
      %v2190 = vld [vmem:[#allocation5 + $0x120] sm:$0xff]
      %v2191 = vld [vmem:[#allocation5 + $0x128] sm:$0xf]
      %v2192 = vld [vmem:[#allocation5 + $0x12c] sm:$0xff]
      %v2193 = vld [vmem:[#allocation5 + $0x134] sm:$0xf]
      %v2194 = vld [vmem:[#allocation5 + $0x138] sm:$0xff]
      %v2195 = vld [vmem:[#allocation5 + $0x140] sm:$0xf]
      %v2196 = vld [vmem:[#allocation5 + $0x144] sm:$0xff]
      %v2197 = vld [vmem:[#allocation5 + $0x14c] sm:$0xf]
      %v2198 = vld [vmem:[#allocation5 + $0x150] sm:$0xff]
      %v2199 = vld [vmem:[#allocation5 + $0x158] sm:$0xf]
      %v2200 = vld [vmem:[#allocation5 + $0x15c] sm:$0xff]
      %v2201 = vld [vmem:[#allocation5 + $0x164] sm:$0xf]
      %v2202 = vld [vmem:[#allocation5 + $0x168] sm:$0xff]
      %v2203 = vld [vmem:[#allocation5 + $0x170] sm:$0xf]
      %v2204 = vld [vmem:[#allocation5 + $0x174] sm:$0xff]
      %v2205 = vld [vmem:[#allocation5 + $0x17c] sm:$0xf]
      %v2206 = vld [vmem:[#allocation5 + $0x180] sm:$0xff]
      %v2207 = vld [vmem:[#allocation5 + $0x188] sm:$0xf]
      %v2208 = vld [vmem:[#allocation5 + $0x18c] sm:$0xff]
      %v2209 = vld [vmem:[#allocation5 + $0x194] sm:$0xf]
      %v2210 = vld [vmem:[#allocation5 + $0x198] sm:$0xff]
      %v2211 = vld [vmem:[#allocation5 + $0x1a0] sm:$0xf]
      %v2212 = vld [vmem:[#allocation5 + $0x1a4] sm:$0xff]
      %v2213 = vld [vmem:[#allocation5 + $0x1ac] sm:$0xf]
      %v2222 = vunpack.c.l.b16 %v2134
      %v2223 = vunpack.c.h.b16 %v2134
      %v2224 = vunpack.c.l.b16 %v2135
      %v2225 = vunpack.c.l.b16 %v2136
      %v2226 = vunpack.c.h.b16 %v2136
      %v2227 = vunpack.c.l.b16 %v2137
      %v2228 = vunpack.c.l.b16 %v2138
      %v2229 = vunpack.c.h.b16 %v2138
      %v2230 = vunpack.c.l.b16 %v2139
      %v2231 = vunpack.c.l.b16 %v2140
      %v2232 = vunpack.c.h.b16 %v2140
      %v2233 = vunpack.c.l.b16 %v2141
      %v2234 = vpack.c.b16 %v2225, %v2222
      %v2235 = vpack.c.b16 %v2226, %v2223
      %v2236 = vpack.c.b16 %v2227, %v2224
      %v2237 = vpack.c.b16 %v2231, %v2228
      %v2238 = vpack.c.b16 %v2232, %v2229
      %v2239 = vpack.c.b16 %v2233, %v2230
      %v2316 = vunpack.c.l.b16 %v2142
      %v2317 = vunpack.c.h.b16 %v2142
      %v2318 = vunpack.c.l.b16 %v2143
      %v2319 = vunpack.c.l.b16 %v2144
      %v2320 = vunpack.c.h.b16 %v2144
      %v2321 = vunpack.c.l.b16 %v2145
      %v2322 = vunpack.c.l.b16 %v2146
      %v2323 = vunpack.c.h.b16 %v2146
      %v2324 = vunpack.c.l.b16 %v2147
      %v2325 = vunpack.c.l.b16 %v2148
      %v2326 = vunpack.c.h.b16 %v2148
      %v2327 = vunpack.c.l.b16 %v2149
      %v2328 = vunpack.c.l.b16 %v2150
      %v2329 = vunpack.c.h.b16 %v2150
      %v2330 = vunpack.c.l.b16 %v2151
      %v2331 = vunpack.c.l.b16 %v2152
      %v2332 = vunpack.c.h.b16 %v2152
      %v2333 = vunpack.c.l.b16 %v2153
      %v2334 = vunpack.c.l.b16 %v2154
      %v2335 = vunpack.c.h.b16 %v2154
      %v2336 = vunpack.c.l.b16 %v2155
      %v2337 = vunpack.c.l.b16 %v2156
      %v2338 = vunpack.c.h.b16 %v2156
      %v2339 = vunpack.c.l.b16 %v2157
      %v2340 = vunpack.c.l.b16 %v2158
      %v2341 = vunpack.c.h.b16 %v2158
      %v2342 = vunpack.c.l.b16 %v2159
      %v2343 = vunpack.c.l.b16 %v2160
      %v2344 = vunpack.c.h.b16 %v2160
      %v2345 = vunpack.c.l.b16 %v2161
      %v2346 = vunpack.c.l.b16 %v2162
      %v2347 = vunpack.c.h.b16 %v2162
      %v2348 = vunpack.c.l.b16 %v2163
      %v2349 = vunpack.c.l.b16 %v2164
      %v2350 = vunpack.c.h.b16 %v2164
      %v2351 = vunpack.c.l.b16 %v2165
      %v2352 = vunpack.c.l.b16 %v2166
      %v2353 = vunpack.c.h.b16 %v2166
      %v2354 = vunpack.c.l.b16 %v2167
      %v2355 = vunpack.c.l.b16 %v2168
      %v2356 = vunpack.c.h.b16 %v2168
      %v2357 = vunpack.c.l.b16 %v2169
      %v2358 = vunpack.c.l.b16 %v2170
      %v2359 = vunpack.c.h.b16 %v2170
      %v2360 = vunpack.c.l.b16 %v2171
      %v2361 = vunpack.c.l.b16 %v2172
      %v2362 = vunpack.c.h.b16 %v2172
      %v2363 = vunpack.c.l.b16 %v2173
      %v2364 = vunpack.c.l.b16 %v2174
      %v2365 = vunpack.c.h.b16 %v2174
      %v2366 = vunpack.c.l.b16 %v2175
      %v2367 = vunpack.c.l.b16 %v2176
      %v2368 = vunpack.c.h.b16 %v2176
      %v2369 = vunpack.c.l.b16 %v2177
      %v2370 = vunpack.c.l.b16 %v2178
      %v2371 = vunpack.c.h.b16 %v2178
      %v2372 = vunpack.c.l.b16 %v2179
      %v2373 = vunpack.c.l.b16 %v2180
      %v2374 = vunpack.c.h.b16 %v2180
      %v2375 = vunpack.c.l.b16 %v2181
      %v2376 = vunpack.c.l.b16 %v2182
      %v2377 = vunpack.c.h.b16 %v2182
      %v2378 = vunpack.c.l.b16 %v2183
      %v2379 = vunpack.c.l.b16 %v2184
      %v2380 = vunpack.c.h.b16 %v2184
      %v2381 = vunpack.c.l.b16 %v2185
      %v2382 = vunpack.c.l.b16 %v2186
      %v2383 = vunpack.c.h.b16 %v2186
      %v2384 = vunpack.c.l.b16 %v2187
      %v2385 = vunpack.c.l.b16 %v2188
      %v2386 = vunpack.c.h.b16 %v2188
      %v2387 = vunpack.c.l.b16 %v2189
      %v2388 = vunpack.c.l.b16 %v2190
      %v2389 = vunpack.c.h.b16 %v2190
      %v2390 = vunpack.c.l.b16 %v2191
      %v2391 = vunpack.c.l.b16 %v2192
      %v2392 = vunpack.c.h.b16 %v2192
      %v2393 = vunpack.c.l.b16 %v2193
      %v2394 = vunpack.c.l.b16 %v2194
      %v2395 = vunpack.c.h.b16 %v2194
      %v2396 = vunpack.c.l.b16 %v2195
      %v2397 = vunpack.c.l.b16 %v2196
      %v2398 = vunpack.c.h.b16 %v2196
      %v2399 = vunpack.c.l.b16 %v2197
      %v2400 = vunpack.c.l.b16 %v2198
      %v2401 = vunpack.c.h.b16 %v2198
      %v2402 = vunpack.c.l.b16 %v2199
      %v2403 = vunpack.c.l.b16 %v2200
      %v2404 = vunpack.c.h.b16 %v2200
      %v2405 = vunpack.c.l.b16 %v2201
      %v2406 = vunpack.c.l.b16 %v2202
      %v2407 = vunpack.c.h.b16 %v2202
      %v2408 = vunpack.c.l.b16 %v2203
      %v2409 = vunpack.c.l.b16 %v2204
      %v2410 = vunpack.c.h.b16 %v2204
      %v2411 = vunpack.c.l.b16 %v2205
      %v2412 = vunpack.c.l.b16 %v2206
      %v2413 = vunpack.c.h.b16 %v2206
      %v2414 = vunpack.c.l.b16 %v2207
      %v2415 = vunpack.c.l.b16 %v2208
      %v2416 = vunpack.c.h.b16 %v2208
      %v2417 = vunpack.c.l.b16 %v2209
      %v2418 = vunpack.c.l.b16 %v2210
      %v2419 = vunpack.c.h.b16 %v2210
      %v2420 = vunpack.c.l.b16 %v2211
      %v2421 = vunpack.c.l.b16 %v2212
      %v2422 = vunpack.c.h.b16 %v2212
      %v2423 = vunpack.c.l.b16 %v2213
      %v2424 = vpack.c.b16 %v2319, %v2316
      %v2425 = vpack.c.b16 %v2320, %v2317
      %v2426 = vpack.c.b16 %v2321, %v2318
      %v2427 = vpack.c.b16 %v2325, %v2322
      %v2428 = vpack.c.b16 %v2326, %v2323
      %v2429 = vpack.c.b16 %v2327, %v2324
      %v2430 = vpack.c.b16 %v2331, %v2328
      %v2431 = vpack.c.b16 %v2332, %v2329
      %v2432 = vpack.c.b16 %v2333, %v2330
      %v2433 = vpack.c.b16 %v2337, %v2334
      %v2434 = vpack.c.b16 %v2338, %v2335
      %v2435 = vpack.c.b16 %v2339, %v2336
      %v2436 = vpack.c.b16 %v2343, %v2340
      %v2437 = vpack.c.b16 %v2344, %v2341
      %v2438 = vpack.c.b16 %v2345, %v2342
      %v2439 = vpack.c.b16 %v2349, %v2346
      %v2440 = vpack.c.b16 %v2350, %v2347
      %v2441 = vpack.c.b16 %v2351, %v2348
      %v2442 = vpack.c.b16 %v2355, %v2352
      %v2443 = vpack.c.b16 %v2356, %v2353
      %v2444 = vpack.c.b16 %v2357, %v2354
      %v2445 = vpack.c.b16 %v2361, %v2358
      %v2446 = vpack.c.b16 %v2362, %v2359
      %v2447 = vpack.c.b16 %v2363, %v2360
      %v2448 = vpack.c.b16 %v2367, %v2364
      %v2449 = vpack.c.b16 %v2368, %v2365
      %v2450 = vpack.c.b16 %v2369, %v2366
      %v2451 = vpack.c.b16 %v2373, %v2370
      %v2452 = vpack.c.b16 %v2374, %v2371
      %v2453 = vpack.c.b16 %v2375, %v2372
      %v2454 = vpack.c.b16 %v2379, %v2376
      %v2455 = vpack.c.b16 %v2380, %v2377
      %v2456 = vpack.c.b16 %v2381, %v2378
      %v2457 = vpack.c.b16 %v2385, %v2382
      %v2458 = vpack.c.b16 %v2386, %v2383
      %v2459 = vpack.c.b16 %v2387, %v2384
      %v2460 = vpack.c.b16 %v2391, %v2388
      %v2461 = vpack.c.b16 %v2392, %v2389
      %v2462 = vpack.c.b16 %v2393, %v2390
      %v2463 = vpack.c.b16 %v2397, %v2394
      %v2464 = vpack.c.b16 %v2398, %v2395
      %v2465 = vpack.c.b16 %v2399, %v2396
      %v2466 = vpack.c.b16 %v2403, %v2400
      %v2467 = vpack.c.b16 %v2404, %v2401
      %v2468 = vpack.c.b16 %v2405, %v2402
      %v2469 = vpack.c.b16 %v2409, %v2406
      %v2470 = vpack.c.b16 %v2410, %v2407
      %v2471 = vpack.c.b16 %v2411, %v2408
      %v2472 = vpack.c.b16 %v2415, %v2412
      %v2473 = vpack.c.b16 %v2416, %v2413
      %v2474 = vpack.c.b16 %v2417, %v2414
      %v2475 = vpack.c.b16 %v2421, %v2418
      %v2476 = vpack.c.b16 %v2422, %v2419
      %v2477 = vpack.c.b16 %v2423, %v2420
      %v2533 = vsel %vm1244, %v2236, 0
      %v2536 = vsel %vm1244, %v2239, 0
      %2538 = vmatpush.bf16.msra.mxu0 %v2445
      %2539 = vmatpush.bf16.msra.mxu0 %v2442
      %2540 = vmatpush.bf16.msra.mxu0 %v2439
      %2541 = vmatpush.bf16.msra.mxu0 %v2436
      %2542 = vmatpush.bf16.msra.mxu0 %v2433
      %2543 = vmatpush.bf16.msra.mxu0 %v2430
      %2544 = vmatpush.bf16.msra.mxu0 %v2427
      %2545 = vmatpush.bf16.msra.mxu0 %v2424
      %2546 = vmatmul.bf16.gmra.mxu0 %v2234
      %v2547 = vpop.f32.mrf.mxu0
      %v2548 = vadd.f32 0.0, %v2547
      %v2549 = vpop.f32.mrf.mxu0
      %v2550 = vadd.f32 0.0, %v2549
      %2551 = vmatmul.bf16.gmra.mxu0 %v2237
      %v2552 = vpop.f32.mrf.mxu0
      %v2553 = vadd.f32 0.0, %v2552
      %v2554 = vpop.f32.mrf.mxu0
      %v2555 = vadd.f32 0.0, %v2554
      %2556 = vdwg.mxu0
      %2557 = vmatpush.bf16.msra.mxu0 %v2469
      %2558 = vmatpush.bf16.msra.mxu0 %v2466
      %2559 = vmatpush.bf16.msra.mxu0 %v2463
      %2560 = vmatpush.bf16.msra.mxu0 %v2460
      %2561 = vmatpush.bf16.msra.mxu0 %v2457
      %2562 = vmatpush.bf16.msra.mxu0 %v2454
      %2563 = vmatpush.bf16.msra.mxu0 %v2451
      %2564 = vmatpush.bf16.msra.mxu0 %v2448
      %2565 = vmatmul.bf16.gmra.mxu0 %v2235
      %v2566 = vpop.f32.mrf.mxu0
      %v2567 = vadd.f32 %v2548, %v2566
      %v2568 = vpop.f32.mrf.mxu0
      %v2569 = vadd.f32 %v2550, %v2568
      %2570 = vmatmul.bf16.gmra.mxu0 %v2238
      %v2571 = vpop.f32.mrf.mxu0
      %v2572 = vadd.f32 %v2553, %v2571
      %v2573 = vpop.f32.mrf.mxu0
      %v2574 = vadd.f32 %v2555, %v2573
      %2575 = vdwg.mxu0
      %2576 = vmatpush.bf16.msra.mxu0 0
      %2577 = vmatpush.bf16.msra.mxu0 0
      %2578 = vmatpush.bf16.msra.mxu0 0
      %2579 = vmatpush.bf16.msra.mxu0 0
      %2580 = vmatpush.bf16.msra.mxu0 0
      %2581 = vmatpush.bf16.msra.mxu0 0
      %2582 = vmatpush.bf16.msra.mxu0 %v2475
      %2583 = vmatpush.bf16.msra.mxu0 %v2472
      %2584 = vmatmul.bf16.gmra.mxu0 %v2533
      %v2585 = vpop.f32.mrf.mxu0
      %v2586 = vadd.f32 %v2567, %v2585
      %v2587 = vpop.f32.mrf.mxu0
      %v2588 = vadd.f32 %v2569, %v2587
      %2589 = vmatmul.bf16.gmra.mxu0 %v2536
      %v2590 = vpop.f32.mrf.mxu0
      %v2591 = vadd.f32 %v2572, %v2590
      %v2592 = vpop.f32.mrf.mxu0
      %v2593 = vadd.f32 %v2574, %v2592
      %2594 = vdwg.mxu0
      %2595 = vmatpush.bf16.msra.mxu0 %v2446
      %2596 = vmatpush.bf16.msra.mxu0 %v2443
      %2597 = vmatpush.bf16.msra.mxu0 %v2440
      %2598 = vmatpush.bf16.msra.mxu0 %v2437
      %2599 = vmatpush.bf16.msra.mxu0 %v2434
      %2600 = vmatpush.bf16.msra.mxu0 %v2431
      %2601 = vmatpush.bf16.msra.mxu0 %v2428
      %2602 = vmatpush.bf16.msra.mxu0 %v2425
      %2603 = vmatmul.bf16.gmra.mxu0 %v2234
      %v2604 = vpop.f32.mrf.mxu0
      %v2605 = vadd.f32 0.0, %v2604
      %v2606 = vpop.f32.mrf.mxu0
      %v2607 = vadd.f32 0.0, %v2606
      %2608 = vmatmul.bf16.gmra.mxu0 %v2237
      %v2609 = vpop.f32.mrf.mxu0
      %v2610 = vadd.f32 0.0, %v2609
      %v2611 = vpop.f32.mrf.mxu0
      %v2612 = vadd.f32 0.0, %v2611
      %2613 = vdwg.mxu0
      %2614 = vmatpush.bf16.msra.mxu0 %v2470
      %2615 = vmatpush.bf16.msra.mxu0 %v2467
      %2616 = vmatpush.bf16.msra.mxu0 %v2464
      %2617 = vmatpush.bf16.msra.mxu0 %v2461
      %2618 = vmatpush.bf16.msra.mxu0 %v2458
      %2619 = vmatpush.bf16.msra.mxu0 %v2455
      %2620 = vmatpush.bf16.msra.mxu0 %v2452
      %2621 = vmatpush.bf16.msra.mxu0 %v2449
      %2622 = vmatmul.bf16.gmra.mxu0 %v2235
      %v2623 = vpop.f32.mrf.mxu0
      %v2624 = vadd.f32 %v2605, %v2623
      %v2625 = vpop.f32.mrf.mxu0
      %v2626 = vadd.f32 %v2607, %v2625
      %2627 = vmatmul.bf16.gmra.mxu0 %v2238
      %v2628 = vpop.f32.mrf.mxu0
      %v2629 = vadd.f32 %v2610, %v2628
      %v2630 = vpop.f32.mrf.mxu0
      %v2631 = vadd.f32 %v2612, %v2630
      %2632 = vdwg.mxu0
      %2633 = vmatpush.bf16.msra.mxu0 0
      %2634 = vmatpush.bf16.msra.mxu0 0
      %2635 = vmatpush.bf16.msra.mxu0 0
      %2636 = vmatpush.bf16.msra.mxu0 0
      %2637 = vmatpush.bf16.msra.mxu0 0
      %2638 = vmatpush.bf16.msra.mxu0 0
      %2639 = vmatpush.bf16.msra.mxu0 %v2476
      %2640 = vmatpush.bf16.msra.mxu0 %v2473
      %2641 = vmatmul.bf16.gmra.mxu0 %v2533
      %v2642 = vpop.f32.mrf.mxu0
      %v2643 = vadd.f32 %v2624, %v2642
      %v2644 = vpop.f32.mrf.mxu0
      %v2645 = vadd.f32 %v2626, %v2644
      %2646 = vmatmul.bf16.gmra.mxu0 %v2536
      %v2647 = vpop.f32.mrf.mxu0
      %v2648 = vadd.f32 %v2629, %v2647
      %v2649 = vpop.f32.mrf.mxu0
      %v2650 = vadd.f32 %v2631, %v2649
      %2651 = vdwg.mxu0
      %2652 = vmatpush.bf16.msra.mxu0 %v2447
      %2653 = vmatpush.bf16.msra.mxu0 %v2444
      %2654 = vmatpush.bf16.msra.mxu0 %v2441
      %2655 = vmatpush.bf16.msra.mxu0 %v2438
      %2656 = vmatpush.bf16.msra.mxu0 %v2435
      %2657 = vmatpush.bf16.msra.mxu0 %v2432
      %2658 = vmatpush.bf16.msra.mxu0 %v2429
      %2659 = vmatpush.bf16.msra.mxu0 %v2426
      %2660 = vmatmul.bf16.gmra.mxu0 %v2234
      %v2661 = vpop.f32.mrf.mxu0
      %v2662 = vadd.f32 0.0, %v2661
      %v2663 = vpop.f32.mrf.mxu0
      %v2664 = vadd.f32 0.0, %v2663
      %2665 = vmatmul.bf16.gmra.mxu0 %v2237
      %v2666 = vpop.f32.mrf.mxu0
      %v2667 = vadd.f32 0.0, %v2666
      %v2668 = vpop.f32.mrf.mxu0
      %v2669 = vadd.f32 0.0, %v2668
      %2670 = vdwg.mxu0
      %2671 = vmatpush.bf16.msra.mxu0 %v2471
      %2672 = vmatpush.bf16.msra.mxu0 %v2468
      %2673 = vmatpush.bf16.msra.mxu0 %v2465
      %2674 = vmatpush.bf16.msra.mxu0 %v2462
      %2675 = vmatpush.bf16.msra.mxu0 %v2459
      %2676 = vmatpush.bf16.msra.mxu0 %v2456
      %2677 = vmatpush.bf16.msra.mxu0 %v2453
      %2678 = vmatpush.bf16.msra.mxu0 %v2450
      %2679 = vmatmul.bf16.gmra.mxu0 %v2235
      %v2680 = vpop.f32.mrf.mxu0
      %v2681 = vadd.f32 %v2662, %v2680
      %v2682 = vpop.f32.mrf.mxu0
      %v2683 = vadd.f32 %v2664, %v2682
      %2684 = vmatmul.bf16.gmra.mxu0 %v2238
      %v2685 = vpop.f32.mrf.mxu0
      %v2686 = vadd.f32 %v2667, %v2685
      %v2687 = vpop.f32.mrf.mxu0
      %v2688 = vadd.f32 %v2669, %v2687
      %2689 = vdwg.mxu0
      %2690 = vmatpush.bf16.msra.mxu0 0
      %2691 = vmatpush.bf16.msra.mxu0 0
      %2692 = vmatpush.bf16.msra.mxu0 0
      %2693 = vmatpush.bf16.msra.mxu0 0
      %2694 = vmatpush.bf16.msra.mxu0 0
      %2695 = vmatpush.bf16.msra.mxu0 0
      %2696 = vmatpush.bf16.msra.mxu0 %v2477
      %2697 = vmatpush.bf16.msra.mxu0 %v2474
      %2698 = vmatmul.bf16.gmra.mxu0 %v2533
      %v2699 = vpop.f32.mrf.mxu0
      %v2700 = vadd.f32 %v2681, %v2699
      %v2701 = vpop.f32.mrf.mxu0
      %v2702 = vadd.f32 %v2683, %v2701
      %2703 = vmatmul.bf16.gmra.mxu0 %v2536
      %v2704 = vpop.f32.mrf.mxu0
      %v2705 = vadd.f32 %v2686, %v2704
      %v2706 = vpop.f32.mrf.mxu0
      %v2707 = vadd.f32 %v2688, %v2706
      %2708 = vdwg.mxu0
      %2709 = vst [vmem:[%s251] sm:$0xff] %v2586
      %2710 = vst [vmem:[%s251 + $0x8] sm:$0xff] %v2643
      %2711 = vst [vmem:[%s251 + $0x10] sm:$0xff] %v2700
      %2712 = vst [vmem:[%s251 + $0x18] sm:$0xff] %v2588
      %2713 = vst [vmem:[%s251 + $0x20] sm:$0xff] %v2645
      %2714 = vst [vmem:[%s251 + $0x28] sm:$0xff] %v2702
      %2715 = vst [vmem:[%s251 + $0x30] sm:$0xff] %v2591
      %2716 = vst [vmem:[%s251 + $0x38] sm:$0xff] %v2648
      %2717 = vst [vmem:[%s251 + $0x40] sm:$0xff] %v2705
      %2718 = vst [vmem:[%s251 + $0x48] sm:$0xff] %v2593
      %2719 = vst [vmem:[%s251 + $0x50] sm:$0xff] %v2650
      %2720 = vst [vmem:[%s251 + $0x58] sm:$0xff] %v2707
      %p2721 = scmp.lt.s32.totalorder %s17, 1
      %s2722 = scalar_select %p2721, %s17, 1
      %s2723 = smul.addr %s2722, 12
      %s2724 = smul.addr %s2723, 8
      %s2725 = scalar_lea.vmem %s6, %s2724
      // Predicated region
      $region45: #{res_block_forward.3} parent=43 // pred_check
        %p2726 = pneg %p166
      $region46: #{res_block_forward.3} parent=43 // pred_check_branch
        %2728 = sbr.rel (%p2726) target = $region48
      $region47: #{res_block_forward.3} parent=43 // pred_region
        _
      $region48: #{res_block_forward.3} parent=43 // pred_fallthru
        _
    $region44: #{res_block_forward.3} parent=5 // pred_fallthru
      _
    %p2729 = scmp.le.s32.totalorder 2, %s12
    // Predicated region
    $region49: #{res_block_forward.3} parent=5 // pred_check
      %p2730 = pneg %p2729
    $region50: #{res_block_forward.3} parent=5 // pred_check_branch
      %2732 = sbr.rel (%p2730) target = $region52
    $region51: #{res_block_forward.3} parent=5 // pred_region
      %s2733 = ssub.s32 %s12, 2
      // Predicated region
      $region53: #{res_block_forward.3} parent=51 // pred_check
        %p2734 = pneg %p172
      $region54: #{res_block_forward.3} parent=51 // pred_check_branch
        %2736 = sbr.rel (%p2734) target = $region56
      $region55: #{res_block_forward.3} parent=51 // pred_region
        %p2737 = scmp.lt.s32.totalorder %s18, 1
        %s2738 = scalar_select %p2737, %s18, 1
        %s2739 = smul.addr %s2738, 12
        %s2740 = smul.addr %s2739, 8
        %s2741 = scalar_lea.vmem %s6, %s2740
      $region56: #{res_block_forward.3} parent=51 // pred_fallthru
        _
    $region52: #{res_block_forward.3} parent=5 // pred_fallthru
      _
  $region6: #{res_block_forward.3} parent=0 // loop_footer
    %s16 = sadd.s32 1, %s12
  $region7: #{res_block_forward.3} parent=0 // loop_footer_branch
    %11 = sbr.rel target = $region3
  $region8: #{res_block_forward.3} parent=0 // loop_exit
    _

</llo_original>
